<compile_context>
chip_gen: v5e
topology: v5e:2x2
jax: 0.10.0
libtpu: 0.0.40
codegen_flags: <defaults>
</compile_context>

<pallas_src>
import math

import jax
import jax.numpy as jnp
from jax.experimental import pallas as pl
from jax.experimental.pallas import tpu as pltpu

HIDDEN_SIZE = 32
NUM_LAYERS = 1
WINDOW_SIZE = 8
NUM_ITERS = 3        # fixed `for _ in range(3)` refinement loop in the reference forward


# ------------------------------ fused kernel ------------------------------- #

def _mixed_lstm_kernel(rx_ref,
                       w_rx_ref, b1_ref, w_fb_ref, whh1_ref,
                       w_dnn_ref, b_dnn_ref,
                       w_pre2_ref, b2_ref, whh2_ref,
                       w_net_ref, b_net_ref,
                       inter_out_ref, states_out_ref):
    """Whole MixedLSTM forward (all 3 refinement iterations) for one batch tile.

    Shapes (H = HIDDEN_SIZE, W = WINDOW_SIZE, L = #windows, L4 = L // 4,
    S = n_states; weights pre-transposed / block-diagonal, see prepare_params):
      rx_ref:         [B, L*W]
      w_rx_ref:       [L*W,  L*4H]   blkdiag_L(interference W_ih[:, :W]^T)
      b1_ref:         [1, L*4H]      tiled (b_ih + b_hh)
      w_fb_ref:       [L4*S, L4*4H]  blkdiag_L4(interference W_ih[:, W:]^T)
      whh1_ref:       [H, 4H]        interference W_hh^T
      w_dnn_ref:      [L*H, L*W]     blkdiag_L(interference_dnn Linear W^T)
      b_dnn_ref:      [1, L*W]
      w_pre2_ref:     [L*W, L4*4H]   blkdiag_L4(signal W_ih^T)
      b2_ref:         [1, L4*4H]
      whh2_ref:       [H, 4H]        signal W_hh^T
      w_net_ref:      [L4*H, L4*S]   blkdiag_L4(normalized_signal_net W^T)
      b_net_ref:      [1, L4*S]
      inter_out_ref:  [B, L*W]       final interference estimate (flat)
      states_out_ref: [B, L4*S]      final state logits (flat)
    """
    f32 = jnp.float32
    B = rx_ref.shape[0]
    H = whh1_ref.shape[0]
    H4 = whh1_ref.shape[1]
    L = w_dnn_ref.shape[0] // H
    L4 = L // 4

    rx = rx_ref[...]                             # [B, L*W]
    whh1 = whh1_ref[...]                         # hot recurrent operands, kept resident
    whh2 = whh2_ref[...]

    def lstm_cell(pre, h, c, whh):
        """One LSTM step; `pre` already holds x @ W_ih^T + (b_ih + b_hh)."""
        gates = pre + jnp.dot(h, whh, preferred_element_type=f32)        # [B, 4H]
        sg = jax.nn.sigmoid(gates)   # whole-vreg EUP push
        th = jnp.tanh(gates)         # whole-vreg EUP push
        c_new = sg[:, H:2 * H] * c + sg[:, :H] * th[:, 2 * H:3 * H]      # f*c + i*g
        h_new = sg[:, 3 * H:] * jnp.tanh(c_new)                          # o*tanh(c')
        return h_new, c_new

    # Hoisted, iteration-invariant rx input projection for ALL windows at once.
    # Window l's gate slab is the 128-aligned lane slice [:, l*4H:(l+1)*4H].
    rx_gate = (jnp.dot(rx, w_rx_ref[...], preferred_element_type=f32)
               + b1_ref[...])                                            # [B, L*4H]

    zeros_bh = jnp.zeros((B, H), f32)
    fb_gate = None            # iteration-0 feedback states are zero
    est_flat = None
    states_flat = None

    for it in range(NUM_ITERS):
        # --- interference LSTM: pure cell chain (ReLU+Linear head deferred) ---
        h1, c1 = zeros_bh, zeros_bh
        h1_list = []
        for l in range(L):
            pre = rx_gate[:, l * H4:(l + 1) * H4]
            if fb_gate is not None:
                # The reference's repeat_interleave(2W) + reshape + [:, :, :S]
                # reduces exactly to "window l sees states_est[:, l//4, :]".
                q = l // 4
                pre = pre + fb_gate[:, q * H4:(q + 1) * H4]
            h1, c1 = lstm_cell(pre, h1, c1, whh1)
            h1_list.append(h1)

        # --- interference_dnn for all L windows in ONE matmul, off the chain;
        #     output lands directly in the b-major flat [B, L*W] layout. ---
        h1_cat = jnp.concatenate(h1_list, axis=1)                        # [B, L*H]
        est_flat = (jnp.dot(jnp.maximum(h1_cat, 0.0), w_dnn_ref[...],
                            preferred_element_type=f32) + b_dnn_ref[...])  # [B, L*W]
        wi_flat = rx - est_flat                                          # [B, L*W]

        # --- signal-LSTM input projection: ONE matmul covering the 4-window
        #     regrouping for all L4 symbols (128-aligned slabs again). ---
        pre2 = (jnp.dot(wi_flat, w_pre2_ref[...], preferred_element_type=f32)
                + b2_ref[...])                                           # [B, L4*4H]

        # --- signal LSTM: pure cell chain ---
        h2, c2 = zeros_bh, zeros_bh
        h2_list = []
        for m in range(L4):
            h2, c2 = lstm_cell(pre2[:, m * H4:(m + 1) * H4], h2, c2, whh2)
            h2_list.append(h2)

        # --- normalized_signal_net for all L4 symbols in ONE matmul ---
        h2_cat = jnp.concatenate(h2_list, axis=1)                        # [B, L4*H]
        states_flat = (jnp.dot(jnp.maximum(h2_cat, 0.0), w_net_ref[...],
                               preferred_element_type=f32) + b_net_ref[...])  # [B, L4*S]

        # --- feedback projection for the next refinement iteration: one matmul ---
        if it + 1 < NUM_ITERS:
            fb_gate = jnp.dot(states_flat, w_fb_ref[...],
                              preferred_element_type=f32)                # [B, L4*4H]

    # Exactly one lane-dense store per output.
    inter_out_ref[...] = est_flat
    states_out_ref[...] = states_flat


# -------------------------------- wrapper ----------------------------------- #

def mixed_lstm_forward(rx, params, n_states, phase="val"):
    """rx: [batch, transmission_length] -> detected bits [B, L//4, log2(n_states)]
    (or (interference_est, states_est) when phase == 'training')."""
    B, t_len = rx.shape
    W = WINDOW_SIZE
    L = t_len // W
    L4 = L // 4
    assert params["w_pre2"].shape[0] == L * W, \
        "params were prepared for a different transmission_length"

    # Batch tiling: weights use a constant index_map so they stay VMEM-resident
    # across tiles; "parallel" lets large batches shard across v7x's two
    # TensorCores.  For the demo batch this is a single grid step.
    TB = 8 if B % 8 == 0 else B
    grid = (B // TB,)

    wnames = ("w_rx", "b1", "w_fb", "whh1", "w_dnn", "b_dnn",
              "w_pre2", "b2", "whh2", "w_net", "b_net")
    in_specs = ([pl.BlockSpec((TB, L * W), lambda i: (i, 0))]
                + [pl.BlockSpec(params[k].shape, lambda i: (0, 0)) for k in wnames])
    out_specs = (pl.BlockSpec((TB, L * W), lambda i: (i, 0)),
                 pl.BlockSpec((TB, L4 * n_states), lambda i: (i, 0)))

    inter_flat, states_flat = pl.pallas_call(
        _mixed_lstm_kernel,
        out_shape=(jax.ShapeDtypeStruct((B, L * W), jnp.float32),
                   jax.ShapeDtypeStruct((B, L4 * n_states), jnp.float32)),
        grid=grid,
        in_specs=in_specs,
        out_specs=out_specs,
        compiler_params=pltpu.CompilerParams(dimension_semantics=("parallel",)),
    )(rx.astype(jnp.float32), *(params[k] for k in wnames))

    interference_est = inter_flat.reshape(B, L, W)
    states_est = states_flat.reshape(B, L4, n_states)

    if phase != "training":
        states = jnp.argmax(states_est, axis=2)
        return binary(states, bits=int(math.log2(n_states)))
    return interference_est, states_est


def binary(x, bits):
    """JAX port of the PyTorch `binary` helper: LSB-first bit expansion."""
    mask = 2 ** jnp.arange(bits, dtype=x.dtype)
    return (jnp.bitwise_and(x[..., None], mask) != 0).astype(jnp.uint8)


# ----------------------------- parameter init ------------------------------- #

def init_params(key, n_states, freq_spacing):
    """Deterministic synthetic params in native PyTorch layouts."""
    ks = jax.random.split(key, 12)
    bound = 1.0 / math.sqrt(HIDDEN_SIZE)

    def u(k, shape):
        return jax.random.uniform(k, shape, jnp.float32, -bound, bound)

    d_int = WINDOW_SIZE + n_states
    return {
        # interference_lstm: LSTM(WINDOW_SIZE + n_states, 32)
        "int_wih": u(ks[0], (4 * HIDDEN_SIZE, d_int)),
        "int_whh": u(ks[1], (4 * HIDDEN_SIZE, HIDDEN_SIZE)),
        "int_b":   u(ks[2], (4 * HIDDEN_SIZE,)) + u(ks[3], (4 * HIDDEN_SIZE,)),
        # interference_dnn: Sequential(ReLU, Linear(32, WINDOW_SIZE))
        "int_dnn_w": u(ks[4], (WINDOW_SIZE, HIDDEN_SIZE)),
        "int_dnn_b": u(ks[5], (WINDOW_SIZE,)),
        # normalized_signal_lstm: LSTM(freq_spacing, 32)
        "sig_wih": u(ks[6], (4 * HIDDEN_SIZE, freq_spacing)),
        "sig_whh": u(ks[7], (4 * HIDDEN_SIZE, HIDDEN_SIZE)),
        "sig_b":   u(ks[8], (4 * HIDDEN_SIZE,)) + u(ks[9], (4 * HIDDEN_SIZE,)),
        # normalized_signal_net: Sequential(ReLU, Linear(32, n_states))
        "sig_net_w": u(ks[10], (n_states, HIDDEN_SIZE)),
        "sig_net_b": u(ks[11], (n_states,)),
    }


def prepare_params(raw, transmission_length):
    """One-time layout prep (at init, not per call): transpose weights into
    lane-dense matmul operands and expand every per-window / per-symbol
    projection into a block-diagonal weight so the kernel runs each of them as
    a single MXU matmul on a flat [B, .] slab (total ~400 KB, VMEM-trivial)."""
    W, H = WINDOW_SIZE, HIDDEN_SIZE
    L = transmission_length // W
    L4 = L // 4
    assert L % 4 == 0, "transmission_length must be a multiple of 4*WINDOW_SIZE"
    assert raw["sig_wih"].shape[1] == 4 * W, \
        "freq_spacing must equal 4*WINDOW_SIZE (required by the reference reshape)"

    def bd(w_t, n):                                   # block_diag of n copies
        return jnp.kron(jnp.eye(n, dtype=w_t.dtype), w_t)

    def tile_bias(b, n):
        return jnp.tile(b[None, :], (1, n))

    return {
        "w_rx":   bd(raw["int_wih"][:, :W].T, L),     # [L*W,  L*4H]
        "b1":     tile_bias(raw["int_b"], L),         # [1, L*4H]
        "w_fb":   bd(raw["int_wih"][:, W:].T, L4),    # [L4*S, L4*4H]
        "whh1":   raw["int_whh"].T,                   # [H, 4H]
        "w_dnn":  bd(raw["int_dnn_w"].T, L),          # [L*H,  L*W]
        "b_dnn":  tile_bias(raw["int_dnn_b"], L),     # [1, L*W]
        "w_pre2": bd(raw["sig_wih"].T, L4),           # [L*W,  L4*4H]
        "b2":     tile_bias(raw["sig_b"], L4),        # [1, L4*4H]
        "whh2":   raw["sig_whh"].T,                   # [H, 4H]
        "w_net":  bd(raw["sig_net_w"].T, L4),         # [L4*H, L4*S]
        "b_net":  tile_bias(raw["sig_net_b"], L4),    # [1, L4*S]
    }


# ---------------------------------- main ------------------------------------ #

if __name__ == "__main__":
    n_states = 4                      # -> 2 bits per detected symbol
    freq_spacing = 4 * WINDOW_SIZE    # must be 32 so the signal-LSTM input reshape matches

    batch, transmission_length = 2, 64          # L = 8 windows, L//4 = 2 symbols

    key = jax.random.PRNGKey(0)
    pkey, xkey = jax.random.split(key)
    params = prepare_params(init_params(pkey, n_states, freq_spacing),
                            transmission_length)
    rx = jax.random.normal(xkey, (batch, transmission_length), jnp.float32)

    fwd = jax.jit(lambda r: mixed_lstm_forward(r, params, n_states, phase="val"))
    out = jax.block_until_ready(fwd(rx))

    expected_shape = (batch, transmission_length // (4 * WINDOW_SIZE),
                      int(math.log2(n_states)))
    assert out.shape == expected_shape, out.shape
    assert out.dtype == jnp.uint8, out.dtype
    print("KERNEL_OK")
</pallas_src>

<mosaic_0001>
module attributes {stable_mosaic.version = 11 : i64} {
  func.func @_mixed_lstm_kernel(%arg0: i32, %arg1: memref<2x64xf32, #tpu.memory_space<vmem>>, %arg2: memref<64x1024xf32, #tpu.memory_space<vmem>>, %arg3: memref<1x1024xf32, #tpu.memory_space<vmem>>, %arg4: memref<8x256xf32, #tpu.memory_space<vmem>>, %arg5: memref<32x128xf32, #tpu.memory_space<vmem>>, %arg6: memref<256x64xf32, #tpu.memory_space<vmem>>, %arg7: memref<1x64xf32, #tpu.memory_space<vmem>>, %arg8: memref<64x256xf32, #tpu.memory_space<vmem>>, %arg9: memref<1x256xf32, #tpu.memory_space<vmem>>, %arg10: memref<32x128xf32, #tpu.memory_space<vmem>>, %arg11: memref<64x8xf32, #tpu.memory_space<vmem>>, %arg12: memref<1x8xf32, #tpu.memory_space<vmem>>, %arg13: memref<2x64xf32, #tpu.memory_space<vmem>>, %arg14: memref<2x8xf32, #tpu.memory_space<vmem>>) attributes {dimension_semantics = [#tpu.dimension_semantics<parallel>], iteration_bounds = array<i64: 1>, scalar_prefetch = 0 : i64, scratch_operands = 0 : i64, tpu.core_type = #tpu.core_type<tc>, window_params = [{transform_indices = @transform_0, window_bounds = array<i64: 2, 64>}, {pipeline_mode = #tpu.pipeline_mode<synchronous>, transform_indices = @transform_1, window_bounds = array<i64: 64, 1024>}, {pipeline_mode = #tpu.pipeline_mode<synchronous>, transform_indices = @transform_2, window_bounds = array<i64: 1, 1024>}, {pipeline_mode = #tpu.pipeline_mode<synchronous>, transform_indices = @transform_3, window_bounds = array<i64: 8, 256>}, {pipeline_mode = #tpu.pipeline_mode<synchronous>, transform_indices = @transform_4, window_bounds = array<i64: 32, 128>}, {pipeline_mode = #tpu.pipeline_mode<synchronous>, transform_indices = @transform_5, window_bounds = array<i64: 256, 64>}, {pipeline_mode = #tpu.pipeline_mode<synchronous>, transform_indices = @transform_6, window_bounds = array<i64: 1, 64>}, {pipeline_mode = #tpu.pipeline_mode<synchronous>, transform_indices = @transform_7, window_bounds = array<i64: 64, 256>}, {pipeline_mode = #tpu.pipeline_mode<synchronous>, transform_indices = @transform_8, window_bounds = array<i64: 1, 256>}, {pipeline_mode = #tpu.pipeline_mode<synchronous>, transform_indices = @transform_9, window_bounds = array<i64: 32, 128>}, {pipeline_mode = #tpu.pipeline_mode<synchronous>, transform_indices = @transform_10, window_bounds = array<i64: 64, 8>}, {pipeline_mode = #tpu.pipeline_mode<synchronous>, transform_indices = @transform_11, window_bounds = array<i64: 1, 8>}, {transform_indices = @transform_12, window_bounds = array<i64: 2, 64>}, {transform_indices = @transform_13, window_bounds = array<i64: 2, 8>}]} {
    %c0 = arith.constant 0 : index
    %c0_0 = arith.constant 0 : index
    %0 = vector.load %arg1[%c0, %c0_0] : memref<2x64xf32, #tpu.memory_space<vmem>>, vector<2x64xf32>
    %c0_1 = arith.constant 0 : index
    %c0_2 = arith.constant 0 : index
    %1 = vector.load %arg5[%c0_1, %c0_2] : memref<32x128xf32, #tpu.memory_space<vmem>>, vector<32x128xf32>
    %c0_3 = arith.constant 0 : index
    %c0_4 = arith.constant 0 : index
    %2 = vector.load %arg10[%c0_3, %c0_4] : memref<32x128xf32, #tpu.memory_space<vmem>>, vector<32x128xf32>
    %c0_5 = arith.constant 0 : index
    %c0_6 = arith.constant 0 : index
    %3 = vector.load %arg2[%c0_5, %c0_6] : memref<64x1024xf32, #tpu.memory_space<vmem>>, vector<64x1024xf32>
    %cst = arith.constant dense<0.000000e+00> : vector<2x1024xf32>
    %4 = tpu.matmul %0, %3, %cst {dimension_numbers = #tpu.dot_dimension_numbers<[1], [0], [0], [1], [0, 0, 1, 1], [], []>} : vector<2x64xf32>, vector<64x1024xf32>, vector<2x1024xf32> -> vector<2x1024xf32>
    %c0_7 = arith.constant 0 : index
    %c0_8 = arith.constant 0 : index
    %5 = vector.load %arg3[%c0_7, %c0_8] : memref<1x1024xf32, #tpu.memory_space<vmem>>, vector<1x1024xf32>
    %6 = vector.broadcast %5 : vector<1x1024xf32> to vector<2x1024xf32>
    %7 = arith.addf %4, %6 : vector<2x1024xf32>
    %cst_9 = arith.constant 0.000000e+00 : f32
    %8 = vector.broadcast %cst_9 : f32 to vector<2x32xf32>
    %9 = vector.extract_strided_slice %7 {offsets = [0, 0], sizes = [2, 128], strides = [1, 1]} : vector<2x1024xf32> to vector<2x128xf32>
    %cst_10 = arith.constant dense<0.000000e+00> : vector<2x128xf32>
    %10 = tpu.matmul %8, %1, %cst_10 {dimension_numbers = #tpu.dot_dimension_numbers<[1], [0], [0], [1], [0, 0, 1, 1], [], []>} : vector<2x32xf32>, vector<32x128xf32>, vector<2x128xf32> -> vector<2x128xf32>
    %11 = arith.addf %9, %10 : vector<2x128xf32>
    %12 = arith.negf %11 : vector<2x128xf32>
    %13 = math.exp %12 : vector<2x128xf32>
    %cst_11 = arith.constant 1.000000e+00 : f32
    %14 = vector.broadcast %cst_11 : f32 to vector<2x128xf32>
    %15 = arith.addf %14, %13 : vector<2x128xf32>
    %16 = arith.divf %14, %15 : vector<2x128xf32>
    %17 = math.tanh %11 : vector<2x128xf32>
    %18 = vector.extract_strided_slice %16 {offsets = [0, 32], sizes = [2, 32], strides = [1, 1]} : vector<2x128xf32> to vector<2x32xf32>
    %19 = arith.mulf %18, %8 : vector<2x32xf32>
    %20 = vector.extract_strided_slice %16 {offsets = [0, 0], sizes = [2, 32], strides = [1, 1]} : vector<2x128xf32> to vector<2x32xf32>
    %21 = vector.extract_strided_slice %17 {offsets = [0, 64], sizes = [2, 32], strides = [1, 1]} : vector<2x128xf32> to vector<2x32xf32>
    %22 = arith.mulf %20, %21 : vector<2x32xf32>
    %23 = arith.addf %19, %22 : vector<2x32xf32>
    %24 = vector.extract_strided_slice %16 {offsets = [0, 96], sizes = [2, 32], strides = [1, 1]} : vector<2x128xf32> to vector<2x32xf32>
    %25 = math.tanh %23 : vector<2x32xf32>
    %26 = arith.mulf %24, %25 : vector<2x32xf32>
    %27 = vector.extract_strided_slice %7 {offsets = [0, 128], sizes = [2, 128], strides = [1, 1]} : vector<2x1024xf32> to vector<2x128xf32>
    %cst_12 = arith.constant dense<0.000000e+00> : vector<2x128xf32>
    %28 = tpu.matmul %26, %1, %cst_12 {dimension_numbers = #tpu.dot_dimension_numbers<[1], [0], [0], [1], [0, 0, 1, 1], [], []>} : vector<2x32xf32>, vector<32x128xf32>, vector<2x128xf32> -> vector<2x128xf32>
    %29 = arith.addf %27, %28 : vector<2x128xf32>
    %30 = arith.negf %29 : vector<2x128xf32>
    %31 = math.exp %30 : vector<2x128xf32>
    %cst_13 = arith.constant 1.000000e+00 : f32
    %32 = vector.broadcast %cst_13 : f32 to vector<2x128xf32>
    %33 = arith.addf %32, %31 : vector<2x128xf32>
    %34 = arith.divf %32, %33 : vector<2x128xf32>
    %35 = math.tanh %29 : vector<2x128xf32>
    %36 = vector.extract_strided_slice %34 {offsets = [0, 32], sizes = [2, 32], strides = [1, 1]} : vector<2x128xf32> to vector<2x32xf32>
    %37 = arith.mulf %36, %23 : vector<2x32xf32>
    %38 = vector.extract_strided_slice %34 {offsets = [0, 0], sizes = [2, 32], strides = [1, 1]} : vector<2x128xf32> to vector<2x32xf32>
    %39 = vector.extract_strided_slice %35 {offsets = [0, 64], sizes = [2, 32], strides = [1, 1]} : vector<2x128xf32> to vector<2x32xf32>
    %40 = arith.mulf %38, %39 : vector<2x32xf32>
    %41 = arith.addf %37, %40 : vector<2x32xf32>
    %42 = vector.extract_strided_slice %34 {offsets = [0, 96], sizes = [2, 32], strides = [1, 1]} : vector<2x128xf32> to vector<2x32xf32>
    %43 = math.tanh %41 : vector<2x32xf32>
    %44 = arith.mulf %42, %43 : vector<2x32xf32>
    %45 = vector.extract_strided_slice %7 {offsets = [0, 256], sizes = [2, 128], strides = [1, 1]} : vector<2x1024xf32> to vector<2x128xf32>
    %cst_14 = arith.constant dense<0.000000e+00> : vector<2x128xf32>
    %46 = tpu.matmul %44, %1, %cst_14 {dimension_numbers = #tpu.dot_dimension_numbers<[1], [0], [0], [1], [0, 0, 1, 1], [], []>} : vector<2x32xf32>, vector<32x128xf32>, vector<2x128xf32> -> vector<2x128xf32>
    %47 = arith.addf %45, %46 : vector<2x128xf32>
    %48 = arith.negf %47 : vector<2x128xf32>
    %49 = math.exp %48 : vector<2x128xf32>
    %cst_15 = arith.constant 1.000000e+00 : f32
    %50 = vector.broadcast %cst_15 : f32 to vector<2x128xf32>
    %51 = arith.addf %50, %49 : vector<2x128xf32>
    %52 = arith.divf %50, %51 : vector<2x128xf32>
    %53 = math.tanh %47 : vector<2x128xf32>
    %54 = vector.extract_strided_slice %52 {offsets = [0, 32], sizes = [2, 32], strides = [1, 1]} : vector<2x128xf32> to vector<2x32xf32>
    %55 = arith.mulf %54, %41 : vector<2x32xf32>
    %56 = vector.extract_strided_slice %52 {offsets = [0, 0], sizes = [2, 32], strides = [1, 1]} : vector<2x128xf32> to vector<2x32xf32>
    %57 = vector.extract_strided_slice %53 {offsets = [0, 64], sizes = [2, 32], strides = [1, 1]} : vector<2x128xf32> to vector<2x32xf32>
    %58 = arith.mulf %56, %57 : vector<2x32xf32>
    %59 = arith.addf %55, %58 : vector<2x32xf32>
    %60 = vector.extract_strided_slice %52 {offsets = [0, 96], sizes = [2, 32], strides = [1, 1]} : vector<2x128xf32> to vector<2x32xf32>
    %61 = math.tanh %59 : vector<2x32xf32>
    %62 = arith.mulf %60, %61 : vector<2x32xf32>
    %63 = vector.extract_strided_slice %7 {offsets = [0, 384], sizes = [2, 128], strides = [1, 1]} : vector<2x1024xf32> to vector<2x128xf32>
    %cst_16 = arith.constant dense<0.000000e+00> : vector<2x128xf32>
    %64 = tpu.matmul %62, %1, %cst_16 {dimension_numbers = #tpu.dot_dimension_numbers<[1], [0], [0], [1], [0, 0, 1, 1], [], []>} : vector<2x32xf32>, vector<32x128xf32>, vector<2x128xf32> -> vector<2x128xf32>
    %65 = arith.addf %63, %64 : vector<2x128xf32>
    %66 = arith.negf %65 : vector<2x128xf32>
    %67 = math.exp %66 : vector<2x128xf32>
    %cst_17 = arith.constant 1.000000e+00 : f32
    %68 = vector.broadcast %cst_17 : f32 to vector<2x128xf32>
    %69 = arith.addf %68, %67 : vector<2x128xf32>
    %70 = arith.divf %68, %69 : vector<2x128xf32>
    %71 = math.tanh %65 : vector<2x128xf32>
    %72 = vector.extract_strided_slice %70 {offsets = [0, 32], sizes = [2, 32], strides = [1, 1]} : vector<2x128xf32> to vector<2x32xf32>
    %73 = arith.mulf %72, %59 : vector<2x32xf32>
    %74 = vector.extract_strided_slice %70 {offsets = [0, 0], sizes = [2, 32], strides = [1, 1]} : vector<2x128xf32> to vector<2x32xf32>
    %75 = vector.extract_strided_slice %71 {offsets = [0, 64], sizes = [2, 32], strides = [1, 1]} : vector<2x128xf32> to vector<2x32xf32>
    %76 = arith.mulf %74, %75 : vector<2x32xf32>
    %77 = arith.addf %73, %76 : vector<2x32xf32>
    %78 = vector.extract_strided_slice %70 {offsets = [0, 96], sizes = [2, 32], strides = [1, 1]} : vector<2x128xf32> to vector<2x32xf32>
    %79 = math.tanh %77 : vector<2x32xf32>
    %80 = arith.mulf %78, %79 : vector<2x32xf32>
    %81 = vector.extract_strided_slice %7 {offsets = [0, 512], sizes = [2, 128], strides = [1, 1]} : vector<2x1024xf32> to vector<2x128xf32>
    %cst_18 = arith.constant dense<0.000000e+00> : vector<2x128xf32>
    %82 = tpu.matmul %80, %1, %cst_18 {dimension_numbers = #tpu.dot_dimension_numbers<[1], [0], [0], [1], [0, 0, 1, 1], [], []>} : vector<2x32xf32>, vector<32x128xf32>, vector<2x128xf32> -> vector<2x128xf32>
    %83 = arith.addf %81, %82 : vector<2x128xf32>
    %84 = arith.negf %83 : vector<2x128xf32>
    %85 = math.exp %84 : vector<2x128xf32>
    %cst_19 = arith.constant 1.000000e+00 : f32
    %86 = vector.broadcast %cst_19 : f32 to vector<2x128xf32>
    %87 = arith.addf %86, %85 : vector<2x128xf32>
    %88 = arith.divf %86, %87 : vector<2x128xf32>
    %89 = math.tanh %83 : vector<2x128xf32>
    %90 = vector.extract_strided_slice %88 {offsets = [0, 32], sizes = [2, 32], strides = [1, 1]} : vector<2x128xf32> to vector<2x32xf32>
    %91 = arith.mulf %90, %77 : vector<2x32xf32>
    %92 = vector.extract_strided_slice %88 {offsets = [0, 0], sizes = [2, 32], strides = [1, 1]} : vector<2x128xf32> to vector<2x32xf32>
    %93 = vector.extract_strided_slice %89 {offsets = [0, 64], sizes = [2, 32], strides = [1, 1]} : vector<2x128xf32> to vector<2x32xf32>
    %94 = arith.mulf %92, %93 : vector<2x32xf32>
    %95 = arith.addf %91, %94 : vector<2x32xf32>
    %96 = vector.extract_strided_slice %88 {offsets = [0, 96], sizes = [2, 32], strides = [1, 1]} : vector<2x128xf32> to vector<2x32xf32>
    %97 = math.tanh %95 : vector<2x32xf32>
    %98 = arith.mulf %96, %97 : vector<2x32xf32>
    %99 = vector.extract_strided_slice %7 {offsets = [0, 640], sizes = [2, 128], strides = [1, 1]} : vector<2x1024xf32> to vector<2x128xf32>
    %cst_20 = arith.constant dense<0.000000e+00> : vector<2x128xf32>
    %100 = tpu.matmul %98, %1, %cst_20 {dimension_numbers = #tpu.dot_dimension_numbers<[1], [0], [0], [1], [0, 0, 1, 1], [], []>} : vector<2x32xf32>, vector<32x128xf32>, vector<2x128xf32> -> vector<2x128xf32>
    %101 = arith.addf %99, %100 : vector<2x128xf32>
    %102 = arith.negf %101 : vector<2x128xf32>
    %103 = math.exp %102 : vector<2x128xf32>
    %cst_21 = arith.constant 1.000000e+00 : f32
    %104 = vector.broadcast %cst_21 : f32 to vector<2x128xf32>
    %105 = arith.addf %104, %103 : vector<2x128xf32>
    %106 = arith.divf %104, %105 : vector<2x128xf32>
    %107 = math.tanh %101 : vector<2x128xf32>
    %108 = vector.extract_strided_slice %106 {offsets = [0, 32], sizes = [2, 32], strides = [1, 1]} : vector<2x128xf32> to vector<2x32xf32>
    %109 = arith.mulf %108, %95 : vector<2x32xf32>
    %110 = vector.extract_strided_slice %106 {offsets = [0, 0], sizes = [2, 32], strides = [1, 1]} : vector<2x128xf32> to vector<2x32xf32>
    %111 = vector.extract_strided_slice %107 {offsets = [0, 64], sizes = [2, 32], strides = [1, 1]} : vector<2x128xf32> to vector<2x32xf32>
    %112 = arith.mulf %110, %111 : vector<2x32xf32>
    %113 = arith.addf %109, %112 : vector<2x32xf32>
    %114 = vector.extract_strided_slice %106 {offsets = [0, 96], sizes = [2, 32], strides = [1, 1]} : vector<2x128xf32> to vector<2x32xf32>
    %115 = math.tanh %113 : vector<2x32xf32>
    %116 = arith.mulf %114, %115 : vector<2x32xf32>
    %117 = vector.extract_strided_slice %7 {offsets = [0, 768], sizes = [2, 128], strides = [1, 1]} : vector<2x1024xf32> to vector<2x128xf32>
    %cst_22 = arith.constant dense<0.000000e+00> : vector<2x128xf32>
    %118 = tpu.matmul %116, %1, %cst_22 {dimension_numbers = #tpu.dot_dimension_numbers<[1], [0], [0], [1], [0, 0, 1, 1], [], []>} : vector<2x32xf32>, vector<32x128xf32>, vector<2x128xf32> -> vector<2x128xf32>
    %119 = arith.addf %117, %118 : vector<2x128xf32>
    %120 = arith.negf %119 : vector<2x128xf32>
    %121 = math.exp %120 : vector<2x128xf32>
    %cst_23 = arith.constant 1.000000e+00 : f32
    %122 = vector.broadcast %cst_23 : f32 to vector<2x128xf32>
    %123 = arith.addf %122, %121 : vector<2x128xf32>
    %124 = arith.divf %122, %123 : vector<2x128xf32>
    %125 = math.tanh %119 : vector<2x128xf32>
    %126 = vector.extract_strided_slice %124 {offsets = [0, 32], sizes = [2, 32], strides = [1, 1]} : vector<2x128xf32> to vector<2x32xf32>
    %127 = arith.mulf %126, %113 : vector<2x32xf32>
    %128 = vector.extract_strided_slice %124 {offsets = [0, 0], sizes = [2, 32], strides = [1, 1]} : vector<2x128xf32> to vector<2x32xf32>
    %129 = vector.extract_strided_slice %125 {offsets = [0, 64], sizes = [2, 32], strides = [1, 1]} : vector<2x128xf32> to vector<2x32xf32>
    %130 = arith.mulf %128, %129 : vector<2x32xf32>
    %131 = arith.addf %127, %130 : vector<2x32xf32>
    %132 = vector.extract_strided_slice %124 {offsets = [0, 96], sizes = [2, 32], strides = [1, 1]} : vector<2x128xf32> to vector<2x32xf32>
    %133 = math.tanh %131 : vector<2x32xf32>
    %134 = arith.mulf %132, %133 : vector<2x32xf32>
    %135 = vector.extract_strided_slice %7 {offsets = [0, 896], sizes = [2, 128], strides = [1, 1]} : vector<2x1024xf32> to vector<2x128xf32>
    %cst_24 = arith.constant dense<0.000000e+00> : vector<2x128xf32>
    %136 = tpu.matmul %134, %1, %cst_24 {dimension_numbers = #tpu.dot_dimension_numbers<[1], [0], [0], [1], [0, 0, 1, 1], [], []>} : vector<2x32xf32>, vector<32x128xf32>, vector<2x128xf32> -> vector<2x128xf32>
    %137 = arith.addf %135, %136 : vector<2x128xf32>
    %138 = arith.negf %137 : vector<2x128xf32>
    %139 = math.exp %138 : vector<2x128xf32>
    %cst_25 = arith.constant 1.000000e+00 : f32
    %140 = vector.broadcast %cst_25 : f32 to vector<2x128xf32>
    %141 = arith.addf %140, %139 : vector<2x128xf32>
    %142 = arith.divf %140, %141 : vector<2x128xf32>
    %143 = math.tanh %137 : vector<2x128xf32>
    %144 = vector.extract_strided_slice %142 {offsets = [0, 32], sizes = [2, 32], strides = [1, 1]} : vector<2x128xf32> to vector<2x32xf32>
    %145 = arith.mulf %144, %131 : vector<2x32xf32>
    %146 = vector.extract_strided_slice %142 {offsets = [0, 0], sizes = [2, 32], strides = [1, 1]} : vector<2x128xf32> to vector<2x32xf32>
    %147 = vector.extract_strided_slice %143 {offsets = [0, 64], sizes = [2, 32], strides = [1, 1]} : vector<2x128xf32> to vector<2x32xf32>
    %148 = arith.mulf %146, %147 : vector<2x32xf32>
    %149 = arith.addf %145, %148 : vector<2x32xf32>
    %150 = vector.extract_strided_slice %142 {offsets = [0, 96], sizes = [2, 32], strides = [1, 1]} : vector<2x128xf32> to vector<2x32xf32>
    %151 = math.tanh %149 : vector<2x32xf32>
    %152 = arith.mulf %150, %151 : vector<2x32xf32>
    %153 = tpu.concatenate %26, %44, %62, %80, %98, %116, %134, %152 in 1 : vector<2x32xf32>, vector<2x32xf32>, vector<2x32xf32>, vector<2x32xf32>, vector<2x32xf32>, vector<2x32xf32>, vector<2x32xf32>, vector<2x32xf32> -> vector<2x256xf32>
    %cst_26 = arith.constant 0.000000e+00 : f32
    %154 = vector.broadcast %cst_26 : f32 to vector<2x256xf32>
    %155 = arith.maximumf %153, %154 : vector<2x256xf32>
    %c0_27 = arith.constant 0 : index
    %c0_28 = arith.constant 0 : index
    %156 = vector.load %arg6[%c0_27, %c0_28] : memref<256x64xf32, #tpu.memory_space<vmem>>, vector<256x64xf32>
    %cst_29 = arith.constant dense<0.000000e+00> : vector<2x64xf32>
    %157 = tpu.matmul %155, %156, %cst_29 {dimension_numbers = #tpu.dot_dimension_numbers<[1], [0], [0], [1], [0, 0, 1, 1], [], []>} : vector<2x256xf32>, vector<256x64xf32>, vector<2x64xf32> -> vector<2x64xf32>
    %c0_30 = arith.constant 0 : index
    %c0_31 = arith.constant 0 : index
    %158 = vector.load %arg7[%c0_30, %c0_31] : memref<1x64xf32, #tpu.memory_space<vmem>>, vector<1x64xf32>
    %159 = vector.broadcast %158 : vector<1x64xf32> to vector<2x64xf32>
    %160 = arith.addf %157, %159 : vector<2x64xf32>
    %161 = arith.subf %0, %160 : vector<2x64xf32>
    %c0_32 = arith.constant 0 : index
    %c0_33 = arith.constant 0 : index
    %162 = vector.load %arg8[%c0_32, %c0_33] : memref<64x256xf32, #tpu.memory_space<vmem>>, vector<64x256xf32>
    %cst_34 = arith.constant dense<0.000000e+00> : vector<2x256xf32>
    %163 = tpu.matmul %161, %162, %cst_34 {dimension_numbers = #tpu.dot_dimension_numbers<[1], [0], [0], [1], [0, 0, 1, 1], [], []>} : vector<2x64xf32>, vector<64x256xf32>, vector<2x256xf32> -> vector<2x256xf32>
    %c0_35 = arith.constant 0 : index
    %c0_36 = arith.constant 0 : index
    %164 = vector.load %arg9[%c0_35, %c0_36] : memref<1x256xf32, #tpu.memory_space<vmem>>, vector<1x256xf32>
    %165 = vector.broadcast %164 : vector<1x256xf32> to vector<2x256xf32>
    %166 = arith.addf %163, %165 : vector<2x256xf32>
    %167 = vector.extract_strided_slice %166 {offsets = [0, 0], sizes = [2, 128], strides = [1, 1]} : vector<2x256xf32> to vector<2x128xf32>
    %cst_37 = arith.constant dense<0.000000e+00> : vector<2x128xf32>
    %168 = tpu.matmul %8, %2, %cst_37 {dimension_numbers = #tpu.dot_dimension_numbers<[1], [0], [0], [1], [0, 0, 1, 1], [], []>} : vector<2x32xf32>, vector<32x128xf32>, vector<2x128xf32> -> vector<2x128xf32>
    %169 = arith.addf %167, %168 : vector<2x128xf32>
    %170 = arith.negf %169 : vector<2x128xf32>
    %171 = math.exp %170 : vector<2x128xf32>
    %cst_38 = arith.constant 1.000000e+00 : f32
    %172 = vector.broadcast %cst_38 : f32 to vector<2x128xf32>
    %173 = arith.addf %172, %171 : vector<2x128xf32>
    %174 = arith.divf %172, %173 : vector<2x128xf32>
    %175 = math.tanh %169 : vector<2x128xf32>
    %176 = vector.extract_strided_slice %174 {offsets = [0, 32], sizes = [2, 32], strides = [1, 1]} : vector<2x128xf32> to vector<2x32xf32>
    %177 = arith.mulf %176, %8 : vector<2x32xf32>
    %178 = vector.extract_strided_slice %174 {offsets = [0, 0], sizes = [2, 32], strides = [1, 1]} : vector<2x128xf32> to vector<2x32xf32>
    %179 = vector.extract_strided_slice %175 {offsets = [0, 64], sizes = [2, 32], strides = [1, 1]} : vector<2x128xf32> to vector<2x32xf32>
    %180 = arith.mulf %178, %179 : vector<2x32xf32>
    %181 = arith.addf %177, %180 : vector<2x32xf32>
    %182 = vector.extract_strided_slice %174 {offsets = [0, 96], sizes = [2, 32], strides = [1, 1]} : vector<2x128xf32> to vector<2x32xf32>
    %183 = math.tanh %181 : vector<2x32xf32>
    %184 = arith.mulf %182, %183 : vector<2x32xf32>
    %185 = vector.extract_strided_slice %166 {offsets = [0, 128], sizes = [2, 128], strides = [1, 1]} : vector<2x256xf32> to vector<2x128xf32>
    %cst_39 = arith.constant dense<0.000000e+00> : vector<2x128xf32>
    %186 = tpu.matmul %184, %2, %cst_39 {dimension_numbers = #tpu.dot_dimension_numbers<[1], [0], [0], [1], [0, 0, 1, 1], [], []>} : vector<2x32xf32>, vector<32x128xf32>, vector<2x128xf32> -> vector<2x128xf32>
    %187 = arith.addf %185, %186 : vector<2x128xf32>
    %188 = arith.negf %187 : vector<2x128xf32>
    %189 = math.exp %188 : vector<2x128xf32>
    %cst_40 = arith.constant 1.000000e+00 : f32
    %190 = vector.broadcast %cst_40 : f32 to vector<2x128xf32>
    %191 = arith.addf %190, %189 : vector<2x128xf32>
    %192 = arith.divf %190, %191 : vector<2x128xf32>
    %193 = math.tanh %187 : vector<2x128xf32>
    %194 = vector.extract_strided_slice %192 {offsets = [0, 32], sizes = [2, 32], strides = [1, 1]} : vector<2x128xf32> to vector<2x32xf32>
    %195 = arith.mulf %194, %181 : vector<2x32xf32>
    %196 = vector.extract_strided_slice %192 {offsets = [0, 0], sizes = [2, 32], strides = [1, 1]} : vector<2x128xf32> to vector<2x32xf32>
    %197 = vector.extract_strided_slice %193 {offsets = [0, 64], sizes = [2, 32], strides = [1, 1]} : vector<2x128xf32> to vector<2x32xf32>
    %198 = arith.mulf %196, %197 : vector<2x32xf32>
    %199 = arith.addf %195, %198 : vector<2x32xf32>
    %200 = vector.extract_strided_slice %192 {offsets = [0, 96], sizes = [2, 32], strides = [1, 1]} : vector<2x128xf32> to vector<2x32xf32>
    %201 = math.tanh %199 : vector<2x32xf32>
    %202 = arith.mulf %200, %201 : vector<2x32xf32>
    %203 = tpu.concatenate %184, %202 in 1 : vector<2x32xf32>, vector<2x32xf32> -> vector<2x64xf32>
    %cst_41 = arith.constant 0.000000e+00 : f32
    %204 = vector.broadcast %cst_41 : f32 to vector<2x64xf32>
    %205 = arith.maximumf %203, %204 : vector<2x64xf32>
    %c0_42 = arith.constant 0 : index
    %c0_43 = arith.constant 0 : index
    %206 = vector.load %arg11[%c0_42, %c0_43] : memref<64x8xf32, #tpu.memory_space<vmem>>, vector<64x8xf32>
    %cst_44 = arith.constant dense<0.000000e+00> : vector<2x8xf32>
    %207 = tpu.matmul %205, %206, %cst_44 {dimension_numbers = #tpu.dot_dimension_numbers<[1], [0], [0], [1], [0, 0, 1, 1], [], []>} : vector<2x64xf32>, vector<64x8xf32>, vector<2x8xf32> -> vector<2x8xf32>
    %c0_45 = arith.constant 0 : index
    %c0_46 = arith.constant 0 : index
    %208 = vector.load %arg12[%c0_45, %c0_46] : memref<1x8xf32, #tpu.memory_space<vmem>>, vector<1x8xf32>
    %209 = vector.broadcast %208 : vector<1x8xf32> to vector<2x8xf32>
    %210 = arith.addf %207, %209 : vector<2x8xf32>
    %c0_47 = arith.constant 0 : index
    %c0_48 = arith.constant 0 : index
    %211 = vector.load %arg4[%c0_47, %c0_48] : memref<8x256xf32, #tpu.memory_space<vmem>>, vector<8x256xf32>
    %cst_49 = arith.constant dense<0.000000e+00> : vector<2x256xf32>
    %212 = tpu.matmul %210, %211, %cst_49 {dimension_numbers = #tpu.dot_dimension_numbers<[1], [0], [0], [1], [0, 0, 1, 1], [], []>} : vector<2x8xf32>, vector<8x256xf32>, vector<2x256xf32> -> vector<2x256xf32>
    %213 = vector.extract_strided_slice %7 {offsets = [0, 0], sizes = [2, 128], strides = [1, 1]} : vector<2x1024xf32> to vector<2x128xf32>
    %214 = vector.extract_strided_slice %212 {offsets = [0, 0], sizes = [2, 128], strides = [1, 1]} : vector<2x256xf32> to vector<2x128xf32>
    %215 = arith.addf %213, %214 : vector<2x128xf32>
    %cst_50 = arith.constant dense<0.000000e+00> : vector<2x128xf32>
    %216 = tpu.matmul %8, %1, %cst_50 {dimension_numbers = #tpu.dot_dimension_numbers<[1], [0], [0], [1], [0, 0, 1, 1], [], []>} : vector<2x32xf32>, vector<32x128xf32>, vector<2x128xf32> -> vector<2x128xf32>
    %217 = arith.addf %215, %216 : vector<2x128xf32>
    %218 = arith.negf %217 : vector<2x128xf32>
    %219 = math.exp %218 : vector<2x128xf32>
    %cst_51 = arith.constant 1.000000e+00 : f32
    %220 = vector.broadcast %cst_51 : f32 to vector<2x128xf32>
    %221 = arith.addf %220, %219 : vector<2x128xf32>
    %222 = arith.divf %220, %221 : vector<2x128xf32>
    %223 = math.tanh %217 : vector<2x128xf32>
    %224 = vector.extract_strided_slice %222 {offsets = [0, 32], sizes = [2, 32], strides = [1, 1]} : vector<2x128xf32> to vector<2x32xf32>
    %225 = arith.mulf %224, %8 : vector<2x32xf32>
    %226 = vector.extract_strided_slice %222 {offsets = [0, 0], sizes = [2, 32], strides = [1, 1]} : vector<2x128xf32> to vector<2x32xf32>
    %227 = vector.extract_strided_slice %223 {offsets = [0, 64], sizes = [2, 32], strides = [1, 1]} : vector<2x128xf32> to vector<2x32xf32>
    %228 = arith.mulf %226, %227 : vector<2x32xf32>
    %229 = arith.addf %225, %228 : vector<2x32xf32>
    %230 = vector.extract_strided_slice %222 {offsets = [0, 96], sizes = [2, 32], strides = [1, 1]} : vector<2x128xf32> to vector<2x32xf32>
    %231 = math.tanh %229 : vector<2x32xf32>
    %232 = arith.mulf %230, %231 : vector<2x32xf32>
    %233 = vector.extract_strided_slice %7 {offsets = [0, 128], sizes = [2, 128], strides = [1, 1]} : vector<2x1024xf32> to vector<2x128xf32>
    %234 = vector.extract_strided_slice %212 {offsets = [0, 0], sizes = [2, 128], strides = [1, 1]} : vector<2x256xf32> to vector<2x128xf32>
    %235 = arith.addf %233, %234 : vector<2x128xf32>
    %cst_52 = arith.constant dense<0.000000e+00> : vector<2x128xf32>
    %236 = tpu.matmul %232, %1, %cst_52 {dimension_numbers = #tpu.dot_dimension_numbers<[1], [0], [0], [1], [0, 0, 1, 1], [], []>} : vector<2x32xf32>, vector<32x128xf32>, vector<2x128xf32> -> vector<2x128xf32>
    %237 = arith.addf %235, %236 : vector<2x128xf32>
    %238 = arith.negf %237 : vector<2x128xf32>
    %239 = math.exp %238 : vector<2x128xf32>
    %cst_53 = arith.constant 1.000000e+00 : f32
    %240 = vector.broadcast %cst_53 : f32 to vector<2x128xf32>
    %241 = arith.addf %240, %239 : vector<2x128xf32>
    %242 = arith.divf %240, %241 : vector<2x128xf32>
    %243 = math.tanh %237 : vector<2x128xf32>
    %244 = vector.extract_strided_slice %242 {offsets = [0, 32], sizes = [2, 32], strides = [1, 1]} : vector<2x128xf32> to vector<2x32xf32>
    %245 = arith.mulf %244, %229 : vector<2x32xf32>
    %246 = vector.extract_strided_slice %242 {offsets = [0, 0], sizes = [2, 32], strides = [1, 1]} : vector<2x128xf32> to vector<2x32xf32>
    %247 = vector.extract_strided_slice %243 {offsets = [0, 64], sizes = [2, 32], strides = [1, 1]} : vector<2x128xf32> to vector<2x32xf32>
    %248 = arith.mulf %246, %247 : vector<2x32xf32>
    %249 = arith.addf %245, %248 : vector<2x32xf32>
    %250 = vector.extract_strided_slice %242 {offsets = [0, 96], sizes = [2, 32], strides = [1, 1]} : vector<2x128xf32> to vector<2x32xf32>
    %251 = math.tanh %249 : vector<2x32xf32>
    %252 = arith.mulf %250, %251 : vector<2x32xf32>
    %253 = vector.extract_strided_slice %7 {offsets = [0, 256], sizes = [2, 128], strides = [1, 1]} : vector<2x1024xf32> to vector<2x128xf32>
    %254 = vector.extract_strided_slice %212 {offsets = [0, 0], sizes = [2, 128], strides = [1, 1]} : vector<2x256xf32> to vector<2x128xf32>
    %255 = arith.addf %253, %254 : vector<2x128xf32>
    %cst_54 = arith.constant dense<0.000000e+00> : vector<2x128xf32>
    %256 = tpu.matmul %252, %1, %cst_54 {dimension_numbers = #tpu.dot_dimension_numbers<[1], [0], [0], [1], [0, 0, 1, 1], [], []>} : vector<2x32xf32>, vector<32x128xf32>, vector<2x128xf32> -> vector<2x128xf32>
    %257 = arith.addf %255, %256 : vector<2x128xf32>
    %258 = arith.negf %257 : vector<2x128xf32>
    %259 = math.exp %258 : vector<2x128xf32>
    %cst_55 = arith.constant 1.000000e+00 : f32
    %260 = vector.broadcast %cst_55 : f32 to vector<2x128xf32>
    %261 = arith.addf %260, %259 : vector<2x128xf32>
    %262 = arith.divf %260, %261 : vector<2x128xf32>
    %263 = math.tanh %257 : vector<2x128xf32>
    %264 = vector.extract_strided_slice %262 {offsets = [0, 32], sizes = [2, 32], strides = [1, 1]} : vector<2x128xf32> to vector<2x32xf32>
    %265 = arith.mulf %264, %249 : vector<2x32xf32>
    %266 = vector.extract_strided_slice %262 {offsets = [0, 0], sizes = [2, 32], strides = [1, 1]} : vector<2x128xf32> to vector<2x32xf32>
    %267 = vector.extract_strided_slice %263 {offsets = [0, 64], sizes = [2, 32], strides = [1, 1]} : vector<2x128xf32> to vector<2x32xf32>
    %268 = arith.mulf %266, %267 : vector<2x32xf32>
    %269 = arith.addf %265, %268 : vector<2x32xf32>
    %270 = vector.extract_strided_slice %262 {offsets = [0, 96], sizes = [2, 32], strides = [1, 1]} : vector<2x128xf32> to vector<2x32xf32>
    %271 = math.tanh %269 : vector<2x32xf32>
    %272 = arith.mulf %270, %271 : vector<2x32xf32>
    %273 = vector.extract_strided_slice %7 {offsets = [0, 384], sizes = [2, 128], strides = [1, 1]} : vector<2x1024xf32> to vector<2x128xf32>
    %274 = vector.extract_strided_slice %212 {offsets = [0, 0], sizes = [2, 128], strides = [1, 1]} : vector<2x256xf32> to vector<2x128xf32>
    %275 = arith.addf %273, %274 : vector<2x128xf32>
    %cst_56 = arith.constant dense<0.000000e+00> : vector<2x128xf32>
    %276 = tpu.matmul %272, %1, %cst_56 {dimension_numbers = #tpu.dot_dimension_numbers<[1], [0], [0], [1], [0, 0, 1, 1], [], []>} : vector<2x32xf32>, vector<32x128xf32>, vector<2x128xf32> -> vector<2x128xf32>
    %277 = arith.addf %275, %276 : vector<2x128xf32>
    %278 = arith.negf %277 : vector<2x128xf32>
    %279 = math.exp %278 : vector<2x128xf32>
    %cst_57 = arith.constant 1.000000e+00 : f32
    %280 = vector.broadcast %cst_57 : f32 to vector<2x128xf32>
    %281 = arith.addf %280, %279 : vector<2x128xf32>
    %282 = arith.divf %280, %281 : vector<2x128xf32>
    %283 = math.tanh %277 : vector<2x128xf32>
    %284 = vector.extract_strided_slice %282 {offsets = [0, 32], sizes = [2, 32], strides = [1, 1]} : vector<2x128xf32> to vector<2x32xf32>
    %285 = arith.mulf %284, %269 : vector<2x32xf32>
    %286 = vector.extract_strided_slice %282 {offsets = [0, 0], sizes = [2, 32], strides = [1, 1]} : vector<2x128xf32> to vector<2x32xf32>
    %287 = vector.extract_strided_slice %283 {offsets = [0, 64], sizes = [2, 32], strides = [1, 1]} : vector<2x128xf32> to vector<2x32xf32>
    %288 = arith.mulf %286, %287 : vector<2x32xf32>
    %289 = arith.addf %285, %288 : vector<2x32xf32>
    %290 = vector.extract_strided_slice %282 {offsets = [0, 96], sizes = [2, 32], strides = [1, 1]} : vector<2x128xf32> to vector<2x32xf32>
    %291 = math.tanh %289 : vector<2x32xf32>
    %292 = arith.mulf %290, %291 : vector<2x32xf32>
    %293 = vector.extract_strided_slice %7 {offsets = [0, 512], sizes = [2, 128], strides = [1, 1]} : vector<2x1024xf32> to vector<2x128xf32>
    %294 = vector.extract_strided_slice %212 {offsets = [0, 128], sizes = [2, 128], strides = [1, 1]} : vector<2x256xf32> to vector<2x128xf32>
    %295 = arith.addf %293, %294 : vector<2x128xf32>
    %cst_58 = arith.constant dense<0.000000e+00> : vector<2x128xf32>
    %296 = tpu.matmul %292, %1, %cst_58 {dimension_numbers = #tpu.dot_dimension_numbers<[1], [0], [0], [1], [0, 0, 1, 1], [], []>} : vector<2x32xf32>, vector<32x128xf32>, vector<2x128xf32> -> vector<2x128xf32>
    %297 = arith.addf %295, %296 : vector<2x128xf32>
    %298 = arith.negf %297 : vector<2x128xf32>
    %299 = math.exp %298 : vector<2x128xf32>
    %cst_59 = arith.constant 1.000000e+00 : f32
    %300 = vector.broadcast %cst_59 : f32 to vector<2x128xf32>
    %301 = arith.addf %300, %299 : vector<2x128xf32>
    %302 = arith.divf %300, %301 : vector<2x128xf32>
    %303 = math.tanh %297 : vector<2x128xf32>
    %304 = vector.extract_strided_slice %302 {offsets = [0, 32], sizes = [2, 32], strides = [1, 1]} : vector<2x128xf32> to vector<2x32xf32>
    %305 = arith.mulf %304, %289 : vector<2x32xf32>
    %306 = vector.extract_strided_slice %302 {offsets = [0, 0], sizes = [2, 32], strides = [1, 1]} : vector<2x128xf32> to vector<2x32xf32>
    %307 = vector.extract_strided_slice %303 {offsets = [0, 64], sizes = [2, 32], strides = [1, 1]} : vector<2x128xf32> to vector<2x32xf32>
    %308 = arith.mulf %306, %307 : vector<2x32xf32>
    %309 = arith.addf %305, %308 : vector<2x32xf32>
    %310 = vector.extract_strided_slice %302 {offsets = [0, 96], sizes = [2, 32], strides = [1, 1]} : vector<2x128xf32> to vector<2x32xf32>
    %311 = math.tanh %309 : vector<2x32xf32>
    %312 = arith.mulf %310, %311 : vector<2x32xf32>
    %313 = vector.extract_strided_slice %7 {offsets = [0, 640], sizes = [2, 128], strides = [1, 1]} : vector<2x1024xf32> to vector<2x128xf32>
    %314 = vector.extract_strided_slice %212 {offsets = [0, 128], sizes = [2, 128], strides = [1, 1]} : vector<2x256xf32> to vector<2x128xf32>
    %315 = arith.addf %313, %314 : vector<2x128xf32>
    %cst_60 = arith.constant dense<0.000000e+00> : vector<2x128xf32>
    %316 = tpu.matmul %312, %1, %cst_60 {dimension_numbers = #tpu.dot_dimension_numbers<[1], [0], [0], [1], [0, 0, 1, 1], [], []>} : vector<2x32xf32>, vector<32x128xf32>, vector<2x128xf32> -> vector<2x128xf32>
    %317 = arith.addf %315, %316 : vector<2x128xf32>
    %318 = arith.negf %317 : vector<2x128xf32>
    %319 = math.exp %318 : vector<2x128xf32>
    %cst_61 = arith.constant 1.000000e+00 : f32
    %320 = vector.broadcast %cst_61 : f32 to vector<2x128xf32>
    %321 = arith.addf %320, %319 : vector<2x128xf32>
    %322 = arith.divf %320, %321 : vector<2x128xf32>
    %323 = math.tanh %317 : vector<2x128xf32>
    %324 = vector.extract_strided_slice %322 {offsets = [0, 32], sizes = [2, 32], strides = [1, 1]} : vector<2x128xf32> to vector<2x32xf32>
    %325 = arith.mulf %324, %309 : vector<2x32xf32>
    %326 = vector.extract_strided_slice %322 {offsets = [0, 0], sizes = [2, 32], strides = [1, 1]} : vector<2x128xf32> to vector<2x32xf32>
    %327 = vector.extract_strided_slice %323 {offsets = [0, 64], sizes = [2, 32], strides = [1, 1]} : vector<2x128xf32> to vector<2x32xf32>
    %328 = arith.mulf %326, %327 : vector<2x32xf32>
    %329 = arith.addf %325, %328 : vector<2x32xf32>
    %330 = vector.extract_strided_slice %322 {offsets = [0, 96], sizes = [2, 32], strides = [1, 1]} : vector<2x128xf32> to vector<2x32xf32>
    %331 = math.tanh %329 : vector<2x32xf32>
    %332 = arith.mulf %330, %331 : vector<2x32xf32>
    %333 = vector.extract_strided_slice %7 {offsets = [0, 768], sizes = [2, 128], strides = [1, 1]} : vector<2x1024xf32> to vector<2x128xf32>
    %334 = vector.extract_strided_slice %212 {offsets = [0, 128], sizes = [2, 128], strides = [1, 1]} : vector<2x256xf32> to vector<2x128xf32>
    %335 = arith.addf %333, %334 : vector<2x128xf32>
    %cst_62 = arith.constant dense<0.000000e+00> : vector<2x128xf32>
    %336 = tpu.matmul %332, %1, %cst_62 {dimension_numbers = #tpu.dot_dimension_numbers<[1], [0], [0], [1], [0, 0, 1, 1], [], []>} : vector<2x32xf32>, vector<32x128xf32>, vector<2x128xf32> -> vector<2x128xf32>
    %337 = arith.addf %335, %336 : vector<2x128xf32>
    %338 = arith.negf %337 : vector<2x128xf32>
    %339 = math.exp %338 : vector<2x128xf32>
    %cst_63 = arith.constant 1.000000e+00 : f32
    %340 = vector.broadcast %cst_63 : f32 to vector<2x128xf32>
    %341 = arith.addf %340, %339 : vector<2x128xf32>
    %342 = arith.divf %340, %341 : vector<2x128xf32>
    %343 = math.tanh %337 : vector<2x128xf32>
    %344 = vector.extract_strided_slice %342 {offsets = [0, 32], sizes = [2, 32], strides = [1, 1]} : vector<2x128xf32> to vector<2x32xf32>
    %345 = arith.mulf %344, %329 : vector<2x32xf32>
    %346 = vector.extract_strided_slice %342 {offsets = [0, 0], sizes = [2, 32], strides = [1, 1]} : vector<2x128xf32> to vector<2x32xf32>
    %347 = vector.extract_strided_slice %343 {offsets = [0, 64], sizes = [2, 32], strides = [1, 1]} : vector<2x128xf32> to vector<2x32xf32>
    %348 = arith.mulf %346, %347 : vector<2x32xf32>
    %349 = arith.addf %345, %348 : vector<2x32xf32>
    %350 = vector.extract_strided_slice %342 {offsets = [0, 96], sizes = [2, 32], strides = [1, 1]} : vector<2x128xf32> to vector<2x32xf32>
    %351 = math.tanh %349 : vector<2x32xf32>
    %352 = arith.mulf %350, %351 : vector<2x32xf32>
    %353 = vector.extract_strided_slice %7 {offsets = [0, 896], sizes = [2, 128], strides = [1, 1]} : vector<2x1024xf32> to vector<2x128xf32>
    %354 = vector.extract_strided_slice %212 {offsets = [0, 128], sizes = [2, 128], strides = [1, 1]} : vector<2x256xf32> to vector<2x128xf32>
    %355 = arith.addf %353, %354 : vector<2x128xf32>
    %cst_64 = arith.constant dense<0.000000e+00> : vector<2x128xf32>
    %356 = tpu.matmul %352, %1, %cst_64 {dimension_numbers = #tpu.dot_dimension_numbers<[1], [0], [0], [1], [0, 0, 1, 1], [], []>} : vector<2x32xf32>, vector<32x128xf32>, vector<2x128xf32> -> vector<2x128xf32>
    %357 = arith.addf %355, %356 : vector<2x128xf32>
    %358 = arith.negf %357 : vector<2x128xf32>
    %359 = math.exp %358 : vector<2x128xf32>
    %cst_65 = arith.constant 1.000000e+00 : f32
    %360 = vector.broadcast %cst_65 : f32 to vector<2x128xf32>
    %361 = arith.addf %360, %359 : vector<2x128xf32>
    %362 = arith.divf %360, %361 : vector<2x128xf32>
    %363 = math.tanh %357 : vector<2x128xf32>
    %364 = vector.extract_strided_slice %362 {offsets = [0, 32], sizes = [2, 32], strides = [1, 1]} : vector<2x128xf32> to vector<2x32xf32>
    %365 = arith.mulf %364, %349 : vector<2x32xf32>
    %366 = vector.extract_strided_slice %362 {offsets = [0, 0], sizes = [2, 32], strides = [1, 1]} : vector<2x128xf32> to vector<2x32xf32>
    %367 = vector.extract_strided_slice %363 {offsets = [0, 64], sizes = [2, 32], strides = [1, 1]} : vector<2x128xf32> to vector<2x32xf32>
    %368 = arith.mulf %366, %367 : vector<2x32xf32>
    %369 = arith.addf %365, %368 : vector<2x32xf32>
    %370 = vector.extract_strided_slice %362 {offsets = [0, 96], sizes = [2, 32], strides = [1, 1]} : vector<2x128xf32> to vector<2x32xf32>
    %371 = math.tanh %369 : vector<2x32xf32>
    %372 = arith.mulf %370, %371 : vector<2x32xf32>
    %373 = tpu.concatenate %232, %252, %272, %292, %312, %332, %352, %372 in 1 : vector<2x32xf32>, vector<2x32xf32>, vector<2x32xf32>, vector<2x32xf32>, vector<2x32xf32>, vector<2x32xf32>, vector<2x32xf32>, vector<2x32xf32> -> vector<2x256xf32>
    %cst_66 = arith.constant 0.000000e+00 : f32
    %374 = vector.broadcast %cst_66 : f32 to vector<2x256xf32>
    %375 = arith.maximumf %373, %374 : vector<2x256xf32>
    %c0_67 = arith.constant 0 : index
    %c0_68 = arith.constant 0 : index
    %376 = vector.load %arg6[%c0_67, %c0_68] : memref<256x64xf32, #tpu.memory_space<vmem>>, vector<256x64xf32>
    %cst_69 = arith.constant dense<0.000000e+00> : vector<2x64xf32>
    %377 = tpu.matmul %375, %376, %cst_69 {dimension_numbers = #tpu.dot_dimension_numbers<[1], [0], [0], [1], [0, 0, 1, 1], [], []>} : vector<2x256xf32>, vector<256x64xf32>, vector<2x64xf32> -> vector<2x64xf32>
    %c0_70 = arith.constant 0 : index
    %c0_71 = arith.constant 0 : index
    %378 = vector.load %arg7[%c0_70, %c0_71] : memref<1x64xf32, #tpu.memory_space<vmem>>, vector<1x64xf32>
    %379 = vector.broadcast %378 : vector<1x64xf32> to vector<2x64xf32>
    %380 = arith.addf %377, %379 : vector<2x64xf32>
    %381 = arith.subf %0, %380 : vector<2x64xf32>
    %c0_72 = arith.constant 0 : index
    %c0_73 = arith.constant 0 : index
    %382 = vector.load %arg8[%c0_72, %c0_73] : memref<64x256xf32, #tpu.memory_space<vmem>>, vector<64x256xf32>
    %cst_74 = arith.constant dense<0.000000e+00> : vector<2x256xf32>
    %383 = tpu.matmul %381, %382, %cst_74 {dimension_numbers = #tpu.dot_dimension_numbers<[1], [0], [0], [1], [0, 0, 1, 1], [], []>} : vector<2x64xf32>, vector<64x256xf32>, vector<2x256xf32> -> vector<2x256xf32>
    %c0_75 = arith.constant 0 : index
    %c0_76 = arith.constant 0 : index
    %384 = vector.load %arg9[%c0_75, %c0_76] : memref<1x256xf32, #tpu.memory_space<vmem>>, vector<1x256xf32>
    %385 = vector.broadcast %384 : vector<1x256xf32> to vector<2x256xf32>
    %386 = arith.addf %383, %385 : vector<2x256xf32>
    %387 = vector.extract_strided_slice %386 {offsets = [0, 0], sizes = [2, 128], strides = [1, 1]} : vector<2x256xf32> to vector<2x128xf32>
    %cst_77 = arith.constant dense<0.000000e+00> : vector<2x128xf32>
    %388 = tpu.matmul %8, %2, %cst_77 {dimension_numbers = #tpu.dot_dimension_numbers<[1], [0], [0], [1], [0, 0, 1, 1], [], []>} : vector<2x32xf32>, vector<32x128xf32>, vector<2x128xf32> -> vector<2x128xf32>
    %389 = arith.addf %387, %388 : vector<2x128xf32>
    %390 = arith.negf %389 : vector<2x128xf32>
    %391 = math.exp %390 : vector<2x128xf32>
    %cst_78 = arith.constant 1.000000e+00 : f32
    %392 = vector.broadcast %cst_78 : f32 to vector<2x128xf32>
    %393 = arith.addf %392, %391 : vector<2x128xf32>
    %394 = arith.divf %392, %393 : vector<2x128xf32>
    %395 = math.tanh %389 : vector<2x128xf32>
    %396 = vector.extract_strided_slice %394 {offsets = [0, 32], sizes = [2, 32], strides = [1, 1]} : vector<2x128xf32> to vector<2x32xf32>
    %397 = arith.mulf %396, %8 : vector<2x32xf32>
    %398 = vector.extract_strided_slice %394 {offsets = [0, 0], sizes = [2, 32], strides = [1, 1]} : vector<2x128xf32> to vector<2x32xf32>
    %399 = vector.extract_strided_slice %395 {offsets = [0, 64], sizes = [2, 32], strides = [1, 1]} : vector<2x128xf32> to vector<2x32xf32>
    %400 = arith.mulf %398, %399 : vector<2x32xf32>
    %401 = arith.addf %397, %400 : vector<2x32xf32>
    %402 = vector.extract_strided_slice %394 {offsets = [0, 96], sizes = [2, 32], strides = [1, 1]} : vector<2x128xf32> to vector<2x32xf32>
    %403 = math.tanh %401 : vector<2x32xf32>
    %404 = arith.mulf %402, %403 : vector<2x32xf32>
    %405 = vector.extract_strided_slice %386 {offsets = [0, 128], sizes = [2, 128], strides = [1, 1]} : vector<2x256xf32> to vector<2x128xf32>
    %cst_79 = arith.constant dense<0.000000e+00> : vector<2x128xf32>
    %406 = tpu.matmul %404, %2, %cst_79 {dimension_numbers = #tpu.dot_dimension_numbers<[1], [0], [0], [1], [0, 0, 1, 1], [], []>} : vector<2x32xf32>, vector<32x128xf32>, vector<2x128xf32> -> vector<2x128xf32>
    %407 = arith.addf %405, %406 : vector<2x128xf32>
    %408 = arith.negf %407 : vector<2x128xf32>
    %409 = math.exp %408 : vector<2x128xf32>
    %cst_80 = arith.constant 1.000000e+00 : f32
    %410 = vector.broadcast %cst_80 : f32 to vector<2x128xf32>
    %411 = arith.addf %410, %409 : vector<2x128xf32>
    %412 = arith.divf %410, %411 : vector<2x128xf32>
    %413 = math.tanh %407 : vector<2x128xf32>
    %414 = vector.extract_strided_slice %412 {offsets = [0, 32], sizes = [2, 32], strides = [1, 1]} : vector<2x128xf32> to vector<2x32xf32>
    %415 = arith.mulf %414, %401 : vector<2x32xf32>
    %416 = vector.extract_strided_slice %412 {offsets = [0, 0], sizes = [2, 32], strides = [1, 1]} : vector<2x128xf32> to vector<2x32xf32>
    %417 = vector.extract_strided_slice %413 {offsets = [0, 64], sizes = [2, 32], strides = [1, 1]} : vector<2x128xf32> to vector<2x32xf32>
    %418 = arith.mulf %416, %417 : vector<2x32xf32>
    %419 = arith.addf %415, %418 : vector<2x32xf32>
    %420 = vector.extract_strided_slice %412 {offsets = [0, 96], sizes = [2, 32], strides = [1, 1]} : vector<2x128xf32> to vector<2x32xf32>
    %421 = math.tanh %419 : vector<2x32xf32>
    %422 = arith.mulf %420, %421 : vector<2x32xf32>
    %423 = tpu.concatenate %404, %422 in 1 : vector<2x32xf32>, vector<2x32xf32> -> vector<2x64xf32>
    %cst_81 = arith.constant 0.000000e+00 : f32
    %424 = vector.broadcast %cst_81 : f32 to vector<2x64xf32>
    %425 = arith.maximumf %423, %424 : vector<2x64xf32>
    %c0_82 = arith.constant 0 : index
    %c0_83 = arith.constant 0 : index
    %426 = vector.load %arg11[%c0_82, %c0_83] : memref<64x8xf32, #tpu.memory_space<vmem>>, vector<64x8xf32>
    %cst_84 = arith.constant dense<0.000000e+00> : vector<2x8xf32>
    %427 = tpu.matmul %425, %426, %cst_84 {dimension_numbers = #tpu.dot_dimension_numbers<[1], [0], [0], [1], [0, 0, 1, 1], [], []>} : vector<2x64xf32>, vector<64x8xf32>, vector<2x8xf32> -> vector<2x8xf32>
    %c0_85 = arith.constant 0 : index
    %c0_86 = arith.constant 0 : index
    %428 = vector.load %arg12[%c0_85, %c0_86] : memref<1x8xf32, #tpu.memory_space<vmem>>, vector<1x8xf32>
    %429 = vector.broadcast %428 : vector<1x8xf32> to vector<2x8xf32>
    %430 = arith.addf %427, %429 : vector<2x8xf32>
    %c0_87 = arith.constant 0 : index
    %c0_88 = arith.constant 0 : index
    %431 = vector.load %arg4[%c0_87, %c0_88] : memref<8x256xf32, #tpu.memory_space<vmem>>, vector<8x256xf32>
    %cst_89 = arith.constant dense<0.000000e+00> : vector<2x256xf32>
    %432 = tpu.matmul %430, %431, %cst_89 {dimension_numbers = #tpu.dot_dimension_numbers<[1], [0], [0], [1], [0, 0, 1, 1], [], []>} : vector<2x8xf32>, vector<8x256xf32>, vector<2x256xf32> -> vector<2x256xf32>
    %433 = vector.extract_strided_slice %7 {offsets = [0, 0], sizes = [2, 128], strides = [1, 1]} : vector<2x1024xf32> to vector<2x128xf32>
    %434 = vector.extract_strided_slice %432 {offsets = [0, 0], sizes = [2, 128], strides = [1, 1]} : vector<2x256xf32> to vector<2x128xf32>
    %435 = arith.addf %433, %434 : vector<2x128xf32>
    %cst_90 = arith.constant dense<0.000000e+00> : vector<2x128xf32>
    %436 = tpu.matmul %8, %1, %cst_90 {dimension_numbers = #tpu.dot_dimension_numbers<[1], [0], [0], [1], [0, 0, 1, 1], [], []>} : vector<2x32xf32>, vector<32x128xf32>, vector<2x128xf32> -> vector<2x128xf32>
    %437 = arith.addf %435, %436 : vector<2x128xf32>
    %438 = arith.negf %437 : vector<2x128xf32>
    %439 = math.exp %438 : vector<2x128xf32>
    %cst_91 = arith.constant 1.000000e+00 : f32
    %440 = vector.broadcast %cst_91 : f32 to vector<2x128xf32>
    %441 = arith.addf %440, %439 : vector<2x128xf32>
    %442 = arith.divf %440, %441 : vector<2x128xf32>
    %443 = math.tanh %437 : vector<2x128xf32>
    %444 = vector.extract_strided_slice %442 {offsets = [0, 32], sizes = [2, 32], strides = [1, 1]} : vector<2x128xf32> to vector<2x32xf32>
    %445 = arith.mulf %444, %8 : vector<2x32xf32>
    %446 = vector.extract_strided_slice %442 {offsets = [0, 0], sizes = [2, 32], strides = [1, 1]} : vector<2x128xf32> to vector<2x32xf32>
    %447 = vector.extract_strided_slice %443 {offsets = [0, 64], sizes = [2, 32], strides = [1, 1]} : vector<2x128xf32> to vector<2x32xf32>
    %448 = arith.mulf %446, %447 : vector<2x32xf32>
    %449 = arith.addf %445, %448 : vector<2x32xf32>
    %450 = vector.extract_strided_slice %442 {offsets = [0, 96], sizes = [2, 32], strides = [1, 1]} : vector<2x128xf32> to vector<2x32xf32>
    %451 = math.tanh %449 : vector<2x32xf32>
    %452 = arith.mulf %450, %451 : vector<2x32xf32>
    %453 = vector.extract_strided_slice %7 {offsets = [0, 128], sizes = [2, 128], strides = [1, 1]} : vector<2x1024xf32> to vector<2x128xf32>
    %454 = vector.extract_strided_slice %432 {offsets = [0, 0], sizes = [2, 128], strides = [1, 1]} : vector<2x256xf32> to vector<2x128xf32>
    %455 = arith.addf %453, %454 : vector<2x128xf32>
    %cst_92 = arith.constant dense<0.000000e+00> : vector<2x128xf32>
    %456 = tpu.matmul %452, %1, %cst_92 {dimension_numbers = #tpu.dot_dimension_numbers<[1], [0], [0], [1], [0, 0, 1, 1], [], []>} : vector<2x32xf32>, vector<32x128xf32>, vector<2x128xf32> -> vector<2x128xf32>
    %457 = arith.addf %455, %456 : vector<2x128xf32>
    %458 = arith.negf %457 : vector<2x128xf32>
    %459 = math.exp %458 : vector<2x128xf32>
    %cst_93 = arith.constant 1.000000e+00 : f32
    %460 = vector.broadcast %cst_93 : f32 to vector<2x128xf32>
    %461 = arith.addf %460, %459 : vector<2x128xf32>
    %462 = arith.divf %460, %461 : vector<2x128xf32>
    %463 = math.tanh %457 : vector<2x128xf32>
    %464 = vector.extract_strided_slice %462 {offsets = [0, 32], sizes = [2, 32], strides = [1, 1]} : vector<2x128xf32> to vector<2x32xf32>
    %465 = arith.mulf %464, %449 : vector<2x32xf32>
    %466 = vector.extract_strided_slice %462 {offsets = [0, 0], sizes = [2, 32], strides = [1, 1]} : vector<2x128xf32> to vector<2x32xf32>
    %467 = vector.extract_strided_slice %463 {offsets = [0, 64], sizes = [2, 32], strides = [1, 1]} : vector<2x128xf32> to vector<2x32xf32>
    %468 = arith.mulf %466, %467 : vector<2x32xf32>
    %469 = arith.addf %465, %468 : vector<2x32xf32>
    %470 = vector.extract_strided_slice %462 {offsets = [0, 96], sizes = [2, 32], strides = [1, 1]} : vector<2x128xf32> to vector<2x32xf32>
    %471 = math.tanh %469 : vector<2x32xf32>
    %472 = arith.mulf %470, %471 : vector<2x32xf32>
    %473 = vector.extract_strided_slice %7 {offsets = [0, 256], sizes = [2, 128], strides = [1, 1]} : vector<2x1024xf32> to vector<2x128xf32>
    %474 = vector.extract_strided_slice %432 {offsets = [0, 0], sizes = [2, 128], strides = [1, 1]} : vector<2x256xf32> to vector<2x128xf32>
    %475 = arith.addf %473, %474 : vector<2x128xf32>
    %cst_94 = arith.constant dense<0.000000e+00> : vector<2x128xf32>
    %476 = tpu.matmul %472, %1, %cst_94 {dimension_numbers = #tpu.dot_dimension_numbers<[1], [0], [0], [1], [0, 0, 1, 1], [], []>} : vector<2x32xf32>, vector<32x128xf32>, vector<2x128xf32> -> vector<2x128xf32>
    %477 = arith.addf %475, %476 : vector<2x128xf32>
    %478 = arith.negf %477 : vector<2x128xf32>
    %479 = math.exp %478 : vector<2x128xf32>
    %cst_95 = arith.constant 1.000000e+00 : f32
    %480 = vector.broadcast %cst_95 : f32 to vector<2x128xf32>
    %481 = arith.addf %480, %479 : vector<2x128xf32>
    %482 = arith.divf %480, %481 : vector<2x128xf32>
    %483 = math.tanh %477 : vector<2x128xf32>
    %484 = vector.extract_strided_slice %482 {offsets = [0, 32], sizes = [2, 32], strides = [1, 1]} : vector<2x128xf32> to vector<2x32xf32>
    %485 = arith.mulf %484, %469 : vector<2x32xf32>
    %486 = vector.extract_strided_slice %482 {offsets = [0, 0], sizes = [2, 32], strides = [1, 1]} : vector<2x128xf32> to vector<2x32xf32>
    %487 = vector.extract_strided_slice %483 {offsets = [0, 64], sizes = [2, 32], strides = [1, 1]} : vector<2x128xf32> to vector<2x32xf32>
    %488 = arith.mulf %486, %487 : vector<2x32xf32>
    %489 = arith.addf %485, %488 : vector<2x32xf32>
    %490 = vector.extract_strided_slice %482 {offsets = [0, 96], sizes = [2, 32], strides = [1, 1]} : vector<2x128xf32> to vector<2x32xf32>
    %491 = math.tanh %489 : vector<2x32xf32>
    %492 = arith.mulf %490, %491 : vector<2x32xf32>
    %493 = vector.extract_strided_slice %7 {offsets = [0, 384], sizes = [2, 128], strides = [1, 1]} : vector<2x1024xf32> to vector<2x128xf32>
    %494 = vector.extract_strided_slice %432 {offsets = [0, 0], sizes = [2, 128], strides = [1, 1]} : vector<2x256xf32> to vector<2x128xf32>
    %495 = arith.addf %493, %494 : vector<2x128xf32>
    %cst_96 = arith.constant dense<0.000000e+00> : vector<2x128xf32>
    %496 = tpu.matmul %492, %1, %cst_96 {dimension_numbers = #tpu.dot_dimension_numbers<[1], [0], [0], [1], [0, 0, 1, 1], [], []>} : vector<2x32xf32>, vector<32x128xf32>, vector<2x128xf32> -> vector<2x128xf32>
    %497 = arith.addf %495, %496 : vector<2x128xf32>
    %498 = arith.negf %497 : vector<2x128xf32>
    %499 = math.exp %498 : vector<2x128xf32>
    %cst_97 = arith.constant 1.000000e+00 : f32
    %500 = vector.broadcast %cst_97 : f32 to vector<2x128xf32>
    %501 = arith.addf %500, %499 : vector<2x128xf32>
    %502 = arith.divf %500, %501 : vector<2x128xf32>
    %503 = math.tanh %497 : vector<2x128xf32>
    %504 = vector.extract_strided_slice %502 {offsets = [0, 32], sizes = [2, 32], strides = [1, 1]} : vector<2x128xf32> to vector<2x32xf32>
    %505 = arith.mulf %504, %489 : vector<2x32xf32>
    %506 = vector.extract_strided_slice %502 {offsets = [0, 0], sizes = [2, 32], strides = [1, 1]} : vector<2x128xf32> to vector<2x32xf32>
    %507 = vector.extract_strided_slice %503 {offsets = [0, 64], sizes = [2, 32], strides = [1, 1]} : vector<2x128xf32> to vector<2x32xf32>
    %508 = arith.mulf %506, %507 : vector<2x32xf32>
    %509 = arith.addf %505, %508 : vector<2x32xf32>
    %510 = vector.extract_strided_slice %502 {offsets = [0, 96], sizes = [2, 32], strides = [1, 1]} : vector<2x128xf32> to vector<2x32xf32>
    %511 = math.tanh %509 : vector<2x32xf32>
    %512 = arith.mulf %510, %511 : vector<2x32xf32>
    %513 = vector.extract_strided_slice %7 {offsets = [0, 512], sizes = [2, 128], strides = [1, 1]} : vector<2x1024xf32> to vector<2x128xf32>
    %514 = vector.extract_strided_slice %432 {offsets = [0, 128], sizes = [2, 128], strides = [1, 1]} : vector<2x256xf32> to vector<2x128xf32>
    %515 = arith.addf %513, %514 : vector<2x128xf32>
    %cst_98 = arith.constant dense<0.000000e+00> : vector<2x128xf32>
    %516 = tpu.matmul %512, %1, %cst_98 {dimension_numbers = #tpu.dot_dimension_numbers<[1], [0], [0], [1], [0, 0, 1, 1], [], []>} : vector<2x32xf32>, vector<32x128xf32>, vector<2x128xf32> -> vector<2x128xf32>
    %517 = arith.addf %515, %516 : vector<2x128xf32>
    %518 = arith.negf %517 : vector<2x128xf32>
    %519 = math.exp %518 : vector<2x128xf32>
    %cst_99 = arith.constant 1.000000e+00 : f32
    %520 = vector.broadcast %cst_99 : f32 to vector<2x128xf32>
    %521 = arith.addf %520, %519 : vector<2x128xf32>
    %522 = arith.divf %520, %521 : vector<2x128xf32>
    %523 = math.tanh %517 : vector<2x128xf32>
    %524 = vector.extract_strided_slice %522 {offsets = [0, 32], sizes = [2, 32], strides = [1, 1]} : vector<2x128xf32> to vector<2x32xf32>
    %525 = arith.mulf %524, %509 : vector<2x32xf32>
    %526 = vector.extract_strided_slice %522 {offsets = [0, 0], sizes = [2, 32], strides = [1, 1]} : vector<2x128xf32> to vector<2x32xf32>
    %527 = vector.extract_strided_slice %523 {offsets = [0, 64], sizes = [2, 32], strides = [1, 1]} : vector<2x128xf32> to vector<2x32xf32>
    %528 = arith.mulf %526, %527 : vector<2x32xf32>
    %529 = arith.addf %525, %528 : vector<2x32xf32>
    %530 = vector.extract_strided_slice %522 {offsets = [0, 96], sizes = [2, 32], strides = [1, 1]} : vector<2x128xf32> to vector<2x32xf32>
    %531 = math.tanh %529 : vector<2x32xf32>
    %532 = arith.mulf %530, %531 : vector<2x32xf32>
    %533 = vector.extract_strided_slice %7 {offsets = [0, 640], sizes = [2, 128], strides = [1, 1]} : vector<2x1024xf32> to vector<2x128xf32>
    %534 = vector.extract_strided_slice %432 {offsets = [0, 128], sizes = [2, 128], strides = [1, 1]} : vector<2x256xf32> to vector<2x128xf32>
    %535 = arith.addf %533, %534 : vector<2x128xf32>
    %cst_100 = arith.constant dense<0.000000e+00> : vector<2x128xf32>
    %536 = tpu.matmul %532, %1, %cst_100 {dimension_numbers = #tpu.dot_dimension_numbers<[1], [0], [0], [1], [0, 0, 1, 1], [], []>} : vector<2x32xf32>, vector<32x128xf32>, vector<2x128xf32> -> vector<2x128xf32>
    %537 = arith.addf %535, %536 : vector<2x128xf32>
    %538 = arith.negf %537 : vector<2x128xf32>
    %539 = math.exp %538 : vector<2x128xf32>
    %cst_101 = arith.constant 1.000000e+00 : f32
    %540 = vector.broadcast %cst_101 : f32 to vector<2x128xf32>
    %541 = arith.addf %540, %539 : vector<2x128xf32>
    %542 = arith.divf %540, %541 : vector<2x128xf32>
    %543 = math.tanh %537 : vector<2x128xf32>
    %544 = vector.extract_strided_slice %542 {offsets = [0, 32], sizes = [2, 32], strides = [1, 1]} : vector<2x128xf32> to vector<2x32xf32>
    %545 = arith.mulf %544, %529 : vector<2x32xf32>
    %546 = vector.extract_strided_slice %542 {offsets = [0, 0], sizes = [2, 32], strides = [1, 1]} : vector<2x128xf32> to vector<2x32xf32>
    %547 = vector.extract_strided_slice %543 {offsets = [0, 64], sizes = [2, 32], strides = [1, 1]} : vector<2x128xf32> to vector<2x32xf32>
    %548 = arith.mulf %546, %547 : vector<2x32xf32>
    %549 = arith.addf %545, %548 : vector<2x32xf32>
    %550 = vector.extract_strided_slice %542 {offsets = [0, 96], sizes = [2, 32], strides = [1, 1]} : vector<2x128xf32> to vector<2x32xf32>
    %551 = math.tanh %549 : vector<2x32xf32>
    %552 = arith.mulf %550, %551 : vector<2x32xf32>
    %553 = vector.extract_strided_slice %7 {offsets = [0, 768], sizes = [2, 128], strides = [1, 1]} : vector<2x1024xf32> to vector<2x128xf32>
    %554 = vector.extract_strided_slice %432 {offsets = [0, 128], sizes = [2, 128], strides = [1, 1]} : vector<2x256xf32> to vector<2x128xf32>
    %555 = arith.addf %553, %554 : vector<2x128xf32>
    %cst_102 = arith.constant dense<0.000000e+00> : vector<2x128xf32>
    %556 = tpu.matmul %552, %1, %cst_102 {dimension_numbers = #tpu.dot_dimension_numbers<[1], [0], [0], [1], [0, 0, 1, 1], [], []>} : vector<2x32xf32>, vector<32x128xf32>, vector<2x128xf32> -> vector<2x128xf32>
    %557 = arith.addf %555, %556 : vector<2x128xf32>
    %558 = arith.negf %557 : vector<2x128xf32>
    %559 = math.exp %558 : vector<2x128xf32>
    %cst_103 = arith.constant 1.000000e+00 : f32
    %560 = vector.broadcast %cst_103 : f32 to vector<2x128xf32>
    %561 = arith.addf %560, %559 : vector<2x128xf32>
    %562 = arith.divf %560, %561 : vector<2x128xf32>
    %563 = math.tanh %557 : vector<2x128xf32>
    %564 = vector.extract_strided_slice %562 {offsets = [0, 32], sizes = [2, 32], strides = [1, 1]} : vector<2x128xf32> to vector<2x32xf32>
    %565 = arith.mulf %564, %549 : vector<2x32xf32>
    %566 = vector.extract_strided_slice %562 {offsets = [0, 0], sizes = [2, 32], strides = [1, 1]} : vector<2x128xf32> to vector<2x32xf32>
    %567 = vector.extract_strided_slice %563 {offsets = [0, 64], sizes = [2, 32], strides = [1, 1]} : vector<2x128xf32> to vector<2x32xf32>
    %568 = arith.mulf %566, %567 : vector<2x32xf32>
    %569 = arith.addf %565, %568 : vector<2x32xf32>
    %570 = vector.extract_strided_slice %562 {offsets = [0, 96], sizes = [2, 32], strides = [1, 1]} : vector<2x128xf32> to vector<2x32xf32>
    %571 = math.tanh %569 : vector<2x32xf32>
    %572 = arith.mulf %570, %571 : vector<2x32xf32>
    %573 = vector.extract_strided_slice %7 {offsets = [0, 896], sizes = [2, 128], strides = [1, 1]} : vector<2x1024xf32> to vector<2x128xf32>
    %574 = vector.extract_strided_slice %432 {offsets = [0, 128], sizes = [2, 128], strides = [1, 1]} : vector<2x256xf32> to vector<2x128xf32>
    %575 = arith.addf %573, %574 : vector<2x128xf32>
    %cst_104 = arith.constant dense<0.000000e+00> : vector<2x128xf32>
    %576 = tpu.matmul %572, %1, %cst_104 {dimension_numbers = #tpu.dot_dimension_numbers<[1], [0], [0], [1], [0, 0, 1, 1], [], []>} : vector<2x32xf32>, vector<32x128xf32>, vector<2x128xf32> -> vector<2x128xf32>
    %577 = arith.addf %575, %576 : vector<2x128xf32>
    %578 = arith.negf %577 : vector<2x128xf32>
    %579 = math.exp %578 : vector<2x128xf32>
    %cst_105 = arith.constant 1.000000e+00 : f32
    %580 = vector.broadcast %cst_105 : f32 to vector<2x128xf32>
    %581 = arith.addf %580, %579 : vector<2x128xf32>
    %582 = arith.divf %580, %581 : vector<2x128xf32>
    %583 = math.tanh %577 : vector<2x128xf32>
    %584 = vector.extract_strided_slice %582 {offsets = [0, 32], sizes = [2, 32], strides = [1, 1]} : vector<2x128xf32> to vector<2x32xf32>
    %585 = arith.mulf %584, %569 : vector<2x32xf32>
    %586 = vector.extract_strided_slice %582 {offsets = [0, 0], sizes = [2, 32], strides = [1, 1]} : vector<2x128xf32> to vector<2x32xf32>
    %587 = vector.extract_strided_slice %583 {offsets = [0, 64], sizes = [2, 32], strides = [1, 1]} : vector<2x128xf32> to vector<2x32xf32>
    %588 = arith.mulf %586, %587 : vector<2x32xf32>
    %589 = arith.addf %585, %588 : vector<2x32xf32>
    %590 = vector.extract_strided_slice %582 {offsets = [0, 96], sizes = [2, 32], strides = [1, 1]} : vector<2x128xf32> to vector<2x32xf32>
    %591 = math.tanh %589 : vector<2x32xf32>
    %592 = arith.mulf %590, %591 : vector<2x32xf32>
    %593 = tpu.concatenate %452, %472, %492, %512, %532, %552, %572, %592 in 1 : vector<2x32xf32>, vector<2x32xf32>, vector<2x32xf32>, vector<2x32xf32>, vector<2x32xf32>, vector<2x32xf32>, vector<2x32xf32>, vector<2x32xf32> -> vector<2x256xf32>
    %cst_106 = arith.constant 0.000000e+00 : f32
    %594 = vector.broadcast %cst_106 : f32 to vector<2x256xf32>
    %595 = arith.maximumf %593, %594 : vector<2x256xf32>
    %c0_107 = arith.constant 0 : index
    %c0_108 = arith.constant 0 : index
    %596 = vector.load %arg6[%c0_107, %c0_108] : memref<256x64xf32, #tpu.memory_space<vmem>>, vector<256x64xf32>
    %cst_109 = arith.constant dense<0.000000e+00> : vector<2x64xf32>
    %597 = tpu.matmul %595, %596, %cst_109 {dimension_numbers = #tpu.dot_dimension_numbers<[1], [0], [0], [1], [0, 0, 1, 1], [], []>} : vector<2x256xf32>, vector<256x64xf32>, vector<2x64xf32> -> vector<2x64xf32>
    %c0_110 = arith.constant 0 : index
    %c0_111 = arith.constant 0 : index
    %598 = vector.load %arg7[%c0_110, %c0_111] : memref<1x64xf32, #tpu.memory_space<vmem>>, vector<1x64xf32>
    %599 = vector.broadcast %598 : vector<1x64xf32> to vector<2x64xf32>
    %600 = arith.addf %597, %599 : vector<2x64xf32>
    %601 = arith.subf %0, %600 : vector<2x64xf32>
    %c0_112 = arith.constant 0 : index
    %c0_113 = arith.constant 0 : index
    %602 = vector.load %arg8[%c0_112, %c0_113] : memref<64x256xf32, #tpu.memory_space<vmem>>, vector<64x256xf32>
    %cst_114 = arith.constant dense<0.000000e+00> : vector<2x256xf32>
    %603 = tpu.matmul %601, %602, %cst_114 {dimension_numbers = #tpu.dot_dimension_numbers<[1], [0], [0], [1], [0, 0, 1, 1], [], []>} : vector<2x64xf32>, vector<64x256xf32>, vector<2x256xf32> -> vector<2x256xf32>
    %c0_115 = arith.constant 0 : index
    %c0_116 = arith.constant 0 : index
    %604 = vector.load %arg9[%c0_115, %c0_116] : memref<1x256xf32, #tpu.memory_space<vmem>>, vector<1x256xf32>
    %605 = vector.broadcast %604 : vector<1x256xf32> to vector<2x256xf32>
    %606 = arith.addf %603, %605 : vector<2x256xf32>
    %607 = vector.extract_strided_slice %606 {offsets = [0, 0], sizes = [2, 128], strides = [1, 1]} : vector<2x256xf32> to vector<2x128xf32>
    %cst_117 = arith.constant dense<0.000000e+00> : vector<2x128xf32>
    %608 = tpu.matmul %8, %2, %cst_117 {dimension_numbers = #tpu.dot_dimension_numbers<[1], [0], [0], [1], [0, 0, 1, 1], [], []>} : vector<2x32xf32>, vector<32x128xf32>, vector<2x128xf32> -> vector<2x128xf32>
    %609 = arith.addf %607, %608 : vector<2x128xf32>
    %610 = arith.negf %609 : vector<2x128xf32>
    %611 = math.exp %610 : vector<2x128xf32>
    %cst_118 = arith.constant 1.000000e+00 : f32
    %612 = vector.broadcast %cst_118 : f32 to vector<2x128xf32>
    %613 = arith.addf %612, %611 : vector<2x128xf32>
    %614 = arith.divf %612, %613 : vector<2x128xf32>
    %615 = math.tanh %609 : vector<2x128xf32>
    %616 = vector.extract_strided_slice %614 {offsets = [0, 32], sizes = [2, 32], strides = [1, 1]} : vector<2x128xf32> to vector<2x32xf32>
    %617 = arith.mulf %616, %8 : vector<2x32xf32>
    %618 = vector.extract_strided_slice %614 {offsets = [0, 0], sizes = [2, 32], strides = [1, 1]} : vector<2x128xf32> to vector<2x32xf32>
    %619 = vector.extract_strided_slice %615 {offsets = [0, 64], sizes = [2, 32], strides = [1, 1]} : vector<2x128xf32> to vector<2x32xf32>
    %620 = arith.mulf %618, %619 : vector<2x32xf32>
    %621 = arith.addf %617, %620 : vector<2x32xf32>
    %622 = vector.extract_strided_slice %614 {offsets = [0, 96], sizes = [2, 32], strides = [1, 1]} : vector<2x128xf32> to vector<2x32xf32>
    %623 = math.tanh %621 : vector<2x32xf32>
    %624 = arith.mulf %622, %623 : vector<2x32xf32>
    %625 = vector.extract_strided_slice %606 {offsets = [0, 128], sizes = [2, 128], strides = [1, 1]} : vector<2x256xf32> to vector<2x128xf32>
    %cst_119 = arith.constant dense<0.000000e+00> : vector<2x128xf32>
    %626 = tpu.matmul %624, %2, %cst_119 {dimension_numbers = #tpu.dot_dimension_numbers<[1], [0], [0], [1], [0, 0, 1, 1], [], []>} : vector<2x32xf32>, vector<32x128xf32>, vector<2x128xf32> -> vector<2x128xf32>
    %627 = arith.addf %625, %626 : vector<2x128xf32>
    %628 = arith.negf %627 : vector<2x128xf32>
    %629 = math.exp %628 : vector<2x128xf32>
    %cst_120 = arith.constant 1.000000e+00 : f32
    %630 = vector.broadcast %cst_120 : f32 to vector<2x128xf32>
    %631 = arith.addf %630, %629 : vector<2x128xf32>
    %632 = arith.divf %630, %631 : vector<2x128xf32>
    %633 = math.tanh %627 : vector<2x128xf32>
    %634 = vector.extract_strided_slice %632 {offsets = [0, 32], sizes = [2, 32], strides = [1, 1]} : vector<2x128xf32> to vector<2x32xf32>
    %635 = arith.mulf %634, %621 : vector<2x32xf32>
    %636 = vector.extract_strided_slice %632 {offsets = [0, 0], sizes = [2, 32], strides = [1, 1]} : vector<2x128xf32> to vector<2x32xf32>
    %637 = vector.extract_strided_slice %633 {offsets = [0, 64], sizes = [2, 32], strides = [1, 1]} : vector<2x128xf32> to vector<2x32xf32>
    %638 = arith.mulf %636, %637 : vector<2x32xf32>
    %639 = arith.addf %635, %638 : vector<2x32xf32>
    %640 = vector.extract_strided_slice %632 {offsets = [0, 96], sizes = [2, 32], strides = [1, 1]} : vector<2x128xf32> to vector<2x32xf32>
    %641 = math.tanh %639 : vector<2x32xf32>
    %642 = arith.mulf %640, %641 : vector<2x32xf32>
    %643 = tpu.concatenate %624, %642 in 1 : vector<2x32xf32>, vector<2x32xf32> -> vector<2x64xf32>
    %cst_121 = arith.constant 0.000000e+00 : f32
    %644 = vector.broadcast %cst_121 : f32 to vector<2x64xf32>
    %645 = arith.maximumf %643, %644 : vector<2x64xf32>
    %c0_122 = arith.constant 0 : index
    %c0_123 = arith.constant 0 : index
    %646 = vector.load %arg11[%c0_122, %c0_123] : memref<64x8xf32, #tpu.memory_space<vmem>>, vector<64x8xf32>
    %cst_124 = arith.constant dense<0.000000e+00> : vector<2x8xf32>
    %647 = tpu.matmul %645, %646, %cst_124 {dimension_numbers = #tpu.dot_dimension_numbers<[1], [0], [0], [1], [0, 0, 1, 1], [], []>} : vector<2x64xf32>, vector<64x8xf32>, vector<2x8xf32> -> vector<2x8xf32>
    %c0_125 = arith.constant 0 : index
    %c0_126 = arith.constant 0 : index
    %648 = vector.load %arg12[%c0_125, %c0_126] : memref<1x8xf32, #tpu.memory_space<vmem>>, vector<1x8xf32>
    %649 = vector.broadcast %648 : vector<1x8xf32> to vector<2x8xf32>
    %650 = arith.addf %647, %649 : vector<2x8xf32>
    %c0_127 = arith.constant 0 : index
    %c0_128 = arith.constant 0 : index
    %651 = vector.load %arg13[%c0_127, %c0_128] : memref<2x64xf32, #tpu.memory_space<vmem>>, vector<2x64xf32>
    tpu.vector_store %arg13[%c0_127, %c0_128], %600 {strides = array<i32>} : memref<2x64xf32, #tpu.memory_space<vmem>>, vector<2x64xf32>,
    %c0_129 = arith.constant 0 : index
    %c0_130 = arith.constant 0 : index
    %652 = vector.load %arg14[%c0_129, %c0_130] : memref<2x8xf32, #tpu.memory_space<vmem>>, vector<2x8xf32>
    tpu.vector_store %arg14[%c0_129, %c0_130], %650 {strides = array<i32>} : memref<2x8xf32, #tpu.memory_space<vmem>>, vector<2x8xf32>,
    return
  }
  func.func @transform_0(%arg0: i32) -> (i32, i32) {
    %c0_i32 = arith.constant 0 : i32
    %c0_i32_0 = arith.constant 0 : i32
    return %arg0, %c0_i32 : i32, i32
  }
  func.func @transform_1(%arg0: i32) -> (i32, i32) {
    %c0_i32 = arith.constant 0 : i32
    %c0_i32_0 = arith.constant 0 : i32
    %c0_i32_1 = arith.constant 0 : i32
    return %c0_i32, %c0_i32_0 : i32, i32
  }
  func.func @transform_2(%arg0: i32) -> (i32, i32) {
    %c0_i32 = arith.constant 0 : i32
    %c0_i32_0 = arith.constant 0 : i32
    %c0_i32_1 = arith.constant 0 : i32
    return %c0_i32, %c0_i32_0 : i32, i32
  }
  func.func @transform_3(%arg0: i32) -> (i32, i32) {
    %c0_i32 = arith.constant 0 : i32
    %c0_i32_0 = arith.constant 0 : i32
    %c0_i32_1 = arith.constant 0 : i32
    return %c0_i32, %c0_i32_0 : i32, i32
  }
  func.func @transform_4(%arg0: i32) -> (i32, i32) {
    %c0_i32 = arith.constant 0 : i32
    %c0_i32_0 = arith.constant 0 : i32
    %c0_i32_1 = arith.constant 0 : i32
    return %c0_i32, %c0_i32_0 : i32, i32
  }
  func.func @transform_5(%arg0: i32) -> (i32, i32) {
    %c0_i32 = arith.constant 0 : i32
    %c0_i32_0 = arith.constant 0 : i32
    %c0_i32_1 = arith.constant 0 : i32
    return %c0_i32, %c0_i32_0 : i32, i32
  }
  func.func @transform_6(%arg0: i32) -> (i32, i32) {
    %c0_i32 = arith.constant 0 : i32
    %c0_i32_0 = arith.constant 0 : i32
    %c0_i32_1 = arith.constant 0 : i32
    return %c0_i32, %c0_i32_0 : i32, i32
  }
  func.func @transform_7(%arg0: i32) -> (i32, i32) {
    %c0_i32 = arith.constant 0 : i32
    %c0_i32_0 = arith.constant 0 : i32
    %c0_i32_1 = arith.constant 0 : i32
    return %c0_i32, %c0_i32_0 : i32, i32
  }
  func.func @transform_8(%arg0: i32) -> (i32, i32) {
    %c0_i32 = arith.constant 0 : i32
    %c0_i32_0 = arith.constant 0 : i32
    %c0_i32_1 = arith.constant 0 : i32
    return %c0_i32, %c0_i32_0 : i32, i32
  }
  func.func @transform_9(%arg0: i32) -> (i32, i32) {
    %c0_i32 = arith.constant 0 : i32
    %c0_i32_0 = arith.constant 0 : i32
    %c0_i32_1 = arith.constant 0 : i32
    return %c0_i32, %c0_i32_0 : i32, i32
  }
  func.func @transform_10(%arg0: i32) -> (i32, i32) {
    %c0_i32 = arith.constant 0 : i32
    %c0_i32_0 = arith.constant 0 : i32
    %c0_i32_1 = arith.constant 0 : i32
    return %c0_i32, %c0_i32_0 : i32, i32
  }
  func.func @transform_11(%arg0: i32) -> (i32, i32) {
    %c0_i32 = arith.constant 0 : i32
    %c0_i32_0 = arith.constant 0 : i32
    %c0_i32_1 = arith.constant 0 : i32
    return %c0_i32, %c0_i32_0 : i32, i32
  }
  func.func @transform_12(%arg0: i32) -> (i32, i32) {
    %c0_i32 = arith.constant 0 : i32
    %c0_i32_0 = arith.constant 0 : i32
    return %arg0, %c0_i32 : i32, i32
  }
  func.func @transform_13(%arg0: i32) -> (i32, i32) {
    %c0_i32 = arith.constant 0 : i32
    %c0_i32_0 = arith.constant 0 : i32
    return %arg0, %c0_i32 : i32, i32
  }
}

</mosaic_0001>

<llo_original>
// kernel: _lambda_.1
$region0: #{_lambda_.1}
  #allocation0 [shape = 'u32[]', space=smem, size = 0x4, offset = 0x4, fixed_abs, tag = 'smem constant byte address 0x4 - core index']
  #allocation1 [shape = 'u32[72,128]{1,0:T(1,128)}', space=vmem, size = 0x9000, scoped, tag = 'internal scratch']
  %s0 = inlined_call_operand.hbm [shape: f32[2,64], index: 0, kind: input, shape index: {}]
  %s1 = inlined_call_operand.hbm [shape: f32[64,1024], index: 1, kind: input, shape index: {}]
  %s2 = inlined_call_operand.vmem [shape: f32[1,1024], index: 2, kind: input, shape index: {}]
  %s3 = inlined_call_operand.hbm [shape: f32[8,256], index: 3, kind: input, shape index: {}]
  %s4 = inlined_call_operand.hbm [shape: f32[32,128], index: 4, kind: input, shape index: {}]
  %s5 = inlined_call_operand.hbm [shape: f32[256,64], index: 5, kind: input, shape index: {}]
  %s6 = inlined_call_operand.vmem [shape: f32[1,64], index: 6, kind: input, shape index: {}]
  %s7 = inlined_call_operand.hbm [shape: f32[64,256], index: 7, kind: input, shape index: {}]
  %s8 = inlined_call_operand.hbm [shape: f32[1,256], index: 8, kind: input, shape index: {}]
  %s9 = inlined_call_operand.hbm [shape: f32[32,128], index: 9, kind: input, shape index: {}]
  %s10 = inlined_call_operand.hbm [shape: f32[64,8], index: 10, kind: input, shape index: {}]
  %s11 = inlined_call_operand.hbm [shape: f32[1,8], index: 11, kind: input, shape index: {}]
  %s12 = inlined_call_operand.hbm [shape: f32[2,64], index: 12, kind: output, shape index: {0}]
  %s13 = inlined_call_operand.vmem [shape: f32[2,8], index: 13, kind: output, shape index: {1}]
  %14 = xla_tuple %s12, %s13
  %s15 = sld [smem:[#allocation0]]
  $region106: #{_lambda_.1} parent=0
    _
  %s17 = ssub.s32 1, %s15
  %s18 = scalar_select 0, %s17, %s15
  $region1: #{_lambda_.1} parent=0
    #allocation2 [shape = 'u8[1024]{0}', space=vmem, size = 0x400, scoped, tag = 'input window, operand 0, single buffered']
    #allocation3 [shape = 's32[1]{0}', space=sflag, size = 0x4, scoped, tag = 'scoped memory for _lambda_.1']
    #allocation4 [shape = 's32[1]{0}', space=sflag, size = 0x4, scoped, tag = 'scoped memory for _lambda_.1']
    #allocation5 [shape = 'u8[262144]{0}', space=vmem, size = 0x40000, scoped, tag = 'input window, operand 1, single buffered']
    #allocation6 [shape = 's32[1]{0}', space=sflag, size = 0x4, scoped, tag = 'scoped memory for _lambda_.1']
    #allocation7 [shape = 'u8[8192]{0}', space=vmem, size = 0x2000, scoped, tag = 'input window, operand 3, single buffered']
    #allocation8 [shape = 'u8[16384]{0}', space=vmem, size = 0x4000, scoped, tag = 'input window, operand 4, single buffered']
    #allocation9 [shape = 's32[1]{0}', space=sflag, size = 0x4, scoped, tag = 'scoped memory for _lambda_.1']
    #allocation10 [shape = 'u8[131072]{0}', space=vmem, size = 0x20000, scoped, tag = 'input window, operand 5, single buffered']
    #allocation11 [shape = 'u8[65536]{0}', space=vmem, size = 0x10000, scoped, tag = 'input window, operand 7, single buffered']
    #allocation12 [shape = 's32[1]{0}', space=sflag, size = 0x4, scoped, tag = 'scoped memory for _lambda_.1']
    #allocation13 [shape = 'u8[1024]{0}', space=vmem, size = 0x400, scoped, tag = 'input window, operand 8, single buffered']
    #allocation14 [shape = 'u8[16384]{0}', space=vmem, size = 0x4000, scoped, tag = 'input window, operand 9, single buffered']
    #allocation15 [shape = 's32[1]{0}', space=sflag, size = 0x4, scoped, tag = 'scoped memory for _lambda_.1']
    #allocation16 [shape = 'u8[32768]{0}', space=vmem, size = 0x8000, scoped, tag = 'input window, operand 10, single buffered']
    #allocation17 [shape = 'u8[512]{0}', space=vmem, size = 0x400, scoped, tag = 'input window, operand 11, single buffered']
    #allocation18 [shape = 's32[1]{0}', space=sflag, size = 0x4, scoped, tag = 'scoped memory for _lambda_.1']
    #allocation19 [shape = 'u8[1024]{0}', space=vmem, size = 0x400, scoped, tag = 'output window, operand 0, single buffered']
    %19 = vsyncpa [#allocation3], 0
    %20 = vsyncpa [#allocation6], 0
    %21 = vsyncpa [#allocation9], 0
    %22 = vsyncpa [#allocation12], 0
    %23 = vsyncpa [#allocation15], 0
    %24 = vsyncpa [#allocation18], 0
    %25 = vsyncpa [#allocation4], 0
    // Predicated region
    $region2: #{_lambda_.1} parent=1 // pred_check
      _
    $region3: #{_lambda_.1} parent=1 // pred_check_branch
      %27 = sbr.rel (0) target = $region5
    $region4: #{_lambda_.1} parent=1 // pred_region
      %29 = vsyncadd [#allocation3], 0
      %s31 = sshll.u32 %s0, 4
      %s32 = int_to_ptr.hbm [resolvable:$true] %s31
      %s33 = sshll.u32 [#allocation2], 4
      %s34 = int_to_ptr.vmem [resolvable:$true] %s33
      %36 = dma.hbm_to_vmem [thread:$0]  %s32, 32, %s34, [#allocation3]
    $region5: #{_lambda_.1} parent=1 // pred_fallthru
      _
    // Predicated region
    $region6: #{_lambda_.1} parent=1 // pred_check
      _
    $region7: #{_lambda_.1} parent=1 // pred_check_branch
      %38 = sbr.rel (0) target = $region9
    $region8: #{_lambda_.1} parent=1 // pred_region
      %40 = vsyncadd [#allocation6], 0
      %s41 = sshll.u32 %s1, 4
      %s42 = int_to_ptr.hbm [resolvable:$true] %s41
      %s43 = sshll.u32 [#allocation5], 4
      %s44 = int_to_ptr.vmem [resolvable:$true] %s43
      %49 = dma.hbm_to_vmem [thread:$0]  %s42, 8192, %s44, [#allocation6], 1024, 1024, 64
    $region9: #{_lambda_.1} parent=1 // pred_fallthru
      _
    // Predicated region
    $region10: #{_lambda_.1} parent=1 // pred_check
      _
    $region11: #{_lambda_.1} parent=1 // pred_check_branch
      %51 = sbr.rel (0) target = $region13
    $region12: #{_lambda_.1} parent=1 // pred_region
      _
    $region13: #{_lambda_.1} parent=1 // pred_fallthru
      _
    // Predicated region
    $region14: #{_lambda_.1} parent=1 // pred_check
      _
    $region15: #{_lambda_.1} parent=1 // pred_check_branch
      %53 = sbr.rel (0) target = $region17
    $region16: #{_lambda_.1} parent=1 // pred_region
      %55 = vsyncadd [#allocation6], 0
      %s57 = sshll.u32 %s3, 4
      %s58 = int_to_ptr.hbm [resolvable:$true] %s57
      %s59 = sshll.u32 [#allocation7], 4
      %s60 = int_to_ptr.vmem [resolvable:$true] %s59
      %62 = dma.hbm_to_vmem [thread:$0]  %s58, 256, %s60, [#allocation6]
    $region17: #{_lambda_.1} parent=1 // pred_fallthru
      _
    // Predicated region
    $region18: #{_lambda_.1} parent=1 // pred_check
      _
    $region19: #{_lambda_.1} parent=1 // pred_check_branch
      %64 = sbr.rel (0) target = $region21
    $region20: #{_lambda_.1} parent=1 // pred_region
      %66 = vsyncadd [#allocation9], 0
      %s67 = sshll.u32 %s4, 4
      %s68 = int_to_ptr.hbm [resolvable:$true] %s67
      %s69 = sshll.u32 [#allocation8], 4
      %s70 = int_to_ptr.vmem [resolvable:$true] %s69
      %75 = dma.hbm_to_vmem [thread:$0]  %s68, 512, %s70, [#allocation9], 128, 128, 8
    $region21: #{_lambda_.1} parent=1 // pred_fallthru
      _
    // Predicated region
    $region22: #{_lambda_.1} parent=1 // pred_check
      _
    $region23: #{_lambda_.1} parent=1 // pred_check_branch
      %77 = sbr.rel (0) target = $region25
    $region24: #{_lambda_.1} parent=1 // pred_region
      %79 = vsyncadd [#allocation9], 0
      %s80 = sshll.u32 %s5, 4
      %s81 = int_to_ptr.hbm [resolvable:$true] %s80
      %s82 = sshll.u32 [#allocation10], 4
      %s83 = int_to_ptr.vmem [resolvable:$true] %s82
      %88 = dma.hbm_to_vmem [thread:$0]  %s81, 4096, %s83, [#allocation9], 128, 128, 8
    $region25: #{_lambda_.1} parent=1 // pred_fallthru
      _
    // Predicated region
    $region26: #{_lambda_.1} parent=1 // pred_check
      _
    $region27: #{_lambda_.1} parent=1 // pred_check_branch
      %90 = sbr.rel (0) target = $region29
    $region28: #{_lambda_.1} parent=1 // pred_region
      _
    $region29: #{_lambda_.1} parent=1 // pred_fallthru
      _
    // Predicated region
    $region30: #{_lambda_.1} parent=1 // pred_check
      _
    $region31: #{_lambda_.1} parent=1 // pred_check_branch
      %92 = sbr.rel (0) target = $region33
    $region32: #{_lambda_.1} parent=1 // pred_region
      %94 = vsyncadd [#allocation12], 0
      %s95 = sshll.u32 %s7, 4
      %s96 = int_to_ptr.hbm [resolvable:$true] %s95
      %s97 = sshll.u32 [#allocation11], 4
      %s98 = int_to_ptr.vmem [resolvable:$true] %s97
      %103 = dma.hbm_to_vmem [thread:$0]  %s96, 2048, %s98, [#allocation12], 256, 256, 16
    $region33: #{_lambda_.1} parent=1 // pred_fallthru
      _
    // Predicated region
    $region34: #{_lambda_.1} parent=1 // pred_check
      _
    $region35: #{_lambda_.1} parent=1 // pred_check_branch
      %105 = sbr.rel (0) target = $region37
    $region36: #{_lambda_.1} parent=1 // pred_region
      %107 = vsyncadd [#allocation12], 0
      %s109 = sshll.u32 %s8, 4
      %s110 = int_to_ptr.hbm [resolvable:$true] %s109
      %s111 = sshll.u32 [#allocation13], 4
      %s112 = int_to_ptr.vmem [resolvable:$true] %s111
      %114 = dma.hbm_to_vmem [thread:$0]  %s110, 32, %s112, [#allocation12]
    $region37: #{_lambda_.1} parent=1 // pred_fallthru
      _
    // Predicated region
    $region38: #{_lambda_.1} parent=1 // pred_check
      _
    $region39: #{_lambda_.1} parent=1 // pred_check_branch
      %116 = sbr.rel (0) target = $region41
    $region40: #{_lambda_.1} parent=1 // pred_region
      %118 = vsyncadd [#allocation15], 0
      %s119 = sshll.u32 %s9, 4
      %s120 = int_to_ptr.hbm [resolvable:$true] %s119
      %s121 = sshll.u32 [#allocation14], 4
      %s122 = int_to_ptr.vmem [resolvable:$true] %s121
      %127 = dma.hbm_to_vmem [thread:$0]  %s120, 512, %s122, [#allocation15], 128, 128, 8
    $region41: #{_lambda_.1} parent=1 // pred_fallthru
      _
    // Predicated region
    $region42: #{_lambda_.1} parent=1 // pred_check
      _
    $region43: #{_lambda_.1} parent=1 // pred_check_branch
      %129 = sbr.rel (0) target = $region45
    $region44: #{_lambda_.1} parent=1 // pred_region
      %131 = vsyncadd [#allocation15], 0
      %s132 = sshll.u32 %s10, 4
      %s133 = int_to_ptr.hbm [resolvable:$true] %s132
      %s134 = sshll.u32 [#allocation16], 4
      %s135 = int_to_ptr.vmem [resolvable:$true] %s134
      %140 = dma.hbm_to_vmem [thread:$0]  %s133, 1024, %s135, [#allocation15], 128, 128, 8
    $region45: #{_lambda_.1} parent=1 // pred_fallthru
      _
    // Predicated region
    $region46: #{_lambda_.1} parent=1 // pred_check
      _
    $region47: #{_lambda_.1} parent=1 // pred_check_branch
      %142 = sbr.rel (0) target = $region49
    $region48: #{_lambda_.1} parent=1 // pred_region
      %144 = vsyncadd [#allocation18], 0
      %s146 = sshll.u32 %s11, 4
      %s147 = int_to_ptr.hbm [resolvable:$true] %s146
      %s148 = sshll.u32 [#allocation17], 4
      %s149 = int_to_ptr.vmem [resolvable:$true] %s148
      %151 = dma.hbm_to_vmem [thread:$0]  %s147, 16, %s149, [#allocation18]
    $region49: #{_lambda_.1} parent=1 // pred_fallthru
      _
    // Predicated region
    $region50: #{_lambda_.1} parent=1 // pred_check
      _
    $region51: #{_lambda_.1} parent=1 // pred_check_branch
      %153 = sbr.rel (0) target = $region53
    $region52: #{_lambda_.1} parent=1 // pred_region
      %155 = dma.done [#allocation3], 32
    $region53: #{_lambda_.1} parent=1 // pred_fallthru
      _
    // Predicated region
    $region54: #{_lambda_.1} parent=1 // pred_check
      _
    $region55: #{_lambda_.1} parent=1 // pred_check_branch
      %157 = sbr.rel (0) target = $region57
    $region56: #{_lambda_.1} parent=1 // pred_region
      %159 = dma.done [#allocation6], 8192
    $region57: #{_lambda_.1} parent=1 // pred_fallthru
      _
    // Predicated region
    $region58: #{_lambda_.1} parent=1 // pred_check
      _
    $region59: #{_lambda_.1} parent=1 // pred_check_branch
      %161 = sbr.rel (0) target = $region61
    $region60: #{_lambda_.1} parent=1 // pred_region
      %163 = dma.done [#allocation6], 256
    $region61: #{_lambda_.1} parent=1 // pred_fallthru
      _
    // Predicated region
    $region62: #{_lambda_.1} parent=1 // pred_check
      _
    $region63: #{_lambda_.1} parent=1 // pred_check_branch
      %165 = sbr.rel (0) target = $region65
    $region64: #{_lambda_.1} parent=1 // pred_region
      %167 = dma.done [#allocation9], 512
    $region65: #{_lambda_.1} parent=1 // pred_fallthru
      _
    // Predicated region
    $region66: #{_lambda_.1} parent=1 // pred_check
      _
    $region67: #{_lambda_.1} parent=1 // pred_check_branch
      %169 = sbr.rel (0) target = $region69
    $region68: #{_lambda_.1} parent=1 // pred_region
      %171 = dma.done [#allocation9], 4096
    $region69: #{_lambda_.1} parent=1 // pred_fallthru
      _
    // Predicated region
    $region70: #{_lambda_.1} parent=1 // pred_check
      _
    $region71: #{_lambda_.1} parent=1 // pred_check_branch
      %173 = sbr.rel (0) target = $region73
    $region72: #{_lambda_.1} parent=1 // pred_region
      %175 = dma.done [#allocation12], 2048
    $region73: #{_lambda_.1} parent=1 // pred_fallthru
      _
    // Predicated region
    $region74: #{_lambda_.1} parent=1 // pred_check
      _
    $region75: #{_lambda_.1} parent=1 // pred_check_branch
      %177 = sbr.rel (0) target = $region77
    $region76: #{_lambda_.1} parent=1 // pred_region
      %179 = dma.done [#allocation12], 32
    $region77: #{_lambda_.1} parent=1 // pred_fallthru
      _
    // Predicated region
    $region78: #{_lambda_.1} parent=1 // pred_check
      _
    $region79: #{_lambda_.1} parent=1 // pred_check_branch
      %181 = sbr.rel (0) target = $region81
    $region80: #{_lambda_.1} parent=1 // pred_region
      %183 = dma.done [#allocation15], 512
    $region81: #{_lambda_.1} parent=1 // pred_fallthru
      _
    // Predicated region
    $region82: #{_lambda_.1} parent=1 // pred_check
      _
    $region83: #{_lambda_.1} parent=1 // pred_check_branch
      %185 = sbr.rel (0) target = $region85
    $region84: #{_lambda_.1} parent=1 // pred_region
      %187 = dma.done [#allocation15], 1024
    $region85: #{_lambda_.1} parent=1 // pred_fallthru
      _
    // Predicated region
    $region86: #{_lambda_.1} parent=1 // pred_check
      _
    $region87: #{_lambda_.1} parent=1 // pred_check_branch
      %189 = sbr.rel (0) target = $region89
    $region88: #{_lambda_.1} parent=1 // pred_region
      %191 = dma.done [#allocation18], 16
    $region89: #{_lambda_.1} parent=1 // pred_fallthru
      _
    %v192 = vld [vmem:[#allocation2] sm:$0x3]
    %v193 = vld [vmem:[#allocation8] sm:$0xff]
    %v194 = vld [vmem:[#allocation8 + $0x8] sm:$0xff]
    %v195 = vld [vmem:[#allocation8 + $0x10] sm:$0xff]
    %v196 = vld [vmem:[#allocation8 + $0x18] sm:$0xff]
    %v197 = vld [vmem:[#allocation14] sm:$0xff]
    %v198 = vld [vmem:[#allocation14 + $0x8] sm:$0xff]
    %v199 = vld [vmem:[#allocation14 + $0x10] sm:$0xff]
    %v200 = vld [vmem:[#allocation14 + $0x18] sm:$0xff]
    %v201 = vld [vmem:[#allocation5] sm:$0xff]
    %v202 = vld [vmem:[#allocation5 + $0x8] sm:$0xff]
    %v203 = vld [vmem:[#allocation5 + $0x10] sm:$0xff]
    %v204 = vld [vmem:[#allocation5 + $0x18] sm:$0xff]
    %v205 = vld [vmem:[#allocation5 + $0x20] sm:$0xff]
    %v206 = vld [vmem:[#allocation5 + $0x28] sm:$0xff]
    %v207 = vld [vmem:[#allocation5 + $0x30] sm:$0xff]
    %v208 = vld [vmem:[#allocation5 + $0x38] sm:$0xff]
    %v209 = vld [vmem:[#allocation5 + $0x40] sm:$0xff]
    %v210 = vld [vmem:[#allocation5 + $0x48] sm:$0xff]
    %v211 = vld [vmem:[#allocation5 + $0x50] sm:$0xff]
    %v212 = vld [vmem:[#allocation5 + $0x58] sm:$0xff]
    %v213 = vld [vmem:[#allocation5 + $0x60] sm:$0xff]
    %v214 = vld [vmem:[#allocation5 + $0x68] sm:$0xff]
    %v215 = vld [vmem:[#allocation5 + $0x70] sm:$0xff]
    %v216 = vld [vmem:[#allocation5 + $0x78] sm:$0xff]
    %v217 = vld [vmem:[#allocation5 + $0x80] sm:$0xff]
    %v218 = vld [vmem:[#allocation5 + $0x88] sm:$0xff]
    %v219 = vld [vmem:[#allocation5 + $0x90] sm:$0xff]
    %v220 = vld [vmem:[#allocation5 + $0x98] sm:$0xff]
    %v221 = vld [vmem:[#allocation5 + $0xa0] sm:$0xff]
    %v222 = vld [vmem:[#allocation5 + $0xa8] sm:$0xff]
    %v223 = vld [vmem:[#allocation5 + $0xb0] sm:$0xff]
    %v224 = vld [vmem:[#allocation5 + $0xb8] sm:$0xff]
    %v225 = vld [vmem:[#allocation5 + $0xc0] sm:$0xff]
    %v226 = vld [vmem:[#allocation5 + $0xc8] sm:$0xff]
    %v227 = vld [vmem:[#allocation5 + $0xd0] sm:$0xff]
    %v228 = vld [vmem:[#allocation5 + $0xd8] sm:$0xff]
    %v229 = vld [vmem:[#allocation5 + $0xe0] sm:$0xff]
    %v230 = vld [vmem:[#allocation5 + $0xe8] sm:$0xff]
    %v231 = vld [vmem:[#allocation5 + $0xf0] sm:$0xff]
    %v232 = vld [vmem:[#allocation5 + $0xf8] sm:$0xff]
    %v233 = vld [vmem:[#allocation5 + $0x100] sm:$0xff]
    %v234 = vld [vmem:[#allocation5 + $0x108] sm:$0xff]
    %v235 = vld [vmem:[#allocation5 + $0x110] sm:$0xff]
    %v236 = vld [vmem:[#allocation5 + $0x118] sm:$0xff]
    %v237 = vld [vmem:[#allocation5 + $0x120] sm:$0xff]
    %v238 = vld [vmem:[#allocation5 + $0x128] sm:$0xff]
    %v239 = vld [vmem:[#allocation5 + $0x130] sm:$0xff]
    %v240 = vld [vmem:[#allocation5 + $0x138] sm:$0xff]
    %v241 = vld [vmem:[#allocation5 + $0x140] sm:$0xff]
    %v242 = vld [vmem:[#allocation5 + $0x148] sm:$0xff]
    %v243 = vld [vmem:[#allocation5 + $0x150] sm:$0xff]
    %v244 = vld [vmem:[#allocation5 + $0x158] sm:$0xff]
    %v245 = vld [vmem:[#allocation5 + $0x160] sm:$0xff]
    %v246 = vld [vmem:[#allocation5 + $0x168] sm:$0xff]
    %v247 = vld [vmem:[#allocation5 + $0x170] sm:$0xff]
    %v248 = vld [vmem:[#allocation5 + $0x178] sm:$0xff]
    %v249 = vld [vmem:[#allocation5 + $0x180] sm:$0xff]
    %v250 = vld [vmem:[#allocation5 + $0x188] sm:$0xff]
    %v251 = vld [vmem:[#allocation5 + $0x190] sm:$0xff]
    %v252 = vld [vmem:[#allocation5 + $0x198] sm:$0xff]
    %v253 = vld [vmem:[#allocation5 + $0x1a0] sm:$0xff]
    %v254 = vld [vmem:[#allocation5 + $0x1a8] sm:$0xff]
    %v255 = vld [vmem:[#allocation5 + $0x1b0] sm:$0xff]
    %v256 = vld [vmem:[#allocation5 + $0x1b8] sm:$0xff]
    %v257 = vld [vmem:[#allocation5 + $0x1c0] sm:$0xff]
    %v258 = vld [vmem:[#allocation5 + $0x1c8] sm:$0xff]
    %v259 = vld [vmem:[#allocation5 + $0x1d0] sm:$0xff]
    %v260 = vld [vmem:[#allocation5 + $0x1d8] sm:$0xff]
    %v261 = vld [vmem:[#allocation5 + $0x1e0] sm:$0xff]
    %v262 = vld [vmem:[#allocation5 + $0x1e8] sm:$0xff]
    %v263 = vld [vmem:[#allocation5 + $0x1f0] sm:$0xff]
    %v264 = vld [vmem:[#allocation5 + $0x1f8] sm:$0xff]
    %v265 = vld [vmem:[%s2] sm:$0xff]
    %v267 = vperm.slane %v265, 0
    %v268 = vperm.slane %v265, 1
    %v269 = vperm.slane %v265, 2
    %v270 = vperm.slane %v265, 3
    %v271 = vperm.slane %v265, 4
    %v272 = vperm.slane %v265, 5
    %v273 = vperm.slane %v265, 6
    %v274 = vperm.slane %v265, 7
    %vm283 = vcmask 523264
    %v285 = vsel %vm283, %v192, 0
    %287 = vmatpush.msra.mxu0 0.0
    %288 = vmatpush.msra.mxu0 0.0
    %289 = vmatpush.msra.mxu0 0.0
    %290 = vmatpush.msra.mxu0 0.0
    %291 = vmatpush.msra.mxu0 0.0
    %292 = vmatpush.msra.mxu0 0.0
    %293 = vmatpush.msra.mxu0 0.0
    %294 = vmatpush.msra.mxu0 0.0
    %295 = vmatpush.msra.mxu0 %v257
    %296 = vmatpush.msra.mxu0 %v249
    %297 = vmatpush.msra.mxu0 %v241
    %298 = vmatpush.msra.mxu0 %v233
    %299 = vmatpush.msra.mxu0 %v225
    %300 = vmatpush.msra.mxu0 %v217
    %301 = vmatpush.msra.mxu0 %v209
    %302 = vmatpush.msra.mxu0 %v201
    %303 = vmatmul.f32.gmra.mxu0 %v285
    %v304 = vpop.f32.mrf.mxu0
    %v305 = vadd.f32 %v267, %v304
    %306 = vdwg.mxu0
    %307 = vmatpush.msra.mxu0 0.0
    %308 = vmatpush.msra.mxu0 0.0
    %309 = vmatpush.msra.mxu0 0.0
    %310 = vmatpush.msra.mxu0 0.0
    %311 = vmatpush.msra.mxu0 0.0
    %312 = vmatpush.msra.mxu0 0.0
    %313 = vmatpush.msra.mxu0 0.0
    %314 = vmatpush.msra.mxu0 0.0
    %315 = vmatpush.msra.mxu0 %v258
    %316 = vmatpush.msra.mxu0 %v250
    %317 = vmatpush.msra.mxu0 %v242
    %318 = vmatpush.msra.mxu0 %v234
    %319 = vmatpush.msra.mxu0 %v226
    %320 = vmatpush.msra.mxu0 %v218
    %321 = vmatpush.msra.mxu0 %v210
    %322 = vmatpush.msra.mxu0 %v202
    %323 = vmatmul.f32.gmra.mxu0 %v285
    %v324 = vpop.f32.mrf.mxu0
    %v325 = vadd.f32 %v268, %v324
    %326 = vdwg.mxu0
    %327 = vmatpush.msra.mxu0 0.0
    %328 = vmatpush.msra.mxu0 0.0
    %329 = vmatpush.msra.mxu0 0.0
    %330 = vmatpush.msra.mxu0 0.0
    %331 = vmatpush.msra.mxu0 0.0
    %332 = vmatpush.msra.mxu0 0.0
    %333 = vmatpush.msra.mxu0 0.0
    %334 = vmatpush.msra.mxu0 0.0
    %335 = vmatpush.msra.mxu0 %v259
    %336 = vmatpush.msra.mxu0 %v251
    %337 = vmatpush.msra.mxu0 %v243
    %338 = vmatpush.msra.mxu0 %v235
    %339 = vmatpush.msra.mxu0 %v227
    %340 = vmatpush.msra.mxu0 %v219
    %341 = vmatpush.msra.mxu0 %v211
    %342 = vmatpush.msra.mxu0 %v203
    %343 = vmatmul.f32.gmra.mxu0 %v285
    %v344 = vpop.f32.mrf.mxu0
    %v345 = vadd.f32 %v269, %v344
    %346 = vdwg.mxu0
    %347 = vmatpush.msra.mxu0 0.0
    %348 = vmatpush.msra.mxu0 0.0
    %349 = vmatpush.msra.mxu0 0.0
    %350 = vmatpush.msra.mxu0 0.0
    %351 = vmatpush.msra.mxu0 0.0
    %352 = vmatpush.msra.mxu0 0.0
    %353 = vmatpush.msra.mxu0 0.0
    %354 = vmatpush.msra.mxu0 0.0
    %355 = vmatpush.msra.mxu0 %v260
    %356 = vmatpush.msra.mxu0 %v252
    %357 = vmatpush.msra.mxu0 %v244
    %358 = vmatpush.msra.mxu0 %v236
    %359 = vmatpush.msra.mxu0 %v228
    %360 = vmatpush.msra.mxu0 %v220
    %361 = vmatpush.msra.mxu0 %v212
    %362 = vmatpush.msra.mxu0 %v204
    %363 = vmatmul.f32.gmra.mxu0 %v285
    %v364 = vpop.f32.mrf.mxu0
    %v365 = vadd.f32 %v270, %v364
    %366 = vdwg.mxu0
    %367 = vmatpush.msra.mxu0 0.0
    %368 = vmatpush.msra.mxu0 0.0
    %369 = vmatpush.msra.mxu0 0.0
    %370 = vmatpush.msra.mxu0 0.0
    %371 = vmatpush.msra.mxu0 0.0
    %372 = vmatpush.msra.mxu0 0.0
    %373 = vmatpush.msra.mxu0 0.0
    %374 = vmatpush.msra.mxu0 0.0
    %375 = vmatpush.msra.mxu0 %v261
    %376 = vmatpush.msra.mxu0 %v253
    %377 = vmatpush.msra.mxu0 %v245
    %378 = vmatpush.msra.mxu0 %v237
    %379 = vmatpush.msra.mxu0 %v229
    %380 = vmatpush.msra.mxu0 %v221
    %381 = vmatpush.msra.mxu0 %v213
    %382 = vmatpush.msra.mxu0 %v205
    %383 = vmatmul.f32.gmra.mxu0 %v285
    %v384 = vpop.f32.mrf.mxu0
    %v385 = vadd.f32 %v271, %v384
    %386 = vdwg.mxu0
    %387 = vmatpush.msra.mxu0 0.0
    %388 = vmatpush.msra.mxu0 0.0
    %389 = vmatpush.msra.mxu0 0.0
    %390 = vmatpush.msra.mxu0 0.0
    %391 = vmatpush.msra.mxu0 0.0
    %392 = vmatpush.msra.mxu0 0.0
    %393 = vmatpush.msra.mxu0 0.0
    %394 = vmatpush.msra.mxu0 0.0
    %395 = vmatpush.msra.mxu0 %v262
    %396 = vmatpush.msra.mxu0 %v254
    %397 = vmatpush.msra.mxu0 %v246
    %398 = vmatpush.msra.mxu0 %v238
    %399 = vmatpush.msra.mxu0 %v230
    %400 = vmatpush.msra.mxu0 %v222
    %401 = vmatpush.msra.mxu0 %v214
    %402 = vmatpush.msra.mxu0 %v206
    %403 = vmatmul.f32.gmra.mxu0 %v285
    %v404 = vpop.f32.mrf.mxu0
    %v405 = vadd.f32 %v272, %v404
    %406 = vdwg.mxu0
    %407 = vmatpush.msra.mxu0 0.0
    %408 = vmatpush.msra.mxu0 0.0
    %409 = vmatpush.msra.mxu0 0.0
    %410 = vmatpush.msra.mxu0 0.0
    %411 = vmatpush.msra.mxu0 0.0
    %412 = vmatpush.msra.mxu0 0.0
    %413 = vmatpush.msra.mxu0 0.0
    %414 = vmatpush.msra.mxu0 0.0
    %415 = vmatpush.msra.mxu0 %v263
    %416 = vmatpush.msra.mxu0 %v255
    %417 = vmatpush.msra.mxu0 %v247
    %418 = vmatpush.msra.mxu0 %v239
    %419 = vmatpush.msra.mxu0 %v231
    %420 = vmatpush.msra.mxu0 %v223
    %421 = vmatpush.msra.mxu0 %v215
    %422 = vmatpush.msra.mxu0 %v207
    %423 = vmatmul.f32.gmra.mxu0 %v285
    %v424 = vpop.f32.mrf.mxu0
    %v425 = vadd.f32 %v273, %v424
    %426 = vdwg.mxu0
    %427 = vmatpush.msra.mxu0 0.0
    %428 = vmatpush.msra.mxu0 0.0
    %429 = vmatpush.msra.mxu0 0.0
    %430 = vmatpush.msra.mxu0 0.0
    %431 = vmatpush.msra.mxu0 0.0
    %432 = vmatpush.msra.mxu0 0.0
    %433 = vmatpush.msra.mxu0 0.0
    %434 = vmatpush.msra.mxu0 0.0
    %435 = vmatpush.msra.mxu0 %v264
    %436 = vmatpush.msra.mxu0 %v256
    %437 = vmatpush.msra.mxu0 %v248
    %438 = vmatpush.msra.mxu0 %v240
    %439 = vmatpush.msra.mxu0 %v232
    %440 = vmatpush.msra.mxu0 %v224
    %441 = vmatpush.msra.mxu0 %v216
    %442 = vmatpush.msra.mxu0 %v208
    %443 = vmatmul.f32.gmra.mxu0 %v285
    %v444 = vpop.f32.mrf.mxu0
    %v445 = vadd.f32 %v274, %v444
    %446 = vdwg.mxu0
    %vm447 = vcmask 261120
    %v449 = vsel %vm447, 0.0, 0
    %451 = vmatpush.msra.mxu0 0.0
    %452 = vmatpush.msra.mxu0 0.0
    %453 = vmatpush.msra.mxu0 0.0
    %454 = vmatpush.msra.mxu0 0.0
    %455 = vmatpush.msra.mxu0 0.0
    %456 = vmatpush.msra.mxu0 0.0
    %457 = vmatpush.msra.mxu0 0.0
    %458 = vmatpush.msra.mxu0 0.0
    %459 = vmatpush.msra.mxu0 0.0
    %460 = vmatpush.msra.mxu0 0.0
    %461 = vmatpush.msra.mxu0 0.0
    %462 = vmatpush.msra.mxu0 0.0
    %463 = vmatpush.msra.mxu0 %v196
    %464 = vmatpush.msra.mxu0 %v195
    %465 = vmatpush.msra.mxu0 %v194
    %466 = vmatpush.msra.mxu0 %v193
    %467 = vmatmul.f32.gmra.mxu0 %v449
    %v468 = vpop.f32.mrf.mxu0
    %v469 = vadd.f32 0.0, %v468
    %470 = vdwg.mxu0
    %v471 = vadd.f32 %v305, %v469
    %v472 = vxor.u32 %v471, 2147483648
    %v473 = vmul.f32 %v472, 1.442695
    %v474 = vpow.pop %v473
    %v475 = vadd.f32 %v474, 1.0
    %v476 = vrcp.pop %v475
    %v477 = vmul.f32 %v475, %v476
    %v478 = vsub.f32 1.0, %v477
    %v479 = vmul.f32 %v476, %v478
    %v480 = vadd.f32 %v476, %v479
    %vm481 = vweird.f32 %v475
    %vm482 = vweird.f32 %v476
    %vm483 = vmor %vm481, %vm482
    %v484 = vsel %vm483, %v476, %v480
    %v485 = vand.u32 2147483647, %v475
    %vm486 = vcmp.eq.f32.partialorder %v485, 8.507059e+37
    %v487 = vand.u32 %v475, 2147483648
    %v488 = vor.u32 1.1754944e-38, %v487
    %v489 = vsel %vm486, %v488, %v484
    %v490 = vmul.f32 1.0, %v489
    %v491 = vtanh.pop %v471
    %v492 = vmul.f32 %v490, 0.0
    %494 = vrot.lane.b32.xlu0 %v491, 64
    %v495 = vpop.permute.xlu0 %494
    %v497 = vmul.f32 %v490, %v495
    %499 = vrot.lane.b32.xlu0 %v497, 32
    %v500 = vpop.permute.xlu0 %499
    %v502 = vadd.f32 %v492, %v500
    %v503 = vtanh.pop %v502
    %505 = vrot.lane.b32.xlu0 %v503, 64
    %v506 = vpop.permute.xlu0 %505
    %v508 = vmul.f32 %v490, %v506
    %510 = vrot.lane.b32.xlu0 %v508, 32
    %v511 = vpop.permute.xlu0 %510
    %v512 = vsel %vm447, %v511, 0
    %514 = vmatpush.msra.mxu0 0.0
    %515 = vmatpush.msra.mxu0 0.0
    %516 = vmatpush.msra.mxu0 0.0
    %517 = vmatpush.msra.mxu0 0.0
    %518 = vmatpush.msra.mxu0 0.0
    %519 = vmatpush.msra.mxu0 0.0
    %520 = vmatpush.msra.mxu0 0.0
    %521 = vmatpush.msra.mxu0 0.0
    %522 = vmatpush.msra.mxu0 0.0
    %523 = vmatpush.msra.mxu0 0.0
    %524 = vmatpush.msra.mxu0 0.0
    %525 = vmatpush.msra.mxu0 0.0
    %526 = vmatpush.msra.mxu0 %v196
    %527 = vmatpush.msra.mxu0 %v195
    %528 = vmatpush.msra.mxu0 %v194
    %529 = vmatpush.msra.mxu0 %v193
    %530 = vmatmul.f32.gmra.mxu0 %v512
    %v531 = vpop.f32.mrf.mxu0
    %v532 = vadd.f32 0.0, %v531
    %533 = vdwg.mxu0
    %v534 = vadd.f32 %v325, %v532
    %v535 = vxor.u32 %v534, 2147483648
    %v536 = vmul.f32 %v535, 1.442695
    %v537 = vpow.pop %v536
    %v538 = vadd.f32 %v537, 1.0
    %v539 = vrcp.pop %v538
    %v540 = vmul.f32 %v538, %v539
    %v541 = vsub.f32 1.0, %v540
    %v542 = vmul.f32 %v539, %v541
    %v543 = vadd.f32 %v539, %v542
    %vm544 = vweird.f32 %v538
    %vm545 = vweird.f32 %v539
    %vm546 = vmor %vm544, %vm545
    %v547 = vsel %vm546, %v539, %v543
    %v548 = vand.u32 2147483647, %v538
    %vm549 = vcmp.eq.f32.partialorder %v548, 8.507059e+37
    %v550 = vand.u32 %v538, 2147483648
    %v551 = vor.u32 1.1754944e-38, %v550
    %v552 = vsel %vm549, %v551, %v547
    %v553 = vmul.f32 1.0, %v552
    %v554 = vtanh.pop %v534
    %v555 = vmul.f32 %v553, %v502
    %557 = vrot.lane.b32.xlu0 %v554, 64
    %v558 = vpop.permute.xlu0 %557
    %v560 = vmul.f32 %v553, %v558
    %562 = vrot.lane.b32.xlu0 %v560, 32
    %v563 = vpop.permute.xlu0 %562
    %v565 = vadd.f32 %v555, %v563
    %v566 = vtanh.pop %v565
    %568 = vrot.lane.b32.xlu0 %v566, 64
    %v569 = vpop.permute.xlu0 %568
    %v571 = vmul.f32 %v553, %v569
    %573 = vrot.lane.b32.xlu0 %v571, 32
    %v574 = vpop.permute.xlu0 %573
    %v575 = vsel %vm447, %v574, 0
    %577 = vmatpush.msra.mxu0 0.0
    %578 = vmatpush.msra.mxu0 0.0
    %579 = vmatpush.msra.mxu0 0.0
    %580 = vmatpush.msra.mxu0 0.0
    %581 = vmatpush.msra.mxu0 0.0
    %582 = vmatpush.msra.mxu0 0.0
    %583 = vmatpush.msra.mxu0 0.0
    %584 = vmatpush.msra.mxu0 0.0
    %585 = vmatpush.msra.mxu0 0.0
    %586 = vmatpush.msra.mxu0 0.0
    %587 = vmatpush.msra.mxu0 0.0
    %588 = vmatpush.msra.mxu0 0.0
    %589 = vmatpush.msra.mxu0 %v196
    %590 = vmatpush.msra.mxu0 %v195
    %591 = vmatpush.msra.mxu0 %v194
    %592 = vmatpush.msra.mxu0 %v193
    %593 = vmatmul.f32.gmra.mxu0 %v575
    %v594 = vpop.f32.mrf.mxu0
    %v595 = vadd.f32 0.0, %v594
    %596 = vdwg.mxu0
    %v597 = vadd.f32 %v345, %v595
    %v598 = vxor.u32 %v597, 2147483648
    %v599 = vmul.f32 %v598, 1.442695
    %v600 = vpow.pop %v599
    %v601 = vadd.f32 %v600, 1.0
    %v602 = vrcp.pop %v601
    %v603 = vmul.f32 %v601, %v602
    %v604 = vsub.f32 1.0, %v603
    %v605 = vmul.f32 %v602, %v604
    %v606 = vadd.f32 %v602, %v605
    %vm607 = vweird.f32 %v601
    %vm608 = vweird.f32 %v602
    %vm609 = vmor %vm607, %vm608
    %v610 = vsel %vm609, %v602, %v606
    %v611 = vand.u32 2147483647, %v601
    %vm612 = vcmp.eq.f32.partialorder %v611, 8.507059e+37
    %v613 = vand.u32 %v601, 2147483648
    %v614 = vor.u32 1.1754944e-38, %v613
    %v615 = vsel %vm612, %v614, %v610
    %v616 = vmul.f32 1.0, %v615
    %v617 = vtanh.pop %v597
    %v618 = vmul.f32 %v616, %v565
    %620 = vrot.lane.b32.xlu0 %v617, 64
    %v621 = vpop.permute.xlu0 %620
    %v623 = vmul.f32 %v616, %v621
    %625 = vrot.lane.b32.xlu0 %v623, 32
    %v626 = vpop.permute.xlu0 %625
    %v628 = vadd.f32 %v618, %v626
    %v629 = vtanh.pop %v628
    %631 = vrot.lane.b32.xlu0 %v629, 64
    %v632 = vpop.permute.xlu0 %631
    %v634 = vmul.f32 %v616, %v632
    %636 = vrot.lane.b32.xlu0 %v634, 32
    %v637 = vpop.permute.xlu0 %636
    %v638 = vsel %vm447, %v637, 0
    %640 = vmatpush.msra.mxu0 0.0
    %641 = vmatpush.msra.mxu0 0.0
    %642 = vmatpush.msra.mxu0 0.0
    %643 = vmatpush.msra.mxu0 0.0
    %644 = vmatpush.msra.mxu0 0.0
    %645 = vmatpush.msra.mxu0 0.0
    %646 = vmatpush.msra.mxu0 0.0
    %647 = vmatpush.msra.mxu0 0.0
    %648 = vmatpush.msra.mxu0 0.0
    %649 = vmatpush.msra.mxu0 0.0
    %650 = vmatpush.msra.mxu0 0.0
    %651 = vmatpush.msra.mxu0 0.0
    %652 = vmatpush.msra.mxu0 %v196
    %653 = vmatpush.msra.mxu0 %v195
    %654 = vmatpush.msra.mxu0 %v194
    %655 = vmatpush.msra.mxu0 %v193
    %656 = vmatmul.f32.gmra.mxu0 %v638
    %v657 = vpop.f32.mrf.mxu0
    %v658 = vadd.f32 0.0, %v657
    %659 = vdwg.mxu0
    %v660 = vadd.f32 %v365, %v658
    %v661 = vxor.u32 %v660, 2147483648
    %v662 = vmul.f32 %v661, 1.442695
    %v663 = vpow.pop %v662
    %v664 = vadd.f32 %v663, 1.0
    %v665 = vrcp.pop %v664
    %v666 = vmul.f32 %v664, %v665
    %v667 = vsub.f32 1.0, %v666
    %v668 = vmul.f32 %v665, %v667
    %v669 = vadd.f32 %v665, %v668
    %vm670 = vweird.f32 %v664
    %vm671 = vweird.f32 %v665
    %vm672 = vmor %vm670, %vm671
    %v673 = vsel %vm672, %v665, %v669
    %v674 = vand.u32 2147483647, %v664
    %vm675 = vcmp.eq.f32.partialorder %v674, 8.507059e+37
    %v676 = vand.u32 %v664, 2147483648
    %v677 = vor.u32 1.1754944e-38, %v676
    %v678 = vsel %vm675, %v677, %v673
    %v679 = vmul.f32 1.0, %v678
    %v680 = vtanh.pop %v660
    %v681 = vmul.f32 %v679, %v628
    %683 = vrot.lane.b32.xlu0 %v680, 64
    %v684 = vpop.permute.xlu0 %683
    %v686 = vmul.f32 %v679, %v684
    %688 = vrot.lane.b32.xlu0 %v686, 32
    %v689 = vpop.permute.xlu0 %688
    %v691 = vadd.f32 %v681, %v689
    %v692 = vtanh.pop %v691
    %694 = vrot.lane.b32.xlu0 %v692, 64
    %v695 = vpop.permute.xlu0 %694
    %v697 = vmul.f32 %v679, %v695
    %699 = vrot.lane.b32.xlu0 %v697, 32
    %v700 = vpop.permute.xlu0 %699
    %v701 = vsel %vm447, %v700, 0
    %703 = vmatpush.msra.mxu0 0.0
    %704 = vmatpush.msra.mxu0 0.0
    %705 = vmatpush.msra.mxu0 0.0
    %706 = vmatpush.msra.mxu0 0.0
    %707 = vmatpush.msra.mxu0 0.0
    %708 = vmatpush.msra.mxu0 0.0
    %709 = vmatpush.msra.mxu0 0.0
    %710 = vmatpush.msra.mxu0 0.0
    %711 = vmatpush.msra.mxu0 0.0
    %712 = vmatpush.msra.mxu0 0.0
    %713 = vmatpush.msra.mxu0 0.0
    %714 = vmatpush.msra.mxu0 0.0
    %715 = vmatpush.msra.mxu0 %v196
    %716 = vmatpush.msra.mxu0 %v195
    %717 = vmatpush.msra.mxu0 %v194
    %718 = vmatpush.msra.mxu0 %v193
    %719 = vmatmul.f32.gmra.mxu0 %v701
    %v720 = vpop.f32.mrf.mxu0
    %v721 = vadd.f32 0.0, %v720
    %722 = vdwg.mxu0
    %v723 = vadd.f32 %v385, %v721
    %v724 = vxor.u32 %v723, 2147483648
    %v725 = vmul.f32 %v724, 1.442695
    %v726 = vpow.pop %v725
    %v727 = vadd.f32 %v726, 1.0
    %v728 = vrcp.pop %v727
    %v729 = vmul.f32 %v727, %v728
    %v730 = vsub.f32 1.0, %v729
    %v731 = vmul.f32 %v728, %v730
    %v732 = vadd.f32 %v728, %v731
    %vm733 = vweird.f32 %v727
    %vm734 = vweird.f32 %v728
    %vm735 = vmor %vm733, %vm734
    %v736 = vsel %vm735, %v728, %v732
    %v737 = vand.u32 2147483647, %v727
    %vm738 = vcmp.eq.f32.partialorder %v737, 8.507059e+37
    %v739 = vand.u32 %v727, 2147483648
    %v740 = vor.u32 1.1754944e-38, %v739
    %v741 = vsel %vm738, %v740, %v736
    %v742 = vmul.f32 1.0, %v741
    %v743 = vtanh.pop %v723
    %v744 = vmul.f32 %v742, %v691
    %746 = vrot.lane.b32.xlu0 %v743, 64
    %v747 = vpop.permute.xlu0 %746
    %v749 = vmul.f32 %v742, %v747
    %751 = vrot.lane.b32.xlu0 %v749, 32
    %v752 = vpop.permute.xlu0 %751
    %v754 = vadd.f32 %v744, %v752
    %v755 = vtanh.pop %v754
    %757 = vrot.lane.b32.xlu0 %v755, 64
    %v758 = vpop.permute.xlu0 %757
    %v760 = vmul.f32 %v742, %v758
    %762 = vrot.lane.b32.xlu0 %v760, 32
    %v763 = vpop.permute.xlu0 %762
    %v764 = vsel %vm447, %v763, 0
    %766 = vmatpush.msra.mxu0 0.0
    %767 = vmatpush.msra.mxu0 0.0
    %768 = vmatpush.msra.mxu0 0.0
    %769 = vmatpush.msra.mxu0 0.0
    %770 = vmatpush.msra.mxu0 0.0
    %771 = vmatpush.msra.mxu0 0.0
    %772 = vmatpush.msra.mxu0 0.0
    %773 = vmatpush.msra.mxu0 0.0
    %774 = vmatpush.msra.mxu0 0.0
    %775 = vmatpush.msra.mxu0 0.0
    %776 = vmatpush.msra.mxu0 0.0
    %777 = vmatpush.msra.mxu0 0.0
    %778 = vmatpush.msra.mxu0 %v196
    %779 = vmatpush.msra.mxu0 %v195
    %780 = vmatpush.msra.mxu0 %v194
    %781 = vmatpush.msra.mxu0 %v193
    %782 = vmatmul.f32.gmra.mxu0 %v764
    %v783 = vpop.f32.mrf.mxu0
    %v784 = vadd.f32 0.0, %v783
    %785 = vdwg.mxu0
    %v786 = vadd.f32 %v405, %v784
    %v787 = vxor.u32 %v786, 2147483648
    %v788 = vmul.f32 %v787, 1.442695
    %v789 = vpow.pop %v788
    %v790 = vadd.f32 %v789, 1.0
    %v791 = vrcp.pop %v790
    %v792 = vmul.f32 %v790, %v791
    %v793 = vsub.f32 1.0, %v792
    %v794 = vmul.f32 %v791, %v793
    %v795 = vadd.f32 %v791, %v794
    %vm796 = vweird.f32 %v790
    %vm797 = vweird.f32 %v791
    %vm798 = vmor %vm796, %vm797
    %v799 = vsel %vm798, %v791, %v795
    %v800 = vand.u32 2147483647, %v790
    %vm801 = vcmp.eq.f32.partialorder %v800, 8.507059e+37
    %v802 = vand.u32 %v790, 2147483648
    %v803 = vor.u32 1.1754944e-38, %v802
    %v804 = vsel %vm801, %v803, %v799
    %v805 = vmul.f32 1.0, %v804
    %v806 = vtanh.pop %v786
    %v807 = vmul.f32 %v805, %v754
    %809 = vrot.lane.b32.xlu0 %v806, 64
    %v810 = vpop.permute.xlu0 %809
    %v812 = vmul.f32 %v805, %v810
    %814 = vrot.lane.b32.xlu0 %v812, 32
    %v815 = vpop.permute.xlu0 %814
    %v817 = vadd.f32 %v807, %v815
    %v818 = vtanh.pop %v817
    %820 = vrot.lane.b32.xlu0 %v818, 64
    %v821 = vpop.permute.xlu0 %820
    %v823 = vmul.f32 %v805, %v821
    %825 = vrot.lane.b32.xlu0 %v823, 32
    %v826 = vpop.permute.xlu0 %825
    %v827 = vsel %vm447, %v826, 0
    %829 = vmatpush.msra.mxu0 0.0
    %830 = vmatpush.msra.mxu0 0.0
    %831 = vmatpush.msra.mxu0 0.0
    %832 = vmatpush.msra.mxu0 0.0
    %833 = vmatpush.msra.mxu0 0.0
    %834 = vmatpush.msra.mxu0 0.0
    %835 = vmatpush.msra.mxu0 0.0
    %836 = vmatpush.msra.mxu0 0.0
    %837 = vmatpush.msra.mxu0 0.0
    %838 = vmatpush.msra.mxu0 0.0
    %839 = vmatpush.msra.mxu0 0.0
    %840 = vmatpush.msra.mxu0 0.0
    %841 = vmatpush.msra.mxu0 %v196
    %842 = vmatpush.msra.mxu0 %v195
    %843 = vmatpush.msra.mxu0 %v194
    %844 = vmatpush.msra.mxu0 %v193
    %845 = vmatmul.f32.gmra.mxu0 %v827
    %v846 = vpop.f32.mrf.mxu0
    %v847 = vadd.f32 0.0, %v846
    %848 = vdwg.mxu0
    %v849 = vadd.f32 %v425, %v847
    %v850 = vxor.u32 %v849, 2147483648
    %v851 = vmul.f32 %v850, 1.442695
    %v852 = vpow.pop %v851
    %v853 = vadd.f32 %v852, 1.0
    %v854 = vrcp.pop %v853
    %v855 = vmul.f32 %v853, %v854
    %v856 = vsub.f32 1.0, %v855
    %v857 = vmul.f32 %v854, %v856
    %v858 = vadd.f32 %v854, %v857
    %vm859 = vweird.f32 %v853
    %vm860 = vweird.f32 %v854
    %vm861 = vmor %vm859, %vm860
    %v862 = vsel %vm861, %v854, %v858
    %v863 = vand.u32 2147483647, %v853
    %vm864 = vcmp.eq.f32.partialorder %v863, 8.507059e+37
    %v865 = vand.u32 %v853, 2147483648
    %v866 = vor.u32 1.1754944e-38, %v865
    %v867 = vsel %vm864, %v866, %v862
    %v868 = vmul.f32 1.0, %v867
    %v869 = vtanh.pop %v849
    %v870 = vmul.f32 %v868, %v817
    %872 = vrot.lane.b32.xlu0 %v869, 64
    %v873 = vpop.permute.xlu0 %872
    %v875 = vmul.f32 %v868, %v873
    %877 = vrot.lane.b32.xlu0 %v875, 32
    %v878 = vpop.permute.xlu0 %877
    %v880 = vadd.f32 %v870, %v878
    %v881 = vtanh.pop %v880
    %883 = vrot.lane.b32.xlu0 %v881, 64
    %v884 = vpop.permute.xlu0 %883
    %v886 = vmul.f32 %v868, %v884
    %888 = vrot.lane.b32.xlu0 %v886, 32
    %v889 = vpop.permute.xlu0 %888
    %v890 = vsel %vm447, %v889, 0
    %892 = vmatpush.msra.mxu0 0.0
    %893 = vmatpush.msra.mxu0 0.0
    %894 = vmatpush.msra.mxu0 0.0
    %895 = vmatpush.msra.mxu0 0.0
    %896 = vmatpush.msra.mxu0 0.0
    %897 = vmatpush.msra.mxu0 0.0
    %898 = vmatpush.msra.mxu0 0.0
    %899 = vmatpush.msra.mxu0 0.0
    %900 = vmatpush.msra.mxu0 0.0
    %901 = vmatpush.msra.mxu0 0.0
    %902 = vmatpush.msra.mxu0 0.0
    %903 = vmatpush.msra.mxu0 0.0
    %904 = vmatpush.msra.mxu0 %v196
    %905 = vmatpush.msra.mxu0 %v195
    %906 = vmatpush.msra.mxu0 %v194
    %907 = vmatpush.msra.mxu0 %v193
    %908 = vmatmul.f32.gmra.mxu0 %v890
    %v909 = vpop.f32.mrf.mxu0
    %v910 = vadd.f32 0.0, %v909
    %911 = vdwg.mxu0
    %v912 = vadd.f32 %v445, %v910
    %v913 = vxor.u32 %v912, 2147483648
    %v914 = vmul.f32 %v913, 1.442695
    %v915 = vpow.pop %v914
    %v916 = vadd.f32 %v915, 1.0
    %v917 = vrcp.pop %v916
    %v918 = vmul.f32 %v916, %v917
    %v919 = vsub.f32 1.0, %v918
    %v920 = vmul.f32 %v917, %v919
    %v921 = vadd.f32 %v917, %v920
    %vm922 = vweird.f32 %v916
    %vm923 = vweird.f32 %v917
    %vm924 = vmor %vm922, %vm923
    %v925 = vsel %vm924, %v917, %v921
    %v926 = vand.u32 2147483647, %v916
    %vm927 = vcmp.eq.f32.partialorder %v926, 8.507059e+37
    %v928 = vand.u32 %v916, 2147483648
    %v929 = vor.u32 1.1754944e-38, %v928
    %v930 = vsel %vm927, %v929, %v925
    %v931 = vmul.f32 1.0, %v930
    %v932 = vtanh.pop %v912
    %v933 = vmul.f32 %v931, %v880
    %935 = vrot.lane.b32.xlu0 %v932, 64
    %v936 = vpop.permute.xlu0 %935
    %v938 = vmul.f32 %v931, %v936
    %940 = vrot.lane.b32.xlu0 %v938, 32
    %v941 = vpop.permute.xlu0 %940
    %v943 = vadd.f32 %v933, %v941
    %v944 = vtanh.pop %v943
    %946 = vrot.lane.b32.xlu0 %v944, 64
    %v947 = vpop.permute.xlu0 %946
    %v949 = vmul.f32 %v931, %v947
    %951 = vrot.lane.b32.xlu0 %v571, 64
    %v952 = vpop.permute.xlu0 %951
    %954 = vrot.lane.b32.xlu0 %v634, 96
    %v955 = vpop.permute.xlu0 %954
    %958 = vrot.lane.b32.xlu0 %v823, 64
    %v959 = vpop.permute.xlu0 %958
    %961 = vrot.lane.b32.xlu0 %v886, 96
    %v962 = vpop.permute.xlu0 %961
    %v964 = vsel %vm447, %v511, %v952
    %v965 = vsel %vm283, %v964, %v955
    %vm966 = vcmask 785408
    %v967 = vsel %vm966, %v965, %v697
    %v968 = vsel %vm447, %v763, %v959
    %v969 = vsel %vm283, %v968, %v962
    %v970 = vsel %vm966, %v969, %v949
    %v971 = vmax.f32 %v967, 0.0
    %v972 = vmax.f32 %v970, 0.0
    %v973 = vld [vmem:[#allocation10] sm:$0xff]
    %v974 = vld [vmem:[#allocation10 + $0x8] sm:$0xff]
    %v975 = vld [vmem:[#allocation10 + $0x10] sm:$0xff]
    %v976 = vld [vmem:[#allocation10 + $0x18] sm:$0xff]
    %v977 = vld [vmem:[#allocation10 + $0x20] sm:$0xff]
    %v978 = vld [vmem:[#allocation10 + $0x28] sm:$0xff]
    %v979 = vld [vmem:[#allocation10 + $0x30] sm:$0xff]
    %v980 = vld [vmem:[#allocation10 + $0x38] sm:$0xff]
    %v981 = vld [vmem:[#allocation10 + $0x40] sm:$0xff]
    %v982 = vld [vmem:[#allocation10 + $0x48] sm:$0xff]
    %v983 = vld [vmem:[#allocation10 + $0x50] sm:$0xff]
    %v984 = vld [vmem:[#allocation10 + $0x58] sm:$0xff]
    %v985 = vld [vmem:[#allocation10 + $0x60] sm:$0xff]
    %v986 = vld [vmem:[#allocation10 + $0x68] sm:$0xff]
    %v987 = vld [vmem:[#allocation10 + $0x70] sm:$0xff]
    %v988 = vld [vmem:[#allocation10 + $0x78] sm:$0xff]
    %v989 = vld [vmem:[#allocation10 + $0x80] sm:$0xff]
    %v990 = vld [vmem:[#allocation10 + $0x88] sm:$0xff]
    %v991 = vld [vmem:[#allocation10 + $0x90] sm:$0xff]
    %v992 = vld [vmem:[#allocation10 + $0x98] sm:$0xff]
    %v993 = vld [vmem:[#allocation10 + $0xa0] sm:$0xff]
    %v994 = vld [vmem:[#allocation10 + $0xa8] sm:$0xff]
    %v995 = vld [vmem:[#allocation10 + $0xb0] sm:$0xff]
    %v996 = vld [vmem:[#allocation10 + $0xb8] sm:$0xff]
    %v997 = vld [vmem:[#allocation10 + $0xc0] sm:$0xff]
    %v998 = vld [vmem:[#allocation10 + $0xc8] sm:$0xff]
    %v999 = vld [vmem:[#allocation10 + $0xd0] sm:$0xff]
    %v1000 = vld [vmem:[#allocation10 + $0xd8] sm:$0xff]
    %v1001 = vld [vmem:[#allocation10 + $0xe0] sm:$0xff]
    %v1002 = vld [vmem:[#allocation10 + $0xe8] sm:$0xff]
    %v1003 = vld [vmem:[#allocation10 + $0xf0] sm:$0xff]
    %v1004 = vld [vmem:[#allocation10 + $0xf8] sm:$0xff]
    %v1005 = vld [vmem:[%s6] sm:$0x1]
    %v1007 = vperm.slane %v1005, 0
    %1009 = vmatpush.msra.mxu0 %v988
    %1010 = vmatpush.msra.mxu0 %v987
    %1011 = vmatpush.msra.mxu0 %v986
    %1012 = vmatpush.msra.mxu0 %v985
    %1013 = vmatpush.msra.mxu0 %v984
    %1014 = vmatpush.msra.mxu0 %v983
    %1015 = vmatpush.msra.mxu0 %v982
    %1016 = vmatpush.msra.mxu0 %v981
    %1017 = vmatpush.msra.mxu0 %v980
    %1018 = vmatpush.msra.mxu0 %v979
    %1019 = vmatpush.msra.mxu0 %v978
    %1020 = vmatpush.msra.mxu0 %v977
    %1021 = vmatpush.msra.mxu0 %v976
    %1022 = vmatpush.msra.mxu0 %v975
    %1023 = vmatpush.msra.mxu0 %v974
    %1024 = vmatpush.msra.mxu0 %v973
    %1025 = vmatmul.f32.gmra.mxu0 %v971
    %v1026 = vpop.f32.mrf.mxu0
    %v1027 = vadd.f32 %v1007, %v1026
    %1028 = vdwg.mxu0
    %1029 = vmatpush.msra.mxu0 %v1004
    %1030 = vmatpush.msra.mxu0 %v1003
    %1031 = vmatpush.msra.mxu0 %v1002
    %1032 = vmatpush.msra.mxu0 %v1001
    %1033 = vmatpush.msra.mxu0 %v1000
    %1034 = vmatpush.msra.mxu0 %v999
    %1035 = vmatpush.msra.mxu0 %v998
    %1036 = vmatpush.msra.mxu0 %v997
    %1037 = vmatpush.msra.mxu0 %v996
    %1038 = vmatpush.msra.mxu0 %v995
    %1039 = vmatpush.msra.mxu0 %v994
    %1040 = vmatpush.msra.mxu0 %v993
    %1041 = vmatpush.msra.mxu0 %v992
    %1042 = vmatpush.msra.mxu0 %v991
    %1043 = vmatpush.msra.mxu0 %v990
    %1044 = vmatpush.msra.mxu0 %v989
    %1045 = vmatmul.f32.gmra.mxu0 %v972
    %v1046 = vpop.f32.mrf.mxu0
    %v1047 = vadd.f32 %v1027, %v1046
    %1048 = vdwg.mxu0
    %v1049 = vsub.f32 %v192, %v1047
    %v1050 = vld [vmem:[#allocation11] sm:$0xff]
    %v1051 = vld [vmem:[#allocation11 + $0x8] sm:$0xff]
    %v1052 = vld [vmem:[#allocation11 + $0x10] sm:$0xff]
    %v1053 = vld [vmem:[#allocation11 + $0x18] sm:$0xff]
    %v1054 = vld [vmem:[#allocation11 + $0x20] sm:$0xff]
    %v1055 = vld [vmem:[#allocation11 + $0x28] sm:$0xff]
    %v1056 = vld [vmem:[#allocation11 + $0x30] sm:$0xff]
    %v1057 = vld [vmem:[#allocation11 + $0x38] sm:$0xff]
    %v1058 = vld [vmem:[#allocation11 + $0x40] sm:$0xff]
    %v1059 = vld [vmem:[#allocation11 + $0x48] sm:$0xff]
    %v1060 = vld [vmem:[#allocation11 + $0x50] sm:$0xff]
    %v1061 = vld [vmem:[#allocation11 + $0x58] sm:$0xff]
    %v1062 = vld [vmem:[#allocation11 + $0x60] sm:$0xff]
    %v1063 = vld [vmem:[#allocation11 + $0x68] sm:$0xff]
    %v1064 = vld [vmem:[#allocation11 + $0x70] sm:$0xff]
    %v1065 = vld [vmem:[#allocation11 + $0x78] sm:$0xff]
    %v1066 = vld [vmem:[#allocation13] sm:$0x3]
    %v1068 = vperm.slane %v1066, 0
    %v1069 = vperm.slane %v1066, 1
    %v1073 = vsel %vm283, %v1049, 0
    %1075 = vmatpush.msra.mxu0 0.0
    %1076 = vmatpush.msra.mxu0 0.0
    %1077 = vmatpush.msra.mxu0 0.0
    %1078 = vmatpush.msra.mxu0 0.0
    %1079 = vmatpush.msra.mxu0 0.0
    %1080 = vmatpush.msra.mxu0 0.0
    %1081 = vmatpush.msra.mxu0 0.0
    %1082 = vmatpush.msra.mxu0 0.0
    %1083 = vmatpush.msra.mxu0 %v1064
    %1084 = vmatpush.msra.mxu0 %v1062
    %1085 = vmatpush.msra.mxu0 %v1060
    %1086 = vmatpush.msra.mxu0 %v1058
    %1087 = vmatpush.msra.mxu0 %v1056
    %1088 = vmatpush.msra.mxu0 %v1054
    %1089 = vmatpush.msra.mxu0 %v1052
    %1090 = vmatpush.msra.mxu0 %v1050
    %1091 = vmatmul.f32.gmra.mxu0 %v1073
    %v1092 = vpop.f32.mrf.mxu0
    %v1093 = vadd.f32 %v1068, %v1092
    %1094 = vdwg.mxu0
    %1095 = vmatpush.msra.mxu0 0.0
    %1096 = vmatpush.msra.mxu0 0.0
    %1097 = vmatpush.msra.mxu0 0.0
    %1098 = vmatpush.msra.mxu0 0.0
    %1099 = vmatpush.msra.mxu0 0.0
    %1100 = vmatpush.msra.mxu0 0.0
    %1101 = vmatpush.msra.mxu0 0.0
    %1102 = vmatpush.msra.mxu0 0.0
    %1103 = vmatpush.msra.mxu0 %v1065
    %1104 = vmatpush.msra.mxu0 %v1063
    %1105 = vmatpush.msra.mxu0 %v1061
    %1106 = vmatpush.msra.mxu0 %v1059
    %1107 = vmatpush.msra.mxu0 %v1057
    %1108 = vmatpush.msra.mxu0 %v1055
    %1109 = vmatpush.msra.mxu0 %v1053
    %1110 = vmatpush.msra.mxu0 %v1051
    %1111 = vmatmul.f32.gmra.mxu0 %v1073
    %v1112 = vpop.f32.mrf.mxu0
    %v1113 = vadd.f32 %v1069, %v1112
    %1114 = vdwg.mxu0
    %1115 = vmatpush.msra.mxu0 0.0
    %1116 = vmatpush.msra.mxu0 0.0
    %1117 = vmatpush.msra.mxu0 0.0
    %1118 = vmatpush.msra.mxu0 0.0
    %1119 = vmatpush.msra.mxu0 0.0
    %1120 = vmatpush.msra.mxu0 0.0
    %1121 = vmatpush.msra.mxu0 0.0
    %1122 = vmatpush.msra.mxu0 0.0
    %1123 = vmatpush.msra.mxu0 0.0
    %1124 = vmatpush.msra.mxu0 0.0
    %1125 = vmatpush.msra.mxu0 0.0
    %1126 = vmatpush.msra.mxu0 0.0
    %1127 = vmatpush.msra.mxu0 %v200
    %1128 = vmatpush.msra.mxu0 %v199
    %1129 = vmatpush.msra.mxu0 %v198
    %1130 = vmatpush.msra.mxu0 %v197
    %1131 = vmatmul.f32.gmra.mxu0 %v449
    %v1132 = vpop.f32.mrf.mxu0
    %v1133 = vadd.f32 0.0, %v1132
    %1134 = vdwg.mxu0
    %v1135 = vadd.f32 %v1093, %v1133
    %v1136 = vxor.u32 %v1135, 2147483648
    %v1137 = vmul.f32 %v1136, 1.442695
    %v1138 = vpow.pop %v1137
    %v1139 = vadd.f32 %v1138, 1.0
    %v1140 = vrcp.pop %v1139
    %v1141 = vmul.f32 %v1139, %v1140
    %v1142 = vsub.f32 1.0, %v1141
    %v1143 = vmul.f32 %v1140, %v1142
    %v1144 = vadd.f32 %v1140, %v1143
    %vm1145 = vweird.f32 %v1139
    %vm1146 = vweird.f32 %v1140
    %vm1147 = vmor %vm1145, %vm1146
    %v1148 = vsel %vm1147, %v1140, %v1144
    %v1149 = vand.u32 2147483647, %v1139
    %vm1150 = vcmp.eq.f32.partialorder %v1149, 8.507059e+37
    %v1151 = vand.u32 %v1139, 2147483648
    %v1152 = vor.u32 1.1754944e-38, %v1151
    %v1153 = vsel %vm1150, %v1152, %v1148
    %v1154 = vmul.f32 1.0, %v1153
    %v1155 = vtanh.pop %v1135
    %v1156 = vmul.f32 %v1154, 0.0
    %1158 = vrot.lane.b32.xlu0 %v1155, 64
    %v1159 = vpop.permute.xlu0 %1158
    %v1161 = vmul.f32 %v1154, %v1159
    %1163 = vrot.lane.b32.xlu0 %v1161, 32
    %v1164 = vpop.permute.xlu0 %1163
    %v1166 = vadd.f32 %v1156, %v1164
    %v1167 = vtanh.pop %v1166
    %1169 = vrot.lane.b32.xlu0 %v1167, 64
    %v1170 = vpop.permute.xlu0 %1169
    %v1172 = vmul.f32 %v1154, %v1170
    %1174 = vrot.lane.b32.xlu0 %v1172, 32
    %v1175 = vpop.permute.xlu0 %1174
    %v1176 = vsel %vm447, %v1175, 0
    %1178 = vmatpush.msra.mxu0 0.0
    %1179 = vmatpush.msra.mxu0 0.0
    %1180 = vmatpush.msra.mxu0 0.0
    %1181 = vmatpush.msra.mxu0 0.0
    %1182 = vmatpush.msra.mxu0 0.0
    %1183 = vmatpush.msra.mxu0 0.0
    %1184 = vmatpush.msra.mxu0 0.0
    %1185 = vmatpush.msra.mxu0 0.0
    %1186 = vmatpush.msra.mxu0 0.0
    %1187 = vmatpush.msra.mxu0 0.0
    %1188 = vmatpush.msra.mxu0 0.0
    %1189 = vmatpush.msra.mxu0 0.0
    %1190 = vmatpush.msra.mxu0 %v200
    %1191 = vmatpush.msra.mxu0 %v199
    %1192 = vmatpush.msra.mxu0 %v198
    %1193 = vmatpush.msra.mxu0 %v197
    %1194 = vmatmul.f32.gmra.mxu0 %v1176
    %v1195 = vpop.f32.mrf.mxu0
    %v1196 = vadd.f32 0.0, %v1195
    %1197 = vdwg.mxu0
    %v1198 = vadd.f32 %v1113, %v1196
    %v1199 = vxor.u32 %v1198, 2147483648
    %v1200 = vmul.f32 %v1199, 1.442695
    %v1201 = vpow.pop %v1200
    %v1202 = vadd.f32 %v1201, 1.0
    %v1203 = vrcp.pop %v1202
    %v1204 = vmul.f32 %v1202, %v1203
    %v1205 = vsub.f32 1.0, %v1204
    %v1206 = vmul.f32 %v1203, %v1205
    %v1207 = vadd.f32 %v1203, %v1206
    %vm1208 = vweird.f32 %v1202
    %vm1209 = vweird.f32 %v1203
    %vm1210 = vmor %vm1208, %vm1209
    %v1211 = vsel %vm1210, %v1203, %v1207
    %v1212 = vand.u32 2147483647, %v1202
    %vm1213 = vcmp.eq.f32.partialorder %v1212, 8.507059e+37
    %v1214 = vand.u32 %v1202, 2147483648
    %v1215 = vor.u32 1.1754944e-38, %v1214
    %v1216 = vsel %vm1213, %v1215, %v1211
    %v1217 = vmul.f32 1.0, %v1216
    %v1218 = vtanh.pop %v1198
    %v1219 = vmul.f32 %v1217, %v1166
    %1221 = vrot.lane.b32.xlu0 %v1218, 64
    %v1222 = vpop.permute.xlu0 %1221
    %v1224 = vmul.f32 %v1217, %v1222
    %1226 = vrot.lane.b32.xlu0 %v1224, 32
    %v1227 = vpop.permute.xlu0 %1226
    %v1229 = vadd.f32 %v1219, %v1227
    %v1230 = vtanh.pop %v1229
    %1232 = vrot.lane.b32.xlu0 %v1230, 64
    %v1233 = vpop.permute.xlu0 %1232
    %v1235 = vmul.f32 %v1217, %v1233
    %1238 = vrot.lane.b32.xlu0 %v1235, 64
    %v1239 = vpop.permute.xlu0 %1238
    %v1241 = vsel %vm447, %v1175, %v1239
    %v1242 = vmax.f32 %v1241, 0.0
    %v1243 = vld [vmem:[#allocation16] sm:$0xff]
    %v1244 = vld [vmem:[#allocation16 + $0x8] sm:$0xff]
    %v1245 = vld [vmem:[#allocation16 + $0x10] sm:$0xff]
    %v1246 = vld [vmem:[#allocation16 + $0x18] sm:$0xff]
    %v1247 = vld [vmem:[#allocation16 + $0x20] sm:$0xff]
    %v1248 = vld [vmem:[#allocation16 + $0x28] sm:$0xff]
    %v1249 = vld [vmem:[#allocation16 + $0x30] sm:$0xff]
    %v1250 = vld [vmem:[#allocation16 + $0x38] sm:$0xff]
    %v1251 = vld [vmem:[#allocation17] sm:$0x1]
    %v1253 = vperm.slane %v1251, 0
    %v1256 = vsel %vm283, %v1242, 0
    %1258 = vmatpush.msra.mxu0 0.0
    %1259 = vmatpush.msra.mxu0 0.0
    %1260 = vmatpush.msra.mxu0 0.0
    %1261 = vmatpush.msra.mxu0 0.0
    %1262 = vmatpush.msra.mxu0 0.0
    %1263 = vmatpush.msra.mxu0 0.0
    %1264 = vmatpush.msra.mxu0 0.0
    %1265 = vmatpush.msra.mxu0 0.0
    %1266 = vmatpush.msra.mxu0 %v1250
    %1267 = vmatpush.msra.mxu0 %v1249
    %1268 = vmatpush.msra.mxu0 %v1248
    %1269 = vmatpush.msra.mxu0 %v1247
    %1270 = vmatpush.msra.mxu0 %v1246
    %1271 = vmatpush.msra.mxu0 %v1245
    %1272 = vmatpush.msra.mxu0 %v1244
    %1273 = vmatpush.msra.mxu0 %v1243
    %1274 = vmatmul.f32.gmra.mxu0 %v1256
    %v1275 = vpop.f32.mrf.mxu0
    %v1276 = vadd.f32 %v1253, %v1275
    %1277 = vdwg.mxu0
    %v1278 = vld [vmem:[#allocation7] sm:$0xff]
    %v1279 = vld [vmem:[#allocation7 + $0x8] sm:$0xff]
    %vm1280 = vcmask 64512
    %v1282 = vsel %vm1280, %v1276, 0
    %1284 = vmatpush.msra.mxu0 0.0
    %1285 = vmatpush.msra.mxu0 0.0
    %1286 = vmatpush.msra.mxu0 0.0
    %1287 = vmatpush.msra.mxu0 0.0
    %1288 = vmatpush.msra.mxu0 0.0
    %1289 = vmatpush.msra.mxu0 0.0
    %1290 = vmatpush.msra.mxu0 0.0
    %1291 = vmatpush.msra.mxu0 0.0
    %1292 = vmatpush.msra.mxu0 0.0
    %1293 = vmatpush.msra.mxu0 0.0
    %1294 = vmatpush.msra.mxu0 0.0
    %1295 = vmatpush.msra.mxu0 0.0
    %1296 = vmatpush.msra.mxu0 0.0
    %1297 = vmatpush.msra.mxu0 0.0
    %1298 = vmatpush.msra.mxu0 0.0
    %1299 = vmatpush.msra.mxu0 %v1278
    %1300 = vmatmul.f32.gmra.mxu0 %v1282
    %v1301 = vpop.f32.mrf.mxu0
    %v1302 = vadd.f32 0.0, %v1301
    %1303 = vdwg.mxu0
    %1304 = vmatpush.msra.mxu0 0.0
    %1305 = vmatpush.msra.mxu0 0.0
    %1306 = vmatpush.msra.mxu0 0.0
    %1307 = vmatpush.msra.mxu0 0.0
    %1308 = vmatpush.msra.mxu0 0.0
    %1309 = vmatpush.msra.mxu0 0.0
    %1310 = vmatpush.msra.mxu0 0.0
    %1311 = vmatpush.msra.mxu0 0.0
    %1312 = vmatpush.msra.mxu0 0.0
    %1313 = vmatpush.msra.mxu0 0.0
    %1314 = vmatpush.msra.mxu0 0.0
    %1315 = vmatpush.msra.mxu0 0.0
    %1316 = vmatpush.msra.mxu0 0.0
    %1317 = vmatpush.msra.mxu0 0.0
    %1318 = vmatpush.msra.mxu0 0.0
    %1319 = vmatpush.msra.mxu0 %v1279
    %1320 = vmatmul.f32.gmra.mxu0 %v1282
    %v1321 = vpop.f32.mrf.mxu0
    %v1322 = vadd.f32 0.0, %v1321
    %1323 = vdwg.mxu0
    %v1324 = vadd.f32 %v305, %v1302
    %v1325 = vadd.f32 %v1324, %v469
    %v1326 = vxor.u32 %v1325, 2147483648
    %v1327 = vmul.f32 %v1326, 1.442695
    %v1328 = vpow.pop %v1327
    %v1329 = vadd.f32 %v1328, 1.0
    %v1330 = vrcp.pop %v1329
    %v1331 = vmul.f32 %v1329, %v1330
    %v1332 = vsub.f32 1.0, %v1331
    %v1333 = vmul.f32 %v1330, %v1332
    %v1334 = vadd.f32 %v1330, %v1333
    %vm1335 = vweird.f32 %v1329
    %vm1336 = vweird.f32 %v1330
    %vm1337 = vmor %vm1335, %vm1336
    %v1338 = vsel %vm1337, %v1330, %v1334
    %v1339 = vand.u32 2147483647, %v1329
    %vm1340 = vcmp.eq.f32.partialorder %v1339, 8.507059e+37
    %v1341 = vand.u32 %v1329, 2147483648
    %v1342 = vor.u32 1.1754944e-38, %v1341
    %v1343 = vsel %vm1340, %v1342, %v1338
    %v1344 = vmul.f32 1.0, %v1343
    %v1345 = vtanh.pop %v1325
    %v1346 = vmul.f32 %v1344, 0.0
    %1348 = vrot.lane.b32.xlu0 %v1345, 64
    %v1349 = vpop.permute.xlu0 %1348
    %v1351 = vmul.f32 %v1344, %v1349
    %1353 = vrot.lane.b32.xlu0 %v1351, 32
    %v1354 = vpop.permute.xlu0 %1353
    %v1356 = vadd.f32 %v1346, %v1354
    %v1357 = vtanh.pop %v1356
    %1359 = vrot.lane.b32.xlu0 %v1357, 64
    %v1360 = vpop.permute.xlu0 %1359
    %v1362 = vmul.f32 %v1344, %v1360
    %v1363 = vadd.f32 %v325, %v1302
    %1365 = vrot.lane.b32.xlu0 %v1362, 32
    %v1366 = vpop.permute.xlu0 %1365
    %v1367 = vsel %vm447, %v1366, 0
    %1369 = vmatpush.msra.mxu0 0.0
    %1370 = vmatpush.msra.mxu0 0.0
    %1371 = vmatpush.msra.mxu0 0.0
    %1372 = vmatpush.msra.mxu0 0.0
    %1373 = vmatpush.msra.mxu0 0.0
    %1374 = vmatpush.msra.mxu0 0.0
    %1375 = vmatpush.msra.mxu0 0.0
    %1376 = vmatpush.msra.mxu0 0.0
    %1377 = vmatpush.msra.mxu0 0.0
    %1378 = vmatpush.msra.mxu0 0.0
    %1379 = vmatpush.msra.mxu0 0.0
    %1380 = vmatpush.msra.mxu0 0.0
    %1381 = vmatpush.msra.mxu0 %v196
    %1382 = vmatpush.msra.mxu0 %v195
    %1383 = vmatpush.msra.mxu0 %v194
    %1384 = vmatpush.msra.mxu0 %v193
    %1385 = vmatmul.f32.gmra.mxu0 %v1367
    %v1386 = vpop.f32.mrf.mxu0
    %v1387 = vadd.f32 0.0, %v1386
    %1388 = vdwg.mxu0
    %v1389 = vadd.f32 %v1363, %v1387
    %v1390 = vxor.u32 %v1389, 2147483648
    %v1391 = vmul.f32 %v1390, 1.442695
    %v1392 = vpow.pop %v1391
    %v1393 = vadd.f32 %v1392, 1.0
    %v1394 = vrcp.pop %v1393
    %v1395 = vmul.f32 %v1393, %v1394
    %v1396 = vsub.f32 1.0, %v1395
    %v1397 = vmul.f32 %v1394, %v1396
    %v1398 = vadd.f32 %v1394, %v1397
    %vm1399 = vweird.f32 %v1393
    %vm1400 = vweird.f32 %v1394
    %vm1401 = vmor %vm1399, %vm1400
    %v1402 = vsel %vm1401, %v1394, %v1398
    %v1403 = vand.u32 2147483647, %v1393
    %vm1404 = vcmp.eq.f32.partialorder %v1403, 8.507059e+37
    %v1405 = vand.u32 %v1393, 2147483648
    %v1406 = vor.u32 1.1754944e-38, %v1405
    %v1407 = vsel %vm1404, %v1406, %v1402
    %v1408 = vmul.f32 1.0, %v1407
    %v1409 = vtanh.pop %v1389
    %v1410 = vmul.f32 %v1408, %v1356
    %1412 = vrot.lane.b32.xlu0 %v1409, 64
    %v1413 = vpop.permute.xlu0 %1412
    %v1415 = vmul.f32 %v1408, %v1413
    %1417 = vrot.lane.b32.xlu0 %v1415, 32
    %v1418 = vpop.permute.xlu0 %1417
    %v1420 = vadd.f32 %v1410, %v1418
    %v1421 = vtanh.pop %v1420
    %1423 = vrot.lane.b32.xlu0 %v1421, 64
    %v1424 = vpop.permute.xlu0 %1423
    %v1426 = vmul.f32 %v1408, %v1424
    %v1427 = vadd.f32 %v345, %v1302
    %1429 = vrot.lane.b32.xlu0 %v1426, 32
    %v1430 = vpop.permute.xlu0 %1429
    %v1431 = vsel %vm447, %v1430, 0
    %1433 = vmatpush.msra.mxu0 0.0
    %1434 = vmatpush.msra.mxu0 0.0
    %1435 = vmatpush.msra.mxu0 0.0
    %1436 = vmatpush.msra.mxu0 0.0
    %1437 = vmatpush.msra.mxu0 0.0
    %1438 = vmatpush.msra.mxu0 0.0
    %1439 = vmatpush.msra.mxu0 0.0
    %1440 = vmatpush.msra.mxu0 0.0
    %1441 = vmatpush.msra.mxu0 0.0
    %1442 = vmatpush.msra.mxu0 0.0
    %1443 = vmatpush.msra.mxu0 0.0
    %1444 = vmatpush.msra.mxu0 0.0
    %1445 = vmatpush.msra.mxu0 %v196
    %1446 = vmatpush.msra.mxu0 %v195
    %1447 = vmatpush.msra.mxu0 %v194
    %1448 = vmatpush.msra.mxu0 %v193
    %1449 = vmatmul.f32.gmra.mxu0 %v1431
    %v1450 = vpop.f32.mrf.mxu0
    %v1451 = vadd.f32 0.0, %v1450
    %1452 = vdwg.mxu0
    %v1453 = vadd.f32 %v1427, %v1451
    %v1454 = vxor.u32 %v1453, 2147483648
    %v1455 = vmul.f32 %v1454, 1.442695
    %v1456 = vpow.pop %v1455
    %v1457 = vadd.f32 %v1456, 1.0
    %v1458 = vrcp.pop %v1457
    %v1459 = vmul.f32 %v1457, %v1458
    %v1460 = vsub.f32 1.0, %v1459
    %v1461 = vmul.f32 %v1458, %v1460
    %v1462 = vadd.f32 %v1458, %v1461
    %vm1463 = vweird.f32 %v1457
    %vm1464 = vweird.f32 %v1458
    %vm1465 = vmor %vm1463, %vm1464
    %v1466 = vsel %vm1465, %v1458, %v1462
    %v1467 = vand.u32 2147483647, %v1457
    %vm1468 = vcmp.eq.f32.partialorder %v1467, 8.507059e+37
    %v1469 = vand.u32 %v1457, 2147483648
    %v1470 = vor.u32 1.1754944e-38, %v1469
    %v1471 = vsel %vm1468, %v1470, %v1466
    %v1472 = vmul.f32 1.0, %v1471
    %v1473 = vtanh.pop %v1453
    %v1474 = vmul.f32 %v1472, %v1420
    %1476 = vrot.lane.b32.xlu0 %v1473, 64
    %v1477 = vpop.permute.xlu0 %1476
    %v1479 = vmul.f32 %v1472, %v1477
    %1481 = vrot.lane.b32.xlu0 %v1479, 32
    %v1482 = vpop.permute.xlu0 %1481
    %v1484 = vadd.f32 %v1474, %v1482
    %v1485 = vtanh.pop %v1484
    %1487 = vrot.lane.b32.xlu0 %v1485, 64
    %v1488 = vpop.permute.xlu0 %1487
    %v1490 = vmul.f32 %v1472, %v1488
    %v1491 = vadd.f32 %v365, %v1302
    %1493 = vrot.lane.b32.xlu0 %v1490, 32
    %v1494 = vpop.permute.xlu0 %1493
    %v1495 = vsel %vm447, %v1494, 0
    %1497 = vmatpush.msra.mxu0 0.0
    %1498 = vmatpush.msra.mxu0 0.0
    %1499 = vmatpush.msra.mxu0 0.0
    %1500 = vmatpush.msra.mxu0 0.0
    %1501 = vmatpush.msra.mxu0 0.0
    %1502 = vmatpush.msra.mxu0 0.0
    %1503 = vmatpush.msra.mxu0 0.0
    %1504 = vmatpush.msra.mxu0 0.0
    %1505 = vmatpush.msra.mxu0 0.0
    %1506 = vmatpush.msra.mxu0 0.0
    %1507 = vmatpush.msra.mxu0 0.0
    %1508 = vmatpush.msra.mxu0 0.0
    %1509 = vmatpush.msra.mxu0 %v196
    %1510 = vmatpush.msra.mxu0 %v195
    %1511 = vmatpush.msra.mxu0 %v194
    %1512 = vmatpush.msra.mxu0 %v193
    %1513 = vmatmul.f32.gmra.mxu0 %v1495
    %v1514 = vpop.f32.mrf.mxu0
    %v1515 = vadd.f32 0.0, %v1514
    %1516 = vdwg.mxu0
    %v1517 = vadd.f32 %v1491, %v1515
    %v1518 = vxor.u32 %v1517, 2147483648
    %v1519 = vmul.f32 %v1518, 1.442695
    %v1520 = vpow.pop %v1519
    %v1521 = vadd.f32 %v1520, 1.0
    %v1522 = vrcp.pop %v1521
    %v1523 = vmul.f32 %v1521, %v1522
    %v1524 = vsub.f32 1.0, %v1523
    %v1525 = vmul.f32 %v1522, %v1524
    %v1526 = vadd.f32 %v1522, %v1525
    %vm1527 = vweird.f32 %v1521
    %vm1528 = vweird.f32 %v1522
    %vm1529 = vmor %vm1527, %vm1528
    %v1530 = vsel %vm1529, %v1522, %v1526
    %v1531 = vand.u32 2147483647, %v1521
    %vm1532 = vcmp.eq.f32.partialorder %v1531, 8.507059e+37
    %v1533 = vand.u32 %v1521, 2147483648
    %v1534 = vor.u32 1.1754944e-38, %v1533
    %v1535 = vsel %vm1532, %v1534, %v1530
    %v1536 = vmul.f32 1.0, %v1535
    %v1537 = vtanh.pop %v1517
    %v1538 = vmul.f32 %v1536, %v1484
    %1540 = vrot.lane.b32.xlu0 %v1537, 64
    %v1541 = vpop.permute.xlu0 %1540
    %v1543 = vmul.f32 %v1536, %v1541
    %1545 = vrot.lane.b32.xlu0 %v1543, 32
    %v1546 = vpop.permute.xlu0 %1545
    %v1548 = vadd.f32 %v1538, %v1546
    %v1549 = vtanh.pop %v1548
    %1551 = vrot.lane.b32.xlu0 %v1549, 64
    %v1552 = vpop.permute.xlu0 %1551
    %v1554 = vmul.f32 %v1536, %v1552
    %v1555 = vadd.f32 %v385, %v1322
    %1557 = vrot.lane.b32.xlu0 %v1554, 32
    %v1558 = vpop.permute.xlu0 %1557
    %v1559 = vsel %vm447, %v1558, 0
    %1561 = vmatpush.msra.mxu0 0.0
    %1562 = vmatpush.msra.mxu0 0.0
    %1563 = vmatpush.msra.mxu0 0.0
    %1564 = vmatpush.msra.mxu0 0.0
    %1565 = vmatpush.msra.mxu0 0.0
    %1566 = vmatpush.msra.mxu0 0.0
    %1567 = vmatpush.msra.mxu0 0.0
    %1568 = vmatpush.msra.mxu0 0.0
    %1569 = vmatpush.msra.mxu0 0.0
    %1570 = vmatpush.msra.mxu0 0.0
    %1571 = vmatpush.msra.mxu0 0.0
    %1572 = vmatpush.msra.mxu0 0.0
    %1573 = vmatpush.msra.mxu0 %v196
    %1574 = vmatpush.msra.mxu0 %v195
    %1575 = vmatpush.msra.mxu0 %v194
    %1576 = vmatpush.msra.mxu0 %v193
    %1577 = vmatmul.f32.gmra.mxu0 %v1559
    %v1578 = vpop.f32.mrf.mxu0
    %v1579 = vadd.f32 0.0, %v1578
    %1580 = vdwg.mxu0
    %v1581 = vadd.f32 %v1555, %v1579
    %v1582 = vxor.u32 %v1581, 2147483648
    %v1583 = vmul.f32 %v1582, 1.442695
    %v1584 = vpow.pop %v1583
    %v1585 = vadd.f32 %v1584, 1.0
    %v1586 = vrcp.pop %v1585
    %v1587 = vmul.f32 %v1585, %v1586
    %v1588 = vsub.f32 1.0, %v1587
    %v1589 = vmul.f32 %v1586, %v1588
    %v1590 = vadd.f32 %v1586, %v1589
    %vm1591 = vweird.f32 %v1585
    %vm1592 = vweird.f32 %v1586
    %vm1593 = vmor %vm1591, %vm1592
    %v1594 = vsel %vm1593, %v1586, %v1590
    %v1595 = vand.u32 2147483647, %v1585
    %vm1596 = vcmp.eq.f32.partialorder %v1595, 8.507059e+37
    %v1597 = vand.u32 %v1585, 2147483648
    %v1598 = vor.u32 1.1754944e-38, %v1597
    %v1599 = vsel %vm1596, %v1598, %v1594
    %v1600 = vmul.f32 1.0, %v1599
    %v1601 = vtanh.pop %v1581
    %v1602 = vmul.f32 %v1600, %v1548
    %1604 = vrot.lane.b32.xlu0 %v1601, 64
    %v1605 = vpop.permute.xlu0 %1604
    %v1607 = vmul.f32 %v1600, %v1605
    %1609 = vrot.lane.b32.xlu0 %v1607, 32
    %v1610 = vpop.permute.xlu0 %1609
    %v1612 = vadd.f32 %v1602, %v1610
    %v1613 = vtanh.pop %v1612
    %1615 = vrot.lane.b32.xlu0 %v1613, 64
    %v1616 = vpop.permute.xlu0 %1615
    %v1618 = vmul.f32 %v1600, %v1616
    %v1619 = vadd.f32 %v405, %v1322
    %1621 = vrot.lane.b32.xlu0 %v1618, 32
    %v1622 = vpop.permute.xlu0 %1621
    %v1623 = vsel %vm447, %v1622, 0
    %1625 = vmatpush.msra.mxu0 0.0
    %1626 = vmatpush.msra.mxu0 0.0
    %1627 = vmatpush.msra.mxu0 0.0
    %1628 = vmatpush.msra.mxu0 0.0
    %1629 = vmatpush.msra.mxu0 0.0
    %1630 = vmatpush.msra.mxu0 0.0
    %1631 = vmatpush.msra.mxu0 0.0
    %1632 = vmatpush.msra.mxu0 0.0
    %1633 = vmatpush.msra.mxu0 0.0
    %1634 = vmatpush.msra.mxu0 0.0
    %1635 = vmatpush.msra.mxu0 0.0
    %1636 = vmatpush.msra.mxu0 0.0
    %1637 = vmatpush.msra.mxu0 %v196
    %1638 = vmatpush.msra.mxu0 %v195
    %1639 = vmatpush.msra.mxu0 %v194
    %1640 = vmatpush.msra.mxu0 %v193
    %1641 = vmatmul.f32.gmra.mxu0 %v1623
    %v1642 = vpop.f32.mrf.mxu0
    %v1643 = vadd.f32 0.0, %v1642
    %1644 = vdwg.mxu0
    %v1645 = vadd.f32 %v1619, %v1643
    %v1646 = vxor.u32 %v1645, 2147483648
    %v1647 = vmul.f32 %v1646, 1.442695
    %v1648 = vpow.pop %v1647
    %v1649 = vadd.f32 %v1648, 1.0
    %v1650 = vrcp.pop %v1649
    %v1651 = vmul.f32 %v1649, %v1650
    %v1652 = vsub.f32 1.0, %v1651
    %v1653 = vmul.f32 %v1650, %v1652
    %v1654 = vadd.f32 %v1650, %v1653
    %vm1655 = vweird.f32 %v1649
    %vm1656 = vweird.f32 %v1650
    %vm1657 = vmor %vm1655, %vm1656
    %v1658 = vsel %vm1657, %v1650, %v1654
    %v1659 = vand.u32 2147483647, %v1649
    %vm1660 = vcmp.eq.f32.partialorder %v1659, 8.507059e+37
    %v1661 = vand.u32 %v1649, 2147483648
    %v1662 = vor.u32 1.1754944e-38, %v1661
    %v1663 = vsel %vm1660, %v1662, %v1658
    %v1664 = vmul.f32 1.0, %v1663
    %v1665 = vtanh.pop %v1645
    %v1666 = vmul.f32 %v1664, %v1612
    %1668 = vrot.lane.b32.xlu0 %v1665, 64
    %v1669 = vpop.permute.xlu0 %1668
    %v1671 = vmul.f32 %v1664, %v1669
    %1673 = vrot.lane.b32.xlu0 %v1671, 32
    %v1674 = vpop.permute.xlu0 %1673
    %v1676 = vadd.f32 %v1666, %v1674
    %v1677 = vtanh.pop %v1676
    %1679 = vrot.lane.b32.xlu0 %v1677, 64
    %v1680 = vpop.permute.xlu0 %1679
    %v1682 = vmul.f32 %v1664, %v1680
    %v1683 = vadd.f32 %v425, %v1322
    %1685 = vrot.lane.b32.xlu0 %v1682, 32
    %v1686 = vpop.permute.xlu0 %1685
    %v1687 = vsel %vm447, %v1686, 0
    %1689 = vmatpush.msra.mxu0 0.0
    %1690 = vmatpush.msra.mxu0 0.0
    %1691 = vmatpush.msra.mxu0 0.0
    %1692 = vmatpush.msra.mxu0 0.0
    %1693 = vmatpush.msra.mxu0 0.0
    %1694 = vmatpush.msra.mxu0 0.0
    %1695 = vmatpush.msra.mxu0 0.0
    %1696 = vmatpush.msra.mxu0 0.0
    %1697 = vmatpush.msra.mxu0 0.0
    %1698 = vmatpush.msra.mxu0 0.0
    %1699 = vmatpush.msra.mxu0 0.0
    %1700 = vmatpush.msra.mxu0 0.0
    %1701 = vmatpush.msra.mxu0 %v196
    %1702 = vmatpush.msra.mxu0 %v195
    %1703 = vmatpush.msra.mxu0 %v194
    %1704 = vmatpush.msra.mxu0 %v193
    %1705 = vmatmul.f32.gmra.mxu0 %v1687
    %v1706 = vpop.f32.mrf.mxu0
    %v1707 = vadd.f32 0.0, %v1706
    %1708 = vdwg.mxu0
    %v1709 = vadd.f32 %v1683, %v1707
    %v1710 = vxor.u32 %v1709, 2147483648
    %v1711 = vmul.f32 %v1710, 1.442695
    %v1712 = vpow.pop %v1711
    %v1713 = vadd.f32 %v1712, 1.0
    %v1714 = vrcp.pop %v1713
    %v1715 = vmul.f32 %v1713, %v1714
    %v1716 = vsub.f32 1.0, %v1715
    %v1717 = vmul.f32 %v1714, %v1716
    %v1718 = vadd.f32 %v1714, %v1717
    %vm1719 = vweird.f32 %v1713
    %vm1720 = vweird.f32 %v1714
    %vm1721 = vmor %vm1719, %vm1720
    %v1722 = vsel %vm1721, %v1714, %v1718
    %v1723 = vand.u32 2147483647, %v1713
    %vm1724 = vcmp.eq.f32.partialorder %v1723, 8.507059e+37
    %v1725 = vand.u32 %v1713, 2147483648
    %v1726 = vor.u32 1.1754944e-38, %v1725
    %v1727 = vsel %vm1724, %v1726, %v1722
    %v1728 = vmul.f32 1.0, %v1727
    %v1729 = vtanh.pop %v1709
    %v1730 = vmul.f32 %v1728, %v1676
    %1732 = vrot.lane.b32.xlu0 %v1729, 64
    %v1733 = vpop.permute.xlu0 %1732
    %v1735 = vmul.f32 %v1728, %v1733
    %1737 = vrot.lane.b32.xlu0 %v1735, 32
    %v1738 = vpop.permute.xlu0 %1737
    %v1740 = vadd.f32 %v1730, %v1738
    %v1741 = vtanh.pop %v1740
    %1743 = vrot.lane.b32.xlu0 %v1741, 64
    %v1744 = vpop.permute.xlu0 %1743
    %v1746 = vmul.f32 %v1728, %v1744
    %v1747 = vadd.f32 %v445, %v1322
    %1749 = vrot.lane.b32.xlu0 %v1746, 32
    %v1750 = vpop.permute.xlu0 %1749
    %v1751 = vsel %vm447, %v1750, 0
    %1753 = vmatpush.msra.mxu0 0.0
    %1754 = vmatpush.msra.mxu0 0.0
    %1755 = vmatpush.msra.mxu0 0.0
    %1756 = vmatpush.msra.mxu0 0.0
    %1757 = vmatpush.msra.mxu0 0.0
    %1758 = vmatpush.msra.mxu0 0.0
    %1759 = vmatpush.msra.mxu0 0.0
    %1760 = vmatpush.msra.mxu0 0.0
    %1761 = vmatpush.msra.mxu0 0.0
    %1762 = vmatpush.msra.mxu0 0.0
    %1763 = vmatpush.msra.mxu0 0.0
    %1764 = vmatpush.msra.mxu0 0.0
    %1765 = vmatpush.msra.mxu0 %v196
    %1766 = vmatpush.msra.mxu0 %v195
    %1767 = vmatpush.msra.mxu0 %v194
    %1768 = vmatpush.msra.mxu0 %v193
    %1769 = vmatmul.f32.gmra.mxu0 %v1751
    %v1770 = vpop.f32.mrf.mxu0
    %v1771 = vadd.f32 0.0, %v1770
    %1772 = vdwg.mxu0
    %v1773 = vadd.f32 %v1747, %v1771
    %v1774 = vxor.u32 %v1773, 2147483648
    %v1775 = vmul.f32 %v1774, 1.442695
    %v1776 = vpow.pop %v1775
    %v1777 = vadd.f32 %v1776, 1.0
    %v1778 = vrcp.pop %v1777
    %v1779 = vmul.f32 %v1777, %v1778
    %v1780 = vsub.f32 1.0, %v1779
    %v1781 = vmul.f32 %v1778, %v1780
    %v1782 = vadd.f32 %v1778, %v1781
    %vm1783 = vweird.f32 %v1777
    %vm1784 = vweird.f32 %v1778
    %vm1785 = vmor %vm1783, %vm1784
    %v1786 = vsel %vm1785, %v1778, %v1782
    %v1787 = vand.u32 2147483647, %v1777
    %vm1788 = vcmp.eq.f32.partialorder %v1787, 8.507059e+37
    %v1789 = vand.u32 %v1777, 2147483648
    %v1790 = vor.u32 1.1754944e-38, %v1789
    %v1791 = vsel %vm1788, %v1790, %v1786
    %v1792 = vmul.f32 1.0, %v1791
    %v1793 = vtanh.pop %v1773
    %v1794 = vmul.f32 %v1792, %v1740
    %1796 = vrot.lane.b32.xlu0 %v1793, 64
    %v1797 = vpop.permute.xlu0 %1796
    %v1799 = vmul.f32 %v1792, %v1797
    %1801 = vrot.lane.b32.xlu0 %v1799, 32
    %v1802 = vpop.permute.xlu0 %1801
    %v1804 = vadd.f32 %v1794, %v1802
    %v1805 = vtanh.pop %v1804
    %1807 = vrot.lane.b32.xlu0 %v1805, 64
    %v1808 = vpop.permute.xlu0 %1807
    %v1810 = vmul.f32 %v1792, %v1808
    %1812 = vrot.lane.b32.xlu0 %v1426, 64
    %v1813 = vpop.permute.xlu0 %1812
    %1815 = vrot.lane.b32.xlu0 %v1490, 96
    %v1816 = vpop.permute.xlu0 %1815
    %1819 = vrot.lane.b32.xlu0 %v1682, 64
    %v1820 = vpop.permute.xlu0 %1819
    %1822 = vrot.lane.b32.xlu0 %v1746, 96
    %v1823 = vpop.permute.xlu0 %1822
    %v1825 = vsel %vm447, %v1366, %v1813
    %v1826 = vsel %vm283, %v1825, %v1816
    %v1827 = vsel %vm966, %v1826, %v1554
    %v1828 = vsel %vm447, %v1622, %v1820
    %v1829 = vsel %vm283, %v1828, %v1823
    %v1830 = vsel %vm966, %v1829, %v1810
    %v1831 = vmax.f32 %v1827, 0.0
    %v1832 = vmax.f32 %v1830, 0.0
    %1833 = vmatpush.msra.mxu0 %v988
    %1834 = vmatpush.msra.mxu0 %v987
    %1835 = vmatpush.msra.mxu0 %v986
    %1836 = vmatpush.msra.mxu0 %v985
    %1837 = vmatpush.msra.mxu0 %v984
    %1838 = vmatpush.msra.mxu0 %v983
    %1839 = vmatpush.msra.mxu0 %v982
    %1840 = vmatpush.msra.mxu0 %v981
    %1841 = vmatpush.msra.mxu0 %v980
    %1842 = vmatpush.msra.mxu0 %v979
    %1843 = vmatpush.msra.mxu0 %v978
    %1844 = vmatpush.msra.mxu0 %v977
    %1845 = vmatpush.msra.mxu0 %v976
    %1846 = vmatpush.msra.mxu0 %v975
    %1847 = vmatpush.msra.mxu0 %v974
    %1848 = vmatpush.msra.mxu0 %v973
    %1849 = vmatmul.f32.gmra.mxu0 %v1831
    %v1850 = vpop.f32.mrf.mxu0
    %v1851 = vadd.f32 %v1007, %v1850
    %1852 = vdwg.mxu0
    %1853 = vmatpush.msra.mxu0 %v1004
    %1854 = vmatpush.msra.mxu0 %v1003
    %1855 = vmatpush.msra.mxu0 %v1002
    %1856 = vmatpush.msra.mxu0 %v1001
    %1857 = vmatpush.msra.mxu0 %v1000
    %1858 = vmatpush.msra.mxu0 %v999
    %1859 = vmatpush.msra.mxu0 %v998
    %1860 = vmatpush.msra.mxu0 %v997
    %1861 = vmatpush.msra.mxu0 %v996
    %1862 = vmatpush.msra.mxu0 %v995
    %1863 = vmatpush.msra.mxu0 %v994
    %1864 = vmatpush.msra.mxu0 %v993
    %1865 = vmatpush.msra.mxu0 %v992
    %1866 = vmatpush.msra.mxu0 %v991
    %1867 = vmatpush.msra.mxu0 %v990
    %1868 = vmatpush.msra.mxu0 %v989
    %1869 = vmatmul.f32.gmra.mxu0 %v1832
    %v1870 = vpop.f32.mrf.mxu0
    %v1871 = vadd.f32 %v1851, %v1870
    %1872 = vdwg.mxu0
    %v1873 = vsub.f32 %v192, %v1871
    %v1875 = vsel %vm283, %v1873, 0
    %1877 = vmatpush.msra.mxu0 0.0
    %1878 = vmatpush.msra.mxu0 0.0
    %1879 = vmatpush.msra.mxu0 0.0
    %1880 = vmatpush.msra.mxu0 0.0
    %1881 = vmatpush.msra.mxu0 0.0
    %1882 = vmatpush.msra.mxu0 0.0
    %1883 = vmatpush.msra.mxu0 0.0
    %1884 = vmatpush.msra.mxu0 0.0
    %1885 = vmatpush.msra.mxu0 %v1064
    %1886 = vmatpush.msra.mxu0 %v1062
    %1887 = vmatpush.msra.mxu0 %v1060
    %1888 = vmatpush.msra.mxu0 %v1058
    %1889 = vmatpush.msra.mxu0 %v1056
    %1890 = vmatpush.msra.mxu0 %v1054
    %1891 = vmatpush.msra.mxu0 %v1052
    %1892 = vmatpush.msra.mxu0 %v1050
    %1893 = vmatmul.f32.gmra.mxu0 %v1875
    %v1894 = vpop.f32.mrf.mxu0
    %v1895 = vadd.f32 %v1068, %v1894
    %1896 = vdwg.mxu0
    %1897 = vmatpush.msra.mxu0 0.0
    %1898 = vmatpush.msra.mxu0 0.0
    %1899 = vmatpush.msra.mxu0 0.0
    %1900 = vmatpush.msra.mxu0 0.0
    %1901 = vmatpush.msra.mxu0 0.0
    %1902 = vmatpush.msra.mxu0 0.0
    %1903 = vmatpush.msra.mxu0 0.0
    %1904 = vmatpush.msra.mxu0 0.0
    %1905 = vmatpush.msra.mxu0 %v1065
    %1906 = vmatpush.msra.mxu0 %v1063
    %1907 = vmatpush.msra.mxu0 %v1061
    %1908 = vmatpush.msra.mxu0 %v1059
    %1909 = vmatpush.msra.mxu0 %v1057
    %1910 = vmatpush.msra.mxu0 %v1055
    %1911 = vmatpush.msra.mxu0 %v1053
    %1912 = vmatpush.msra.mxu0 %v1051
    %1913 = vmatmul.f32.gmra.mxu0 %v1875
    %v1914 = vpop.f32.mrf.mxu0
    %v1915 = vadd.f32 %v1069, %v1914
    %1916 = vdwg.mxu0
    %v1917 = vadd.f32 %v1895, %v1133
    %v1918 = vxor.u32 %v1917, 2147483648
    %v1919 = vmul.f32 %v1918, 1.442695
    %v1920 = vpow.pop %v1919
    %v1921 = vadd.f32 %v1920, 1.0
    %v1922 = vrcp.pop %v1921
    %v1923 = vmul.f32 %v1921, %v1922
    %v1924 = vsub.f32 1.0, %v1923
    %v1925 = vmul.f32 %v1922, %v1924
    %v1926 = vadd.f32 %v1922, %v1925
    %vm1927 = vweird.f32 %v1921
    %vm1928 = vweird.f32 %v1922
    %vm1929 = vmor %vm1927, %vm1928
    %v1930 = vsel %vm1929, %v1922, %v1926
    %v1931 = vand.u32 2147483647, %v1921
    %vm1932 = vcmp.eq.f32.partialorder %v1931, 8.507059e+37
    %v1933 = vand.u32 %v1921, 2147483648
    %v1934 = vor.u32 1.1754944e-38, %v1933
    %v1935 = vsel %vm1932, %v1934, %v1930
    %v1936 = vmul.f32 1.0, %v1935
    %v1937 = vtanh.pop %v1917
    %v1938 = vmul.f32 %v1936, 0.0
    %1940 = vrot.lane.b32.xlu0 %v1937, 64
    %v1941 = vpop.permute.xlu0 %1940
    %v1943 = vmul.f32 %v1936, %v1941
    %1945 = vrot.lane.b32.xlu0 %v1943, 32
    %v1946 = vpop.permute.xlu0 %1945
    %v1948 = vadd.f32 %v1938, %v1946
    %v1949 = vtanh.pop %v1948
    %1951 = vrot.lane.b32.xlu0 %v1949, 64
    %v1952 = vpop.permute.xlu0 %1951
    %v1954 = vmul.f32 %v1936, %v1952
    %1956 = vrot.lane.b32.xlu0 %v1954, 32
    %v1957 = vpop.permute.xlu0 %1956
    %v1958 = vsel %vm447, %v1957, 0
    %1960 = vmatpush.msra.mxu0 0.0
    %1961 = vmatpush.msra.mxu0 0.0
    %1962 = vmatpush.msra.mxu0 0.0
    %1963 = vmatpush.msra.mxu0 0.0
    %1964 = vmatpush.msra.mxu0 0.0
    %1965 = vmatpush.msra.mxu0 0.0
    %1966 = vmatpush.msra.mxu0 0.0
    %1967 = vmatpush.msra.mxu0 0.0
    %1968 = vmatpush.msra.mxu0 0.0
    %1969 = vmatpush.msra.mxu0 0.0
    %1970 = vmatpush.msra.mxu0 0.0
    %1971 = vmatpush.msra.mxu0 0.0
    %1972 = vmatpush.msra.mxu0 %v200
    %1973 = vmatpush.msra.mxu0 %v199
    %1974 = vmatpush.msra.mxu0 %v198
    %1975 = vmatpush.msra.mxu0 %v197
    %1976 = vmatmul.f32.gmra.mxu0 %v1958
    %v1977 = vpop.f32.mrf.mxu0
    %v1978 = vadd.f32 0.0, %v1977
    %1979 = vdwg.mxu0
    %v1980 = vadd.f32 %v1915, %v1978
    %v1981 = vxor.u32 %v1980, 2147483648
    %v1982 = vmul.f32 %v1981, 1.442695
    %v1983 = vpow.pop %v1982
    %v1984 = vadd.f32 %v1983, 1.0
    %v1985 = vrcp.pop %v1984
    %v1986 = vmul.f32 %v1984, %v1985
    %v1987 = vsub.f32 1.0, %v1986
    %v1988 = vmul.f32 %v1985, %v1987
    %v1989 = vadd.f32 %v1985, %v1988
    %vm1990 = vweird.f32 %v1984
    %vm1991 = vweird.f32 %v1985
    %vm1992 = vmor %vm1990, %vm1991
    %v1993 = vsel %vm1992, %v1985, %v1989
    %v1994 = vand.u32 2147483647, %v1984
    %vm1995 = vcmp.eq.f32.partialorder %v1994, 8.507059e+37
    %v1996 = vand.u32 %v1984, 2147483648
    %v1997 = vor.u32 1.1754944e-38, %v1996
    %v1998 = vsel %vm1995, %v1997, %v1993
    %v1999 = vmul.f32 1.0, %v1998
    %v2000 = vtanh.pop %v1980
    %v2001 = vmul.f32 %v1999, %v1948
    %2003 = vrot.lane.b32.xlu0 %v2000, 64
    %v2004 = vpop.permute.xlu0 %2003
    %v2006 = vmul.f32 %v1999, %v2004
    %2008 = vrot.lane.b32.xlu0 %v2006, 32
    %v2009 = vpop.permute.xlu0 %2008
    %v2011 = vadd.f32 %v2001, %v2009
    %v2012 = vtanh.pop %v2011
    %2014 = vrot.lane.b32.xlu0 %v2012, 64
    %v2015 = vpop.permute.xlu0 %2014
    %v2017 = vmul.f32 %v1999, %v2015
    %2020 = vrot.lane.b32.xlu0 %v2017, 64
    %v2021 = vpop.permute.xlu0 %2020
    %v2023 = vsel %vm447, %v1957, %v2021
    %v2024 = vmax.f32 %v2023, 0.0
    %v2026 = vsel %vm283, %v2024, 0
    %2028 = vmatpush.msra.mxu0 0.0
    %2029 = vmatpush.msra.mxu0 0.0
    %2030 = vmatpush.msra.mxu0 0.0
    %2031 = vmatpush.msra.mxu0 0.0
    %2032 = vmatpush.msra.mxu0 0.0
    %2033 = vmatpush.msra.mxu0 0.0
    %2034 = vmatpush.msra.mxu0 0.0
    %2035 = vmatpush.msra.mxu0 0.0
    %2036 = vmatpush.msra.mxu0 %v1250
    %2037 = vmatpush.msra.mxu0 %v1249
    %2038 = vmatpush.msra.mxu0 %v1248
    %2039 = vmatpush.msra.mxu0 %v1247
    %2040 = vmatpush.msra.mxu0 %v1246
    %2041 = vmatpush.msra.mxu0 %v1245
    %2042 = vmatpush.msra.mxu0 %v1244
    %2043 = vmatpush.msra.mxu0 %v1243
    %2044 = vmatmul.f32.gmra.mxu0 %v2026
    %v2045 = vpop.f32.mrf.mxu0
    %v2046 = vadd.f32 %v1253, %v2045
    %2047 = vdwg.mxu0
    %v2049 = vsel %vm1280, %v2046, 0
    %2051 = vmatpush.msra.mxu0 0.0
    %2052 = vmatpush.msra.mxu0 0.0
    %2053 = vmatpush.msra.mxu0 0.0
    %2054 = vmatpush.msra.mxu0 0.0
    %2055 = vmatpush.msra.mxu0 0.0
    %2056 = vmatpush.msra.mxu0 0.0
    %2057 = vmatpush.msra.mxu0 0.0
    %2058 = vmatpush.msra.mxu0 0.0
    %2059 = vmatpush.msra.mxu0 0.0
    %2060 = vmatpush.msra.mxu0 0.0
    %2061 = vmatpush.msra.mxu0 0.0
    %2062 = vmatpush.msra.mxu0 0.0
    %2063 = vmatpush.msra.mxu0 0.0
    %2064 = vmatpush.msra.mxu0 0.0
    %2065 = vmatpush.msra.mxu0 0.0
    %2066 = vmatpush.msra.mxu0 %v1278
    %2067 = vmatmul.f32.gmra.mxu0 %v2049
    %v2068 = vpop.f32.mrf.mxu0
    %v2069 = vadd.f32 0.0, %v2068
    %2070 = vdwg.mxu0
    %2071 = vmatpush.msra.mxu0 0.0
    %2072 = vmatpush.msra.mxu0 0.0
    %2073 = vmatpush.msra.mxu0 0.0
    %2074 = vmatpush.msra.mxu0 0.0
    %2075 = vmatpush.msra.mxu0 0.0
    %2076 = vmatpush.msra.mxu0 0.0
    %2077 = vmatpush.msra.mxu0 0.0
    %2078 = vmatpush.msra.mxu0 0.0
    %2079 = vmatpush.msra.mxu0 0.0
    %2080 = vmatpush.msra.mxu0 0.0
    %2081 = vmatpush.msra.mxu0 0.0
    %2082 = vmatpush.msra.mxu0 0.0
    %2083 = vmatpush.msra.mxu0 0.0
    %2084 = vmatpush.msra.mxu0 0.0
    %2085 = vmatpush.msra.mxu0 0.0
    %2086 = vmatpush.msra.mxu0 %v1279
    %2087 = vmatmul.f32.gmra.mxu0 %v2049
    %v2088 = vpop.f32.mrf.mxu0
    %v2089 = vadd.f32 0.0, %v2088
    %2090 = vdwg.mxu0
    %v2091 = vadd.f32 %v305, %v2069
    %v2092 = vadd.f32 %v2091, %v469
    %v2093 = vxor.u32 %v2092, 2147483648
    %v2094 = vmul.f32 %v2093, 1.442695
    %v2095 = vpow.pop %v2094
    %v2096 = vadd.f32 %v2095, 1.0
    %v2097 = vrcp.pop %v2096
    %v2098 = vmul.f32 %v2096, %v2097
    %v2099 = vsub.f32 1.0, %v2098
    %v2100 = vmul.f32 %v2097, %v2099
    %v2101 = vadd.f32 %v2097, %v2100
    %vm2102 = vweird.f32 %v2096
    %vm2103 = vweird.f32 %v2097
    %vm2104 = vmor %vm2102, %vm2103
    %v2105 = vsel %vm2104, %v2097, %v2101
    %v2106 = vand.u32 2147483647, %v2096
    %vm2107 = vcmp.eq.f32.partialorder %v2106, 8.507059e+37
    %v2108 = vand.u32 %v2096, 2147483648
    %v2109 = vor.u32 1.1754944e-38, %v2108
    %v2110 = vsel %vm2107, %v2109, %v2105
    %v2111 = vmul.f32 1.0, %v2110
    %v2112 = vtanh.pop %v2092
    %v2113 = vmul.f32 %v2111, 0.0
    %2115 = vrot.lane.b32.xlu0 %v2112, 64
    %v2116 = vpop.permute.xlu0 %2115
    %v2118 = vmul.f32 %v2111, %v2116
    %2120 = vrot.lane.b32.xlu0 %v2118, 32
    %v2121 = vpop.permute.xlu0 %2120
    %v2123 = vadd.f32 %v2113, %v2121
    %v2124 = vtanh.pop %v2123
    %2126 = vrot.lane.b32.xlu0 %v2124, 64
    %v2127 = vpop.permute.xlu0 %2126
    %v2129 = vmul.f32 %v2111, %v2127
    %v2130 = vadd.f32 %v325, %v2069
    %2132 = vrot.lane.b32.xlu0 %v2129, 32
    %v2133 = vpop.permute.xlu0 %2132
    %v2134 = vsel %vm447, %v2133, 0
    %2136 = vmatpush.msra.mxu0 0.0
    %2137 = vmatpush.msra.mxu0 0.0
    %2138 = vmatpush.msra.mxu0 0.0
    %2139 = vmatpush.msra.mxu0 0.0
    %2140 = vmatpush.msra.mxu0 0.0
    %2141 = vmatpush.msra.mxu0 0.0
    %2142 = vmatpush.msra.mxu0 0.0
    %2143 = vmatpush.msra.mxu0 0.0
    %2144 = vmatpush.msra.mxu0 0.0
    %2145 = vmatpush.msra.mxu0 0.0
    %2146 = vmatpush.msra.mxu0 0.0
    %2147 = vmatpush.msra.mxu0 0.0
    %2148 = vmatpush.msra.mxu0 %v196
    %2149 = vmatpush.msra.mxu0 %v195
    %2150 = vmatpush.msra.mxu0 %v194
    %2151 = vmatpush.msra.mxu0 %v193
    %2152 = vmatmul.f32.gmra.mxu0 %v2134
    %v2153 = vpop.f32.mrf.mxu0
    %v2154 = vadd.f32 0.0, %v2153
    %2155 = vdwg.mxu0
    %v2156 = vadd.f32 %v2130, %v2154
    %v2157 = vxor.u32 %v2156, 2147483648
    %v2158 = vmul.f32 %v2157, 1.442695
    %v2159 = vpow.pop %v2158
    %v2160 = vadd.f32 %v2159, 1.0
    %v2161 = vrcp.pop %v2160
    %v2162 = vmul.f32 %v2160, %v2161
    %v2163 = vsub.f32 1.0, %v2162
    %v2164 = vmul.f32 %v2161, %v2163
    %v2165 = vadd.f32 %v2161, %v2164
    %vm2166 = vweird.f32 %v2160
    %vm2167 = vweird.f32 %v2161
    %vm2168 = vmor %vm2166, %vm2167
    %v2169 = vsel %vm2168, %v2161, %v2165
    %v2170 = vand.u32 2147483647, %v2160
    %vm2171 = vcmp.eq.f32.partialorder %v2170, 8.507059e+37
    %v2172 = vand.u32 %v2160, 2147483648
    %v2173 = vor.u32 1.1754944e-38, %v2172
    %v2174 = vsel %vm2171, %v2173, %v2169
    %v2175 = vmul.f32 1.0, %v2174
    %v2176 = vtanh.pop %v2156
    %v2177 = vmul.f32 %v2175, %v2123
    %2179 = vrot.lane.b32.xlu0 %v2176, 64
    %v2180 = vpop.permute.xlu0 %2179
    %v2182 = vmul.f32 %v2175, %v2180
    %2184 = vrot.lane.b32.xlu0 %v2182, 32
    %v2185 = vpop.permute.xlu0 %2184
    %v2187 = vadd.f32 %v2177, %v2185
    %v2188 = vtanh.pop %v2187
    %2190 = vrot.lane.b32.xlu0 %v2188, 64
    %v2191 = vpop.permute.xlu0 %2190
    %v2193 = vmul.f32 %v2175, %v2191
    %v2194 = vadd.f32 %v345, %v2069
    %2196 = vrot.lane.b32.xlu0 %v2193, 32
    %v2197 = vpop.permute.xlu0 %2196
    %v2198 = vsel %vm447, %v2197, 0
    %2200 = vmatpush.msra.mxu0 0.0
    %2201 = vmatpush.msra.mxu0 0.0
    %2202 = vmatpush.msra.mxu0 0.0
    %2203 = vmatpush.msra.mxu0 0.0
    %2204 = vmatpush.msra.mxu0 0.0
    %2205 = vmatpush.msra.mxu0 0.0
    %2206 = vmatpush.msra.mxu0 0.0
    %2207 = vmatpush.msra.mxu0 0.0
    %2208 = vmatpush.msra.mxu0 0.0
    %2209 = vmatpush.msra.mxu0 0.0
    %2210 = vmatpush.msra.mxu0 0.0
    %2211 = vmatpush.msra.mxu0 0.0
    %2212 = vmatpush.msra.mxu0 %v196
    %2213 = vmatpush.msra.mxu0 %v195
    %2214 = vmatpush.msra.mxu0 %v194
    %2215 = vmatpush.msra.mxu0 %v193
    %2216 = vmatmul.f32.gmra.mxu0 %v2198
    %v2217 = vpop.f32.mrf.mxu0
    %v2218 = vadd.f32 0.0, %v2217
    %2219 = vdwg.mxu0
    %v2220 = vadd.f32 %v2194, %v2218
    %v2221 = vxor.u32 %v2220, 2147483648
    %v2222 = vmul.f32 %v2221, 1.442695
    %v2223 = vpow.pop %v2222
    %v2224 = vadd.f32 %v2223, 1.0
    %v2225 = vrcp.pop %v2224
    %v2226 = vmul.f32 %v2224, %v2225
    %v2227 = vsub.f32 1.0, %v2226
    %v2228 = vmul.f32 %v2225, %v2227
    %v2229 = vadd.f32 %v2225, %v2228
    %vm2230 = vweird.f32 %v2224
    %vm2231 = vweird.f32 %v2225
    %vm2232 = vmor %vm2230, %vm2231
    %v2233 = vsel %vm2232, %v2225, %v2229
    %v2234 = vand.u32 2147483647, %v2224
    %vm2235 = vcmp.eq.f32.partialorder %v2234, 8.507059e+37
    %v2236 = vand.u32 %v2224, 2147483648
    %v2237 = vor.u32 1.1754944e-38, %v2236
    %v2238 = vsel %vm2235, %v2237, %v2233
    %v2239 = vmul.f32 1.0, %v2238
    %v2240 = vtanh.pop %v2220
    %v2241 = vmul.f32 %v2239, %v2187
    %2243 = vrot.lane.b32.xlu0 %v2240, 64
    %v2244 = vpop.permute.xlu0 %2243
    %v2246 = vmul.f32 %v2239, %v2244
    %2248 = vrot.lane.b32.xlu0 %v2246, 32
    %v2249 = vpop.permute.xlu0 %2248
    %v2251 = vadd.f32 %v2241, %v2249
    %v2252 = vtanh.pop %v2251
    %2254 = vrot.lane.b32.xlu0 %v2252, 64
    %v2255 = vpop.permute.xlu0 %2254
    %v2257 = vmul.f32 %v2239, %v2255
    %v2258 = vadd.f32 %v365, %v2069
    %2260 = vrot.lane.b32.xlu0 %v2257, 32
    %v2261 = vpop.permute.xlu0 %2260
    %v2262 = vsel %vm447, %v2261, 0
    %2264 = vmatpush.msra.mxu0 0.0
    %2265 = vmatpush.msra.mxu0 0.0
    %2266 = vmatpush.msra.mxu0 0.0
    %2267 = vmatpush.msra.mxu0 0.0
    %2268 = vmatpush.msra.mxu0 0.0
    %2269 = vmatpush.msra.mxu0 0.0
    %2270 = vmatpush.msra.mxu0 0.0
    %2271 = vmatpush.msra.mxu0 0.0
    %2272 = vmatpush.msra.mxu0 0.0
    %2273 = vmatpush.msra.mxu0 0.0
    %2274 = vmatpush.msra.mxu0 0.0
    %2275 = vmatpush.msra.mxu0 0.0
    %2276 = vmatpush.msra.mxu0 %v196
    %2277 = vmatpush.msra.mxu0 %v195
    %2278 = vmatpush.msra.mxu0 %v194
    %2279 = vmatpush.msra.mxu0 %v193
    %2280 = vmatmul.f32.gmra.mxu0 %v2262
    %v2281 = vpop.f32.mrf.mxu0
    %v2282 = vadd.f32 0.0, %v2281
    %2283 = vdwg.mxu0
    %v2284 = vadd.f32 %v2258, %v2282
    %v2285 = vxor.u32 %v2284, 2147483648
    %v2286 = vmul.f32 %v2285, 1.442695
    %v2287 = vpow.pop %v2286
    %v2288 = vadd.f32 %v2287, 1.0
    %v2289 = vrcp.pop %v2288
    %v2290 = vmul.f32 %v2288, %v2289
    %v2291 = vsub.f32 1.0, %v2290
    %v2292 = vmul.f32 %v2289, %v2291
    %v2293 = vadd.f32 %v2289, %v2292
    %vm2294 = vweird.f32 %v2288
    %vm2295 = vweird.f32 %v2289
    %vm2296 = vmor %vm2294, %vm2295
    %v2297 = vsel %vm2296, %v2289, %v2293
    %v2298 = vand.u32 2147483647, %v2288
    %vm2299 = vcmp.eq.f32.partialorder %v2298, 8.507059e+37
    %v2300 = vand.u32 %v2288, 2147483648
    %v2301 = vor.u32 1.1754944e-38, %v2300
    %v2302 = vsel %vm2299, %v2301, %v2297
    %v2303 = vmul.f32 1.0, %v2302
    %v2304 = vtanh.pop %v2284
    %v2305 = vmul.f32 %v2303, %v2251
    %2307 = vrot.lane.b32.xlu0 %v2304, 64
    %v2308 = vpop.permute.xlu0 %2307
    %v2310 = vmul.f32 %v2303, %v2308
    %2312 = vrot.lane.b32.xlu0 %v2310, 32
    %v2313 = vpop.permute.xlu0 %2312
    %v2315 = vadd.f32 %v2305, %v2313
    %v2316 = vtanh.pop %v2315
    %2318 = vrot.lane.b32.xlu0 %v2316, 64
    %v2319 = vpop.permute.xlu0 %2318
    %v2321 = vmul.f32 %v2303, %v2319
    %v2322 = vadd.f32 %v385, %v2089
    %2324 = vrot.lane.b32.xlu0 %v2321, 32
    %v2325 = vpop.permute.xlu0 %2324
    %v2326 = vsel %vm447, %v2325, 0
    %2328 = vmatpush.msra.mxu0 0.0
    %2329 = vmatpush.msra.mxu0 0.0
    %2330 = vmatpush.msra.mxu0 0.0
    %2331 = vmatpush.msra.mxu0 0.0
    %2332 = vmatpush.msra.mxu0 0.0
    %2333 = vmatpush.msra.mxu0 0.0
    %2334 = vmatpush.msra.mxu0 0.0
    %2335 = vmatpush.msra.mxu0 0.0
    %2336 = vmatpush.msra.mxu0 0.0
    %2337 = vmatpush.msra.mxu0 0.0
    %2338 = vmatpush.msra.mxu0 0.0
    %2339 = vmatpush.msra.mxu0 0.0
    %2340 = vmatpush.msra.mxu0 %v196
    %2341 = vmatpush.msra.mxu0 %v195
    %2342 = vmatpush.msra.mxu0 %v194
    %2343 = vmatpush.msra.mxu0 %v193
    %2344 = vmatmul.f32.gmra.mxu0 %v2326
    %v2345 = vpop.f32.mrf.mxu0
    %v2346 = vadd.f32 0.0, %v2345
    %2347 = vdwg.mxu0
    %v2348 = vadd.f32 %v2322, %v2346
    %v2349 = vxor.u32 %v2348, 2147483648
    %v2350 = vmul.f32 %v2349, 1.442695
    %v2351 = vpow.pop %v2350
    %v2352 = vadd.f32 %v2351, 1.0
    %v2353 = vrcp.pop %v2352
    %v2354 = vmul.f32 %v2352, %v2353
    %v2355 = vsub.f32 1.0, %v2354
    %v2356 = vmul.f32 %v2353, %v2355
    %v2357 = vadd.f32 %v2353, %v2356
    %vm2358 = vweird.f32 %v2352
    %vm2359 = vweird.f32 %v2353
    %vm2360 = vmor %vm2358, %vm2359
    %v2361 = vsel %vm2360, %v2353, %v2357
    %v2362 = vand.u32 2147483647, %v2352
    %vm2363 = vcmp.eq.f32.partialorder %v2362, 8.507059e+37
    %v2364 = vand.u32 %v2352, 2147483648
    %v2365 = vor.u32 1.1754944e-38, %v2364
    %v2366 = vsel %vm2363, %v2365, %v2361
    %v2367 = vmul.f32 1.0, %v2366
    %v2368 = vtanh.pop %v2348
    %v2369 = vmul.f32 %v2367, %v2315
    %2371 = vrot.lane.b32.xlu0 %v2368, 64
    %v2372 = vpop.permute.xlu0 %2371
    %v2374 = vmul.f32 %v2367, %v2372
    %2376 = vrot.lane.b32.xlu0 %v2374, 32
    %v2377 = vpop.permute.xlu0 %2376
    %v2379 = vadd.f32 %v2369, %v2377
    %v2380 = vtanh.pop %v2379
    %2382 = vrot.lane.b32.xlu0 %v2380, 64
    %v2383 = vpop.permute.xlu0 %2382
    %v2385 = vmul.f32 %v2367, %v2383
    %v2386 = vadd.f32 %v405, %v2089
    %2388 = vrot.lane.b32.xlu0 %v2385, 32
    %v2389 = vpop.permute.xlu0 %2388
    %v2390 = vsel %vm447, %v2389, 0
    %2392 = vmatpush.msra.mxu0 0.0
    %2393 = vmatpush.msra.mxu0 0.0
    %2394 = vmatpush.msra.mxu0 0.0
    %2395 = vmatpush.msra.mxu0 0.0
    %2396 = vmatpush.msra.mxu0 0.0
    %2397 = vmatpush.msra.mxu0 0.0
    %2398 = vmatpush.msra.mxu0 0.0
    %2399 = vmatpush.msra.mxu0 0.0
    %2400 = vmatpush.msra.mxu0 0.0
    %2401 = vmatpush.msra.mxu0 0.0
    %2402 = vmatpush.msra.mxu0 0.0
    %2403 = vmatpush.msra.mxu0 0.0
    %2404 = vmatpush.msra.mxu0 %v196
    %2405 = vmatpush.msra.mxu0 %v195
    %2406 = vmatpush.msra.mxu0 %v194
    %2407 = vmatpush.msra.mxu0 %v193
    %2408 = vmatmul.f32.gmra.mxu0 %v2390
    %v2409 = vpop.f32.mrf.mxu0
    %v2410 = vadd.f32 0.0, %v2409
    %2411 = vdwg.mxu0
    %v2412 = vadd.f32 %v2386, %v2410
    %v2413 = vxor.u32 %v2412, 2147483648
    %v2414 = vmul.f32 %v2413, 1.442695
    %v2415 = vpow.pop %v2414
    %v2416 = vadd.f32 %v2415, 1.0
    %v2417 = vrcp.pop %v2416
    %v2418 = vmul.f32 %v2416, %v2417
    %v2419 = vsub.f32 1.0, %v2418
    %v2420 = vmul.f32 %v2417, %v2419
    %v2421 = vadd.f32 %v2417, %v2420
    %vm2422 = vweird.f32 %v2416
    %vm2423 = vweird.f32 %v2417
    %vm2424 = vmor %vm2422, %vm2423
    %v2425 = vsel %vm2424, %v2417, %v2421
    %v2426 = vand.u32 2147483647, %v2416
    %vm2427 = vcmp.eq.f32.partialorder %v2426, 8.507059e+37
    %v2428 = vand.u32 %v2416, 2147483648
    %v2429 = vor.u32 1.1754944e-38, %v2428
    %v2430 = vsel %vm2427, %v2429, %v2425
    %v2431 = vmul.f32 1.0, %v2430
    %v2432 = vtanh.pop %v2412
    %v2433 = vmul.f32 %v2431, %v2379
    %2435 = vrot.lane.b32.xlu0 %v2432, 64
    %v2436 = vpop.permute.xlu0 %2435
    %v2438 = vmul.f32 %v2431, %v2436
    %2440 = vrot.lane.b32.xlu0 %v2438, 32
    %v2441 = vpop.permute.xlu0 %2440
    %v2443 = vadd.f32 %v2433, %v2441
    %v2444 = vtanh.pop %v2443
    %2446 = vrot.lane.b32.xlu0 %v2444, 64
    %v2447 = vpop.permute.xlu0 %2446
    %v2449 = vmul.f32 %v2431, %v2447
    %v2450 = vadd.f32 %v425, %v2089
    %2452 = vrot.lane.b32.xlu0 %v2449, 32
    %v2453 = vpop.permute.xlu0 %2452
    %v2454 = vsel %vm447, %v2453, 0
    %2456 = vmatpush.msra.mxu0 0.0
    %2457 = vmatpush.msra.mxu0 0.0
    %2458 = vmatpush.msra.mxu0 0.0
    %2459 = vmatpush.msra.mxu0 0.0
    %2460 = vmatpush.msra.mxu0 0.0
    %2461 = vmatpush.msra.mxu0 0.0
    %2462 = vmatpush.msra.mxu0 0.0
    %2463 = vmatpush.msra.mxu0 0.0
    %2464 = vmatpush.msra.mxu0 0.0
    %2465 = vmatpush.msra.mxu0 0.0
    %2466 = vmatpush.msra.mxu0 0.0
    %2467 = vmatpush.msra.mxu0 0.0
    %2468 = vmatpush.msra.mxu0 %v196
    %2469 = vmatpush.msra.mxu0 %v195
    %2470 = vmatpush.msra.mxu0 %v194
    %2471 = vmatpush.msra.mxu0 %v193
    %2472 = vmatmul.f32.gmra.mxu0 %v2454
    %v2473 = vpop.f32.mrf.mxu0
    %v2474 = vadd.f32 0.0, %v2473
    %2475 = vdwg.mxu0
    %v2476 = vadd.f32 %v2450, %v2474
    %v2477 = vxor.u32 %v2476, 2147483648
    %v2478 = vmul.f32 %v2477, 1.442695
    %v2479 = vpow.pop %v2478
    %v2480 = vadd.f32 %v2479, 1.0
    %v2481 = vrcp.pop %v2480
    %v2482 = vmul.f32 %v2480, %v2481
    %v2483 = vsub.f32 1.0, %v2482
    %v2484 = vmul.f32 %v2481, %v2483
    %v2485 = vadd.f32 %v2481, %v2484
    %vm2486 = vweird.f32 %v2480
    %vm2487 = vweird.f32 %v2481
    %vm2488 = vmor %vm2486, %vm2487
    %v2489 = vsel %vm2488, %v2481, %v2485
    %v2490 = vand.u32 2147483647, %v2480
    %vm2491 = vcmp.eq.f32.partialorder %v2490, 8.507059e+37
    %v2492 = vand.u32 %v2480, 2147483648
    %v2493 = vor.u32 1.1754944e-38, %v2492
    %v2494 = vsel %vm2491, %v2493, %v2489
    %v2495 = vmul.f32 1.0, %v2494
    %v2496 = vtanh.pop %v2476
    %v2497 = vmul.f32 %v2495, %v2443
    %2499 = vrot.lane.b32.xlu0 %v2496, 64
    %v2500 = vpop.permute.xlu0 %2499
    %v2502 = vmul.f32 %v2495, %v2500
    %2504 = vrot.lane.b32.xlu0 %v2502, 32
    %v2505 = vpop.permute.xlu0 %2504
    %v2507 = vadd.f32 %v2497, %v2505
    %v2508 = vtanh.pop %v2507
    %2510 = vrot.lane.b32.xlu0 %v2508, 64
    %v2511 = vpop.permute.xlu0 %2510
    %v2513 = vmul.f32 %v2495, %v2511
    %v2514 = vadd.f32 %v445, %v2089
    %2516 = vrot.lane.b32.xlu0 %v2513, 32
    %v2517 = vpop.permute.xlu0 %2516
    %v2518 = vsel %vm447, %v2517, 0
    %2520 = vmatpush.msra.mxu0 0.0
    %2521 = vmatpush.msra.mxu0 0.0
    %2522 = vmatpush.msra.mxu0 0.0
    %2523 = vmatpush.msra.mxu0 0.0
    %2524 = vmatpush.msra.mxu0 0.0
    %2525 = vmatpush.msra.mxu0 0.0
    %2526 = vmatpush.msra.mxu0 0.0
    %2527 = vmatpush.msra.mxu0 0.0
    %2528 = vmatpush.msra.mxu0 0.0
    %2529 = vmatpush.msra.mxu0 0.0
    %2530 = vmatpush.msra.mxu0 0.0
    %2531 = vmatpush.msra.mxu0 0.0
    %2532 = vmatpush.msra.mxu0 %v196
    %2533 = vmatpush.msra.mxu0 %v195
    %2534 = vmatpush.msra.mxu0 %v194
    %2535 = vmatpush.msra.mxu0 %v193
    %2536 = vmatmul.f32.gmra.mxu0 %v2518
    %v2537 = vpop.f32.mrf.mxu0
    %v2538 = vadd.f32 0.0, %v2537
    %2539 = vdwg.mxu0
    %v2540 = vadd.f32 %v2514, %v2538
    %v2541 = vxor.u32 %v2540, 2147483648
    %v2542 = vmul.f32 %v2541, 1.442695
    %v2543 = vpow.pop %v2542
    %v2544 = vadd.f32 %v2543, 1.0
    %v2545 = vrcp.pop %v2544
    %v2546 = vmul.f32 %v2544, %v2545
    %v2547 = vsub.f32 1.0, %v2546
    %v2548 = vmul.f32 %v2545, %v2547
    %v2549 = vadd.f32 %v2545, %v2548
    %vm2550 = vweird.f32 %v2544
    %vm2551 = vweird.f32 %v2545
    %vm2552 = vmor %vm2550, %vm2551
    %v2553 = vsel %vm2552, %v2545, %v2549
    %v2554 = vand.u32 2147483647, %v2544
    %vm2555 = vcmp.eq.f32.partialorder %v2554, 8.507059e+37
    %v2556 = vand.u32 %v2544, 2147483648
    %v2557 = vor.u32 1.1754944e-38, %v2556
    %v2558 = vsel %vm2555, %v2557, %v2553
    %v2559 = vmul.f32 1.0, %v2558
    %v2560 = vtanh.pop %v2540
    %v2561 = vmul.f32 %v2559, %v2507
    %2563 = vrot.lane.b32.xlu0 %v2560, 64
    %v2564 = vpop.permute.xlu0 %2563
    %v2566 = vmul.f32 %v2559, %v2564
    %2568 = vrot.lane.b32.xlu0 %v2566, 32
    %v2569 = vpop.permute.xlu0 %2568
    %v2571 = vadd.f32 %v2561, %v2569
    %v2572 = vtanh.pop %v2571
    %2574 = vrot.lane.b32.xlu0 %v2572, 64
    %v2575 = vpop.permute.xlu0 %2574
    %v2577 = vmul.f32 %v2559, %v2575
    %2579 = vrot.lane.b32.xlu0 %v2193, 64
    %v2580 = vpop.permute.xlu0 %2579
    %2582 = vrot.lane.b32.xlu0 %v2257, 96
    %v2583 = vpop.permute.xlu0 %2582
    %2586 = vrot.lane.b32.xlu0 %v2449, 64
    %v2587 = vpop.permute.xlu0 %2586
    %2589 = vrot.lane.b32.xlu0 %v2513, 96
    %v2590 = vpop.permute.xlu0 %2589
    %v2592 = vsel %vm447, %v2133, %v2580
    %v2593 = vsel %vm283, %v2592, %v2583
    %v2594 = vsel %vm966, %v2593, %v2321
    %v2595 = vsel %vm447, %v2389, %v2587
    %v2596 = vsel %vm283, %v2595, %v2590
    %v2597 = vsel %vm966, %v2596, %v2577
    %v2598 = vmax.f32 %v2594, 0.0
    %v2599 = vmax.f32 %v2597, 0.0
    %2600 = vmatpush.msra.mxu0 %v988
    %2601 = vmatpush.msra.mxu0 %v987
    %2602 = vmatpush.msra.mxu0 %v986
    %2603 = vmatpush.msra.mxu0 %v985
    %2604 = vmatpush.msra.mxu0 %v984
    %2605 = vmatpush.msra.mxu0 %v983
    %2606 = vmatpush.msra.mxu0 %v982
    %2607 = vmatpush.msra.mxu0 %v981
    %2608 = vmatpush.msra.mxu0 %v980
    %2609 = vmatpush.msra.mxu0 %v979
    %2610 = vmatpush.msra.mxu0 %v978
    %2611 = vmatpush.msra.mxu0 %v977
    %2612 = vmatpush.msra.mxu0 %v976
    %2613 = vmatpush.msra.mxu0 %v975
    %2614 = vmatpush.msra.mxu0 %v974
    %2615 = vmatpush.msra.mxu0 %v973
    %2616 = vmatmul.f32.gmra.mxu0 %v2598
    %v2617 = vpop.f32.mrf.mxu0
    %v2618 = vadd.f32 %v1007, %v2617
    %2619 = vdwg.mxu0
    %2620 = vmatpush.msra.mxu0 %v1004
    %2621 = vmatpush.msra.mxu0 %v1003
    %2622 = vmatpush.msra.mxu0 %v1002
    %2623 = vmatpush.msra.mxu0 %v1001
    %2624 = vmatpush.msra.mxu0 %v1000
    %2625 = vmatpush.msra.mxu0 %v999
    %2626 = vmatpush.msra.mxu0 %v998
    %2627 = vmatpush.msra.mxu0 %v997
    %2628 = vmatpush.msra.mxu0 %v996
    %2629 = vmatpush.msra.mxu0 %v995
    %2630 = vmatpush.msra.mxu0 %v994
    %2631 = vmatpush.msra.mxu0 %v993
    %2632 = vmatpush.msra.mxu0 %v992
    %2633 = vmatpush.msra.mxu0 %v991
    %2634 = vmatpush.msra.mxu0 %v990
    %2635 = vmatpush.msra.mxu0 %v989
    %2636 = vmatmul.f32.gmra.mxu0 %v2599
    %v2637 = vpop.f32.mrf.mxu0
    %v2638 = vadd.f32 %v2618, %v2637
    %2639 = vdwg.mxu0
    %v2640 = vsub.f32 %v192, %v2638
    %v2642 = vsel %vm283, %v2640, 0
    %2644 = vmatpush.msra.mxu0 0.0
    %2645 = vmatpush.msra.mxu0 0.0
    %2646 = vmatpush.msra.mxu0 0.0
    %2647 = vmatpush.msra.mxu0 0.0
    %2648 = vmatpush.msra.mxu0 0.0
    %2649 = vmatpush.msra.mxu0 0.0
    %2650 = vmatpush.msra.mxu0 0.0
    %2651 = vmatpush.msra.mxu0 0.0
    %2652 = vmatpush.msra.mxu0 %v1064
    %2653 = vmatpush.msra.mxu0 %v1062
    %2654 = vmatpush.msra.mxu0 %v1060
    %2655 = vmatpush.msra.mxu0 %v1058
    %2656 = vmatpush.msra.mxu0 %v1056
    %2657 = vmatpush.msra.mxu0 %v1054
    %2658 = vmatpush.msra.mxu0 %v1052
    %2659 = vmatpush.msra.mxu0 %v1050
    %2660 = vmatmul.f32.gmra.mxu0 %v2642
    %v2661 = vpop.f32.mrf.mxu0
    %v2662 = vadd.f32 %v1068, %v2661
    %2663 = vdwg.mxu0
    %2664 = vmatpush.msra.mxu0 0.0
    %2665 = vmatpush.msra.mxu0 0.0
    %2666 = vmatpush.msra.mxu0 0.0
    %2667 = vmatpush.msra.mxu0 0.0
    %2668 = vmatpush.msra.mxu0 0.0
    %2669 = vmatpush.msra.mxu0 0.0
    %2670 = vmatpush.msra.mxu0 0.0
    %2671 = vmatpush.msra.mxu0 0.0
    %2672 = vmatpush.msra.mxu0 %v1065
    %2673 = vmatpush.msra.mxu0 %v1063
    %2674 = vmatpush.msra.mxu0 %v1061
    %2675 = vmatpush.msra.mxu0 %v1059
    %2676 = vmatpush.msra.mxu0 %v1057
    %2677 = vmatpush.msra.mxu0 %v1055
    %2678 = vmatpush.msra.mxu0 %v1053
    %2679 = vmatpush.msra.mxu0 %v1051
    %2680 = vmatmul.f32.gmra.mxu0 %v2642
    %v2681 = vpop.f32.mrf.mxu0
    %v2682 = vadd.f32 %v1069, %v2681
    %2683 = vdwg.mxu0
    %v2684 = vadd.f32 %v2662, %v1133
    %v2685 = vxor.u32 %v2684, 2147483648
    %v2686 = vmul.f32 %v2685, 1.442695
    %v2687 = vpow.pop %v2686
    %v2688 = vadd.f32 %v2687, 1.0
    %v2689 = vrcp.pop %v2688
    %v2690 = vmul.f32 %v2688, %v2689
    %v2691 = vsub.f32 1.0, %v2690
    %v2692 = vmul.f32 %v2689, %v2691
    %v2693 = vadd.f32 %v2689, %v2692
    %vm2694 = vweird.f32 %v2688
    %vm2695 = vweird.f32 %v2689
    %vm2696 = vmor %vm2694, %vm2695
    %v2697 = vsel %vm2696, %v2689, %v2693
    %v2698 = vand.u32 2147483647, %v2688
    %vm2699 = vcmp.eq.f32.partialorder %v2698, 8.507059e+37
    %v2700 = vand.u32 %v2688, 2147483648
    %v2701 = vor.u32 1.1754944e-38, %v2700
    %v2702 = vsel %vm2699, %v2701, %v2697
    %v2703 = vmul.f32 1.0, %v2702
    %v2704 = vtanh.pop %v2684
    %v2705 = vmul.f32 %v2703, 0.0
    %2707 = vrot.lane.b32.xlu0 %v2704, 64
    %v2708 = vpop.permute.xlu0 %2707
    %v2710 = vmul.f32 %v2703, %v2708
    %2712 = vrot.lane.b32.xlu0 %v2710, 32
    %v2713 = vpop.permute.xlu0 %2712
    %v2715 = vadd.f32 %v2705, %v2713
    %v2716 = vtanh.pop %v2715
    %2718 = vrot.lane.b32.xlu0 %v2716, 64
    %v2719 = vpop.permute.xlu0 %2718
    %v2721 = vmul.f32 %v2703, %v2719
    %2723 = vrot.lane.b32.xlu0 %v2721, 32
    %v2724 = vpop.permute.xlu0 %2723
    %v2725 = vsel %vm447, %v2724, 0
    %2727 = vmatpush.msra.mxu0 0.0
    %2728 = vmatpush.msra.mxu0 0.0
    %2729 = vmatpush.msra.mxu0 0.0
    %2730 = vmatpush.msra.mxu0 0.0
    %2731 = vmatpush.msra.mxu0 0.0
    %2732 = vmatpush.msra.mxu0 0.0
    %2733 = vmatpush.msra.mxu0 0.0
    %2734 = vmatpush.msra.mxu0 0.0
    %2735 = vmatpush.msra.mxu0 0.0
    %2736 = vmatpush.msra.mxu0 0.0
    %2737 = vmatpush.msra.mxu0 0.0
    %2738 = vmatpush.msra.mxu0 0.0
    %2739 = vmatpush.msra.mxu0 %v200
    %2740 = vmatpush.msra.mxu0 %v199
    %2741 = vmatpush.msra.mxu0 %v198
    %2742 = vmatpush.msra.mxu0 %v197
    %2743 = vmatmul.f32.gmra.mxu0 %v2725
    %v2744 = vpop.f32.mrf.mxu0
    %v2745 = vadd.f32 0.0, %v2744
    %2746 = vdwg.mxu0
    %v2747 = vadd.f32 %v2682, %v2745
    %v2748 = vxor.u32 %v2747, 2147483648
    %v2749 = vmul.f32 %v2748, 1.442695
    %v2750 = vpow.pop %v2749
    %v2751 = vadd.f32 %v2750, 1.0
    %v2752 = vrcp.pop %v2751
    %v2753 = vmul.f32 %v2751, %v2752
    %v2754 = vsub.f32 1.0, %v2753
    %v2755 = vmul.f32 %v2752, %v2754
    %v2756 = vadd.f32 %v2752, %v2755
    %vm2757 = vweird.f32 %v2751
    %vm2758 = vweird.f32 %v2752
    %vm2759 = vmor %vm2757, %vm2758
    %v2760 = vsel %vm2759, %v2752, %v2756
    %v2761 = vand.u32 2147483647, %v2751
    %vm2762 = vcmp.eq.f32.partialorder %v2761, 8.507059e+37
    %v2763 = vand.u32 %v2751, 2147483648
    %v2764 = vor.u32 1.1754944e-38, %v2763
    %v2765 = vsel %vm2762, %v2764, %v2760
    %v2766 = vmul.f32 1.0, %v2765
    %v2767 = vtanh.pop %v2747
    %v2768 = vmul.f32 %v2766, %v2715
    %2770 = vrot.lane.b32.xlu0 %v2767, 64
    %v2771 = vpop.permute.xlu0 %2770
    %v2773 = vmul.f32 %v2766, %v2771
    %2775 = vrot.lane.b32.xlu0 %v2773, 32
    %v2776 = vpop.permute.xlu0 %2775
    %v2778 = vadd.f32 %v2768, %v2776
    %v2779 = vtanh.pop %v2778
    %2781 = vrot.lane.b32.xlu0 %v2779, 64
    %v2782 = vpop.permute.xlu0 %2781
    %v2784 = vmul.f32 %v2766, %v2782
    %2787 = vrot.lane.b32.xlu0 %v2784, 64
    %v2788 = vpop.permute.xlu0 %2787
    %v2790 = vsel %vm447, %v2724, %v2788
    %v2791 = vmax.f32 %v2790, 0.0
    %v2793 = vsel %vm283, %v2791, 0
    %2795 = vmatpush.msra.mxu0 0.0
    %2796 = vmatpush.msra.mxu0 0.0
    %2797 = vmatpush.msra.mxu0 0.0
    %2798 = vmatpush.msra.mxu0 0.0
    %2799 = vmatpush.msra.mxu0 0.0
    %2800 = vmatpush.msra.mxu0 0.0
    %2801 = vmatpush.msra.mxu0 0.0
    %2802 = vmatpush.msra.mxu0 0.0
    %2803 = vmatpush.msra.mxu0 %v1250
    %2804 = vmatpush.msra.mxu0 %v1249
    %2805 = vmatpush.msra.mxu0 %v1248
    %2806 = vmatpush.msra.mxu0 %v1247
    %2807 = vmatpush.msra.mxu0 %v1246
    %2808 = vmatpush.msra.mxu0 %v1245
    %2809 = vmatpush.msra.mxu0 %v1244
    %2810 = vmatpush.msra.mxu0 %v1243
    %2811 = vmatmul.f32.gmra.mxu0 %v2793
    %v2812 = vpop.f32.mrf.mxu0
    %v2813 = vadd.f32 %v1253, %v2812
    %2814 = vdwg.mxu0
    %vm2815 = vcmask 517120
    %2816 = vst.msk [vmem:[#allocation19] sm:$0x3] %vm2815, %v2638
    %vm2817 = vcmask 58368
    %2818 = vst.msk [vmem:[%s13] sm:$0x3] %vm2817, %v2813
    // Predicated region
    $region90: #{_lambda_.1} parent=1 // pred_check
      _
    $region91: #{_lambda_.1} parent=1 // pred_check_branch
      %2820 = sbr.rel (0) target = $region93
    $region92: #{_lambda_.1} parent=1 // pred_region
      %2822 = vsyncadd [#allocation4], 0
      %s2824 = sshll.u32 [#allocation19], 4
      %s2825 = int_to_ptr.vmem [resolvable:$true] %s2824
      %s2826 = sshll.u32 %s12, 4
      %s2827 = int_to_ptr.hbm [resolvable:$true] %s2826
      %2829 = dma.vmem_to_hbm [thread:$0]  %s2825, 32, %s2827, [#allocation4]
    $region93: #{_lambda_.1} parent=1 // pred_fallthru
      _
    // Predicated region
    $region94: #{_lambda_.1} parent=1 // pred_check
      _
    $region95: #{_lambda_.1} parent=1 // pred_check_branch
      %2831 = sbr.rel (0) target = $region97
    $region96: #{_lambda_.1} parent=1 // pred_region
      _
    $region97: #{_lambda_.1} parent=1 // pred_fallthru
      _
    // Predicated region
    $region98: #{_lambda_.1} parent=1 // pred_check
      _
    $region99: #{_lambda_.1} parent=1 // pred_check_branch
      %2833 = sbr.rel (0) target = $region101
    $region100: #{_lambda_.1} parent=1 // pred_region
      %2835 = dma.done [#allocation4], 32
    $region101: #{_lambda_.1} parent=1 // pred_fallthru
      _
    // Predicated region
    $region102: #{_lambda_.1} parent=1 // pred_check
      _
    $region103: #{_lambda_.1} parent=1 // pred_check_branch
      %2837 = sbr.rel (0) target = $region105
    $region104: #{_lambda_.1} parent=1 // pred_region
      _
    $region105: #{_lambda_.1} parent=1 // pred_fallthru
      _
    %2838 = vsyncpa [#allocation3], 1
    %2839 = vsyncpa [#allocation6], 1
    %2840 = vsyncpa [#allocation9], 1
    %2841 = vsyncpa [#allocation12], 1
    %2842 = vsyncpa [#allocation15], 1
    %2843 = vsyncpa [#allocation18], 1
    %2844 = vsyncpa [#allocation4], 1

</llo_original>
